<compile_context>
chip_gen: v5e
topology: v5e:2x2
jax: 0.10.0
libtpu: 0.0.40
codegen_flags: <defaults>
</compile_context>

<pallas_src>
import functools

import jax
import jax.numpy as jnp
from jax.experimental import pallas as pl
from jax.experimental.pallas import tpu as pltpu

CMID = 128   # dim_mid of FlowEstimator (fixed by the reference module)
DOUT = 2     # dim_out of FlowEstimator
DPAD = 8     # dim_out padded to one sublane group for the output block


# ----------------------------------------------------------------------------
# Fused FlowEstimator Pallas kernel (channel-major, lane-dense along H*W).
# ----------------------------------------------------------------------------
def _flow_estimator_kernel(x_ref, m_ref, w1t_ref, b1_ref, wd1_ref, bd1_ref,
                           wd2_ref, bd2_ref, w2t_ref, b2_ref, o_ref, *, H, W):
    HW = H * W

    # --- layer 1: concat + BN folded into one 1x1 conv; bf16 MXU, f32 acc. --
    x = x_ref[0]                                            # (cin_p, HW) bf16
    h = jnp.dot(w1t_ref[...], x, preferred_element_type=jnp.float32)
    h = jnp.maximum(h + b1_ref[...], 0.0)                   # (cmid, HW) f32

    m = m_ref[...]                                          # (8, HW) f32 {0,1}
    m_col_lo = m[0:1]        # valid where source column w-1 exists
    m_col_hi = m[1:2]        # valid where source column w+1 exists
    m_row_lo = m[2:3]        # valid where source row h-1 exists
    m_row_hi = m[3:4]        # valid where source row h+1 exists

    # --- layers 2 & 3: depthwise 3x3 (pad=1) via XLU rolls + masked VPU MAC.
    def dw3x3_relu(t, w_ref, b_ref):
        w = w_ref[...]                                      # (cmid, 9)
        # Column-shifted variants computed ONCE, reused for all row offsets.
        t_r = pltpu.roll(t, HW - 1, axis=1) * m_col_hi      # t[:, h, w+1]
        t_l = pltpu.roll(t, 1, axis=1) * m_col_lo           # t[:, h, w-1]
        # centre row (di = 0): init acc with the centre tap (no zeros init).
        acc = t * w[:, 4:5] + t_l * w[:, 3:4] + t_r * w[:, 5:6]
        # di = +1 (read row h+1): roll by HW-W, zero the last row.
        for k, v in enumerate((t_l, t, t_r)):
            acc = acc + (pltpu.roll(v, HW - W, axis=1) * m_row_hi) * w[:, 6 + k:7 + k]
        # di = -1 (read row h-1): roll by W, zero the first row.
        for k, v in enumerate((t_l, t, t_r)):
            acc = acc + (pltpu.roll(v, W, axis=1) * m_row_lo) * w[:, k:k + 1]
        return jnp.maximum(acc + b_ref[...], 0.0)

    h = dw3x3_relu(h, wd1_ref, bd1_ref)
    h = dw3x3_relu(h, wd2_ref, bd2_ref)

    # --- layer 4: 1x1 conv to DOUT (padded to 8 sublanes), no activation. ---
    out = jnp.dot(w2t_ref[...], h.astype(jnp.bfloat16),
                  preferred_element_type=jnp.float32)       # (DPAD, HW)
    o_ref[0] = out + b2_ref[...]


def flow_estimator_pallas(prep, cloth_nchw, shape_nchw):
    """Fused FlowEstimator.  Inputs NCHW, returns delta flow (N, 2, H, W)."""
    N, Cf, H, W = cloth_nchw.shape
    HW = H * W
    cmid, cin_p = prep['w1t'].shape

    # Channel-major, lane-dense input: NCHW -> (N, 2*Cf, H*W). No transposes.
    x = jnp.concatenate([cloth_nchw, shape_nchw], axis=1).reshape(N, 2 * Cf, HW)
    if cin_p != 2 * Cf:
        x = jnp.pad(x, ((0, 0), (0, cin_p - 2 * Cf), (0, 0)))
    x = x.astype(jnp.bfloat16)                      # halve input DMA bytes

    # Boundary masks for the pad=1 depthwise shifts (constants under jit).
    col = jnp.tile(jnp.arange(W, dtype=jnp.int32), H)
    flat = jnp.arange(HW, dtype=jnp.int32)
    ones = jnp.ones((HW,), bool)
    masks = jnp.stack([(col != 0), (col != W - 1),
                       (flat >= W), (flat < (H - 1) * W),
                       ones, ones, ones, ones]).astype(jnp.float32)   # (8, HW)

    # Right-sized VMEM budget: double-buffered blocks + weights + live acts.
    act_b = cmid * HW * 4
    io_b = 2 * (cin_p * HW * 2) + 2 * (DPAD * HW * 4) + 2 * (8 * HW * 4)
    w_b = 2 * (cmid * cin_p * 2 + cmid * 4 + 2 * (9 * cmid + cmid) * 4
               + DPAD * cmid * 2 + DPAD * 4)
    vmem_limit = int(min(max(io_b + w_b + 12 * act_b, 16 << 20), 100 << 20))

    kern = functools.partial(_flow_estimator_kernel, H=H, W=W)
    out = pl.pallas_call(
        kern,
        out_shape=jax.ShapeDtypeStruct((N, DPAD, HW), jnp.float32),
        grid=(N,),
        in_specs=[
            pl.BlockSpec((1, cin_p, HW), lambda n: (n, 0, 0)),   # x
            pl.BlockSpec((8, HW), lambda n: (0, 0)),             # masks
            pl.BlockSpec((cmid, cin_p), lambda n: (0, 0)),       # w1t (bf16)
            pl.BlockSpec((cmid, 1), lambda n: (0, 0)),           # b1
            pl.BlockSpec((cmid, 9), lambda n: (0, 0)),           # wd1
            pl.BlockSpec((cmid, 1), lambda n: (0, 0)),           # bd1
            pl.BlockSpec((cmid, 9), lambda n: (0, 0)),           # wd2
            pl.BlockSpec((cmid, 1), lambda n: (0, 0)),           # bd2
            pl.BlockSpec((DPAD, cmid), lambda n: (0, 0)),        # w2t (bf16)
            pl.BlockSpec((DPAD, 1), lambda n: (0, 0)),           # b2
        ],
        out_specs=pl.BlockSpec((1, DPAD, HW), lambda n: (n, 0, 0)),
        compiler_params=pltpu.CompilerParams(
            dimension_semantics=("parallel",),
            vmem_limit_bytes=vmem_limit),
    )(x, masks, prep['w1t'], prep['b1'], prep['wd1'], prep['bd1'],
      prep['wd2'], prep['bd2'], prep['w2t'], prep['b2'])

    return out[:, :DOUT, :].reshape(N, DOUT, H, W)


# ----------------------------------------------------------------------------
# Parameter init + host-side folding (BN + concat fold + channel-major pack).
# ----------------------------------------------------------------------------
def init_flow_estimator_params(key, cin, cmid=CMID, cout=DOUT):
    ks = jax.random.split(key, 12)
    p = {}
    p['bn_gamma'] = 1.0 + 0.1 * jax.random.normal(ks[0], (cin,), jnp.float32)
    p['bn_beta'] = 0.1 * jax.random.normal(ks[1], (cin,), jnp.float32)
    p['bn_mean'] = 0.1 * jax.random.normal(ks[2], (cin,), jnp.float32)
    p['bn_var'] = jnp.abs(jax.random.normal(ks[3], (cin,), jnp.float32)) + 0.5
    p['w1'] = 0.25 * jax.random.normal(ks[4], (cin, cmid), jnp.float32)
    p['b1'] = 0.1 * jax.random.normal(ks[5], (cmid,), jnp.float32)
    p['wd1'] = 0.2 * jax.random.normal(ks[6], (3, 3, 1, cmid), jnp.float32)
    p['bd1'] = 0.1 * jax.random.normal(ks[7], (cmid,), jnp.float32)
    p['wd2'] = 0.2 * jax.random.normal(ks[8], (3, 3, 1, cmid), jnp.float32)
    p['bd2'] = 0.1 * jax.random.normal(ks[9], (cmid,), jnp.float32)
    p['w2'] = 0.15 * jax.random.normal(ks[10], (cmid, cout), jnp.float32)
    p['b2'] = 0.1 * jax.random.normal(ks[11], (cout,), jnp.float32)
    return p


def prepare_flow_params(p):
    """One-time fold: eval-BN -> conv1, transpose to channel-major, pad cin to
    a sublane multiple and DOUT to 8, bf16 for the MXU operands."""
    eps = 1e-5
    cin, cmid = p['w1'].shape
    cin_p = max(8, ((cin + 7) // 8) * 8)
    scale = p['bn_gamma'] / jnp.sqrt(p['bn_var'] + eps)
    shift = p['bn_beta'] - p['bn_mean'] * scale
    w1s = p['w1'] * scale[:, None]                       # (cin, cmid)
    b1f = shift @ p['w1'] + p['b1']                      # (cmid,)
    w1t = jnp.zeros((cmid, cin_p), jnp.float32).at[:, :cin].set(w1s.T)
    w2t = jnp.zeros((DPAD, cmid), jnp.float32).at[:DOUT, :].set(p['w2'].T)
    b2p = jnp.zeros((DPAD,), jnp.float32).at[:DOUT].set(p['b2'])
    return {
        'w1t': w1t.astype(jnp.bfloat16),
        'b1': b1f.reshape(cmid, 1),
        'wd1': p['wd1'].reshape(9, cmid).T,              # (cmid, 9)
        'bd1': p['bd1'].reshape(cmid, 1),
        'wd2': p['wd2'].reshape(9, cmid).T,
        'bd2': p['bd2'].reshape(cmid, 1),
        'w2t': w2t.astype(jnp.bfloat16),
        'b2': b2p.reshape(DPAD, 1),
    }


# ----------------------------------------------------------------------------
# Plain-JAX glue matching the PyTorch ops (grid_sample / interpolate / offset).
# ----------------------------------------------------------------------------
def apply_offset(offset):
    """offset (N,2,H,W) -> normalized sampling grid (N,H,W,2), as in the spec."""
    N, _, H, W = offset.shape
    xs = jnp.arange(W, dtype=jnp.float32).reshape(1, 1, W)
    ys = jnp.arange(H, dtype=jnp.float32).reshape(1, H, 1)
    gx = (xs + offset[:, 0]) / ((W - 1.0) / 2.0) - 1.0
    gy = (ys + offset[:, 1]) / ((H - 1.0) / 2.0) - 1.0
    return jnp.stack([gx, gy], axis=-1)


def grid_sample_bilinear_border(img, grid):
    """F.grid_sample(mode='bilinear', padding_mode='border', align_corners=False).
    img (N,C,H,W), grid (N,Ho,Wo,2) with (x, y) in [-1, 1]."""
    N, C, H, W = img.shape
    x = grid[..., 0]
    y = grid[..., 1]
    ix = jnp.clip(((x + 1.0) * W - 1.0) * 0.5, 0.0, W - 1.0)
    iy = jnp.clip(((y + 1.0) * H - 1.0) * 0.5, 0.0, H - 1.0)
    ix0f = jnp.floor(ix)
    iy0f = jnp.floor(iy)
    wx1 = (ix - ix0f)[:, None]
    wy1 = (iy - iy0f)[:, None]
    ix0 = jnp.minimum(ix0f.astype(jnp.int32), W - 1)
    iy0 = jnp.minimum(iy0f.astype(jnp.int32), H - 1)
    ix1 = jnp.minimum(ix0 + 1, W - 1)
    iy1 = jnp.minimum(iy0 + 1, H - 1)

    flat = img.reshape(N, C, H * W)

    def gather(iy_, ix_):
        idx = (iy_ * W + ix_).reshape(N, 1, -1)
        idx = jnp.broadcast_to(idx, (N, C, idx.shape[-1]))
        g = jnp.take_along_axis(flat, idx, axis=2)
        return g.reshape(N, C, iy_.shape[1], iy_.shape[2])

    v00 = gather(iy0, ix0)
    v01 = gather(iy0, ix1)
    v10 = gather(iy1, ix0)
    v11 = gather(iy1, ix1)
    wx0 = 1.0 - wx1
    wy0 = 1.0 - wy1
    return v00 * wy0 * wx0 + v01 * wy0 * wx1 + v10 * wy1 * wx0 + v11 * wy1 * wx1


def upsample_bilinear_2x(x):
    """F.interpolate(scale_factor=2, mode='bilinear'), align_corners=False."""
    N, C, H, W = x.shape

    def coords(in_size):
        d = jnp.arange(2 * in_size, dtype=jnp.float32)
        s = jnp.maximum((d + 0.5) * 0.5 - 0.5, 0.0)
        i0 = jnp.minimum(jnp.floor(s).astype(jnp.int32), in_size - 1)
        i1 = jnp.minimum(i0 + 1, in_size - 1)
        return i0, i1, s - i0.astype(jnp.float32)

    h0, h1, fh = coords(H)
    w0, w1, fw = coords(W)
    top = x[:, :, h0, :]
    bot = x[:, :, h1, :]
    fh_ = fh.reshape(1, 1, -1, 1)
    rows = top * (1.0 - fh_) + bot * fh_
    left = rows[:, :, :, w0]
    right = rows[:, :, :, w1]
    fw_ = fw.reshape(1, 1, 1, -1)
    return left * (1.0 - fw_) + right * fw_


# ----------------------------------------------------------------------------
# Pure-JAX FlowEstimator reference (lax.conv) for correctness checking.
# ----------------------------------------------------------------------------
def flow_estimator_ref(p, cloth_nchw, shape_nchw):
    eps = 1e-5
    a = jnp.transpose(cloth_nchw, (0, 2, 3, 1))
    b = jnp.transpose(shape_nchw, (0, 2, 3, 1))
    x = jnp.concatenate([a, b], axis=-1)
    scale = p['bn_gamma'] / jnp.sqrt(p['bn_var'] + eps)
    x = (x - p['bn_mean']) * scale + p['bn_beta']
    y = jnp.maximum(jnp.einsum('nhwc,cd->nhwd', x, p['w1']) + p['b1'], 0.0)

    def dw(t, w, bias):
        o = jax.lax.conv_general_dilated(
            t, w, (1, 1), ((1, 1), (1, 1)),
            dimension_numbers=("NHWC", "HWIO", "NHWC"),
            feature_group_count=t.shape[-1])
        return o + bias

    y = jnp.maximum(dw(y, p['wd1'], p['bd1']), 0.0)
    y = jnp.maximum(dw(y, p['wd2'], p['bd2']), 0.0)
    out = jnp.einsum('nhwc,cd->nhwd', y, p['w2']) + p['b2']
    return jnp.transpose(out, (0, 3, 1, 2))


# ----------------------------------------------------------------------------
# CascadeWarpingModule forward.
# ----------------------------------------------------------------------------
def cascade_forward(shape_fe, texture_fe, shape_fea, cloth_fea,
                    shape_last_flow=None, cloth_last_flow=None):
    if shape_last_flow is not None:
        cloth_fea_ = grid_sample_bilinear_border(
            cloth_fea, jnp.transpose(shape_last_flow, (0, 2, 3, 1)))
    else:
        cloth_fea_ = cloth_fea
    shape_delta_flow = shape_fe(cloth_fea_, shape_fea)
    shape_flow = apply_offset(shape_delta_flow)
    if shape_last_flow is not None:
        shape_last_flow = grid_sample_bilinear_border(shape_last_flow, shape_flow)
    else:
        shape_last_flow = jnp.transpose(shape_flow, (0, 3, 1, 2))
    if cloth_last_flow is not None:
        cloth_last_flow_ = grid_sample_bilinear_border(
            shape_last_flow, jnp.transpose(cloth_last_flow, (0, 2, 3, 1)))
    else:
        cloth_last_flow_ = shape_last_flow
    cloth_fea_ = grid_sample_bilinear_border(
        cloth_fea, jnp.transpose(cloth_last_flow_, (0, 2, 3, 1)))
    cloth_delta_flow = texture_fe(cloth_fea_, shape_fea)
    cloth_flow = apply_offset(cloth_delta_flow)
    if cloth_last_flow is not None:
        cloth_last_flow = grid_sample_bilinear_border(cloth_last_flow, cloth_flow)
    else:
        cloth_last_flow = jnp.transpose(cloth_flow, (0, 3, 1, 2))
    cloth_last_flow_ = grid_sample_bilinear_border(
        shape_last_flow, jnp.transpose(cloth_last_flow, (0, 2, 3, 1)))
    cloth_last_flow_ = upsample_bilinear_2x(cloth_last_flow_)
    cloth_last_flow = upsample_bilinear_2x(cloth_last_flow)
    shape_last_flow = upsample_bilinear_2x(shape_last_flow)
    return (shape_last_flow, cloth_last_flow, cloth_last_flow_,
            shape_delta_flow, cloth_delta_flow)


@functools.partial(jax.jit, static_argnames=("use_pallas",))
def run_cascade(params_a, params_b, shape_fea, cloth_fea, *, use_pallas=True):
    if use_pallas:
        fe_a = lambda c, s: flow_estimator_pallas(params_a, c, s)
        fe_b = lambda c, s: flow_estimator_pallas(params_b, c, s)
    else:
        fe_a = lambda c, s: flow_estimator_ref(params_a, c, s)
        fe_b = lambda c, s: flow_estimator_ref(params_b, c, s)
    return cascade_forward(fe_a, fe_b, shape_fea, cloth_fea)


if __name__ == "__main__":
    key = jax.random.PRNGKey(0)
    k1, k2, k3, k4 = jax.random.split(key, 4)

    N, Cf, H, W = 2, 4, 16, 16
    shape_fea = jax.random.normal(k1, (N, Cf, H, W), jnp.float32)
    cloth_fea = jax.random.normal(k2, (N, Cf, H, W), jnp.float32)

    raw_shape = init_flow_estimator_params(k3, 2 * Cf)
    raw_tex = init_flow_estimator_params(k4, 2 * Cf)
    prep_shape = prepare_flow_params(raw_shape)
    prep_tex = prepare_flow_params(raw_tex)

    outs = run_cascade(prep_shape, prep_tex, shape_fea, cloth_fea, use_pallas=True)
    outs = jax.block_until_ready(outs)

    exp_shapes = [(N, 2, 2 * H, 2 * W)] * 3 + [(N, 2, H, W)] * 2
    for o, s in zip(outs, exp_shapes):
        assert o.shape == s, (o.shape, s)

    refs = run_cascade(raw_shape, raw_tex, shape_fea, cloth_fea, use_pallas=False)
    refs = jax.block_until_ready(refs)
    for o, r in zip(outs, refs):
        err = float(jnp.max(jnp.abs(o - r)))
        assert jnp.allclose(o, r, atol=5e-2, rtol=5e-2), err

    print("KERNEL_OK")
</pallas_src>

<mosaic_0001>
module attributes {stable_mosaic.version = 11 : i64} {
  func.func @_flow_estimator_kernel(%arg0: i32, %arg1: memref<1x8x256xbf16, #tpu.memory_space<vmem>>, %arg2: memref<8x256xf32, #tpu.memory_space<vmem>>, %arg3: memref<128x8xbf16, #tpu.memory_space<vmem>>, %arg4: memref<128x1xf32, #tpu.memory_space<vmem>>, %arg5: memref<128x9xf32, #tpu.memory_space<vmem>>, %arg6: memref<128x1xf32, #tpu.memory_space<vmem>>, %arg7: memref<128x9xf32, #tpu.memory_space<vmem>>, %arg8: memref<128x1xf32, #tpu.memory_space<vmem>>, %arg9: memref<8x128xbf16, #tpu.memory_space<vmem>>, %arg10: memref<8x1xf32, #tpu.memory_space<vmem>>, %arg11: memref<1x8x256xf32, #tpu.memory_space<vmem>>) attributes {dimension_semantics = [#tpu.dimension_semantics<parallel>], iteration_bounds = array<i64: 2>, scalar_prefetch = 0 : i64, scratch_operands = 0 : i64, tpu.core_type = #tpu.core_type<tc>, window_params = [{transform_indices = @transform_0, window_bounds = array<i64: 1, 8, 256>}, {pipeline_mode = #tpu.pipeline_mode<synchronous>, transform_indices = @transform_1, window_bounds = array<i64: 8, 256>}, {pipeline_mode = #tpu.pipeline_mode<synchronous>, transform_indices = @transform_2, window_bounds = array<i64: 128, 8>}, {pipeline_mode = #tpu.pipeline_mode<synchronous>, transform_indices = @transform_3, window_bounds = array<i64: 128, 1>}, {pipeline_mode = #tpu.pipeline_mode<synchronous>, transform_indices = @transform_4, window_bounds = array<i64: 128, 9>}, {pipeline_mode = #tpu.pipeline_mode<synchronous>, transform_indices = @transform_5, window_bounds = array<i64: 128, 1>}, {pipeline_mode = #tpu.pipeline_mode<synchronous>, transform_indices = @transform_6, window_bounds = array<i64: 128, 9>}, {pipeline_mode = #tpu.pipeline_mode<synchronous>, transform_indices = @transform_7, window_bounds = array<i64: 128, 1>}, {pipeline_mode = #tpu.pipeline_mode<synchronous>, transform_indices = @transform_8, window_bounds = array<i64: 8, 128>}, {pipeline_mode = #tpu.pipeline_mode<synchronous>, transform_indices = @transform_9, window_bounds = array<i64: 8, 1>}, {transform_indices = @transform_10, window_bounds = array<i64: 1, 8, 256>}]} {
    %c0 = arith.constant 0 : index
    %c0_0 = arith.constant 0 : index
    %c0_1 = arith.constant 0 : index
    %0 = vector.load %arg1[%c0, %c0_0, %c0_1] : memref<1x8x256xbf16, #tpu.memory_space<vmem>>, vector<1x8x256xbf16>
    %1 = vector.shape_cast %0 : vector<1x8x256xbf16> to vector<8x256xbf16>
    %c0_2 = arith.constant 0 : index
    %c0_3 = arith.constant 0 : index
    %2 = vector.load %arg3[%c0_2, %c0_3] : memref<128x8xbf16, #tpu.memory_space<vmem>>, vector<128x8xbf16>
    %cst = arith.constant dense<0.000000e+00> : vector<128x256xf32>
    %3 = tpu.matmul %2, %1, %cst {dimension_numbers = #tpu.dot_dimension_numbers<[1], [0], [0], [1], [0, 0, 1, 1], [], []>} : vector<128x8xbf16>, vector<8x256xbf16>, vector<128x256xf32> -> vector<128x256xf32>
    %c0_4 = arith.constant 0 : index
    %c0_5 = arith.constant 0 : index
    %4 = vector.load %arg4[%c0_4, %c0_5] : memref<128x1xf32, #tpu.memory_space<vmem>>, vector<128x1xf32>
    %5 = vector.broadcast %4 : vector<128x1xf32> to vector<128x256xf32>
    %6 = arith.addf %3, %5 : vector<128x256xf32>
    %cst_6 = arith.constant 0.000000e+00 : f32
    %7 = vector.broadcast %cst_6 : f32 to vector<128x256xf32>
    %8 = arith.maximumf %6, %7 : vector<128x256xf32>
    %c0_7 = arith.constant 0 : index
    %c0_8 = arith.constant 0 : index
    %9 = vector.load %arg2[%c0_7, %c0_8] : memref<8x256xf32, #tpu.memory_space<vmem>>, vector<8x256xf32>
    %10 = vector.extract_strided_slice %9 {offsets = [0, 0], sizes = [1, 256], strides = [1, 1]} : vector<8x256xf32> to vector<1x256xf32>
    %11 = vector.extract_strided_slice %9 {offsets = [1, 0], sizes = [1, 256], strides = [1, 1]} : vector<8x256xf32> to vector<1x256xf32>
    %12 = vector.extract_strided_slice %9 {offsets = [2, 0], sizes = [1, 256], strides = [1, 1]} : vector<8x256xf32> to vector<1x256xf32>
    %13 = vector.extract_strided_slice %9 {offsets = [3, 0], sizes = [1, 256], strides = [1, 1]} : vector<8x256xf32> to vector<1x256xf32>
    %c0_9 = arith.constant 0 : index
    %c0_10 = arith.constant 0 : index
    %14 = vector.load %arg5[%c0_9, %c0_10] : memref<128x9xf32, #tpu.memory_space<vmem>>, vector<128x9xf32>
    %c255_i32 = arith.constant 255 : i32
    %15 = tpu.dynamic_rotate %8 by %c255_i32 dim 1 : vector<128x256xf32>, i32 -> vector<128x256xf32>
    %16 = vector.broadcast %11 : vector<1x256xf32> to vector<128x256xf32>
    %17 = arith.mulf %15, %16 : vector<128x256xf32>
    %c1_i32 = arith.constant 1 : i32
    %18 = tpu.dynamic_rotate %8 by %c1_i32 dim 1 : vector<128x256xf32>, i32 -> vector<128x256xf32>
    %19 = vector.broadcast %10 : vector<1x256xf32> to vector<128x256xf32>
    %20 = arith.mulf %18, %19 : vector<128x256xf32>
    %21 = vector.extract_strided_slice %14 {offsets = [0, 4], sizes = [128, 1], strides = [1, 1]} : vector<128x9xf32> to vector<128x1xf32>
    %22 = vector.broadcast %21 : vector<128x1xf32> to vector<128x256xf32>
    %23 = arith.mulf %8, %22 : vector<128x256xf32>
    %24 = vector.extract_strided_slice %14 {offsets = [0, 3], sizes = [128, 1], strides = [1, 1]} : vector<128x9xf32> to vector<128x1xf32>
    %25 = vector.broadcast %24 : vector<128x1xf32> to vector<128x256xf32>
    %26 = arith.mulf %20, %25 : vector<128x256xf32>
    %27 = arith.addf %23, %26 : vector<128x256xf32>
    %28 = vector.extract_strided_slice %14 {offsets = [0, 5], sizes = [128, 1], strides = [1, 1]} : vector<128x9xf32> to vector<128x1xf32>
    %29 = vector.broadcast %28 : vector<128x1xf32> to vector<128x256xf32>
    %30 = arith.mulf %17, %29 : vector<128x256xf32>
    %31 = arith.addf %27, %30 : vector<128x256xf32>
    %c240_i32 = arith.constant 240 : i32
    %32 = tpu.dynamic_rotate %20 by %c240_i32 dim 1 : vector<128x256xf32>, i32 -> vector<128x256xf32>
    %33 = vector.broadcast %13 : vector<1x256xf32> to vector<128x256xf32>
    %34 = arith.mulf %32, %33 : vector<128x256xf32>
    %35 = vector.extract_strided_slice %14 {offsets = [0, 6], sizes = [128, 1], strides = [1, 1]} : vector<128x9xf32> to vector<128x1xf32>
    %36 = vector.broadcast %35 : vector<128x1xf32> to vector<128x256xf32>
    %37 = arith.mulf %34, %36 : vector<128x256xf32>
    %38 = arith.addf %31, %37 : vector<128x256xf32>
    %c240_i32_11 = arith.constant 240 : i32
    %39 = tpu.dynamic_rotate %8 by %c240_i32_11 dim 1 : vector<128x256xf32>, i32 -> vector<128x256xf32>
    %40 = vector.broadcast %13 : vector<1x256xf32> to vector<128x256xf32>
    %41 = arith.mulf %39, %40 : vector<128x256xf32>
    %42 = vector.extract_strided_slice %14 {offsets = [0, 7], sizes = [128, 1], strides = [1, 1]} : vector<128x9xf32> to vector<128x1xf32>
    %43 = vector.broadcast %42 : vector<128x1xf32> to vector<128x256xf32>
    %44 = arith.mulf %41, %43 : vector<128x256xf32>
    %45 = arith.addf %38, %44 : vector<128x256xf32>
    %c240_i32_12 = arith.constant 240 : i32
    %46 = tpu.dynamic_rotate %17 by %c240_i32_12 dim 1 : vector<128x256xf32>, i32 -> vector<128x256xf32>
    %47 = vector.broadcast %13 : vector<1x256xf32> to vector<128x256xf32>
    %48 = arith.mulf %46, %47 : vector<128x256xf32>
    %49 = vector.extract_strided_slice %14 {offsets = [0, 8], sizes = [128, 1], strides = [1, 1]} : vector<128x9xf32> to vector<128x1xf32>
    %50 = vector.broadcast %49 : vector<128x1xf32> to vector<128x256xf32>
    %51 = arith.mulf %48, %50 : vector<128x256xf32>
    %52 = arith.addf %45, %51 : vector<128x256xf32>
    %c16_i32 = arith.constant 16 : i32
    %53 = tpu.dynamic_rotate %20 by %c16_i32 dim 1 : vector<128x256xf32>, i32 -> vector<128x256xf32>
    %54 = vector.broadcast %12 : vector<1x256xf32> to vector<128x256xf32>
    %55 = arith.mulf %53, %54 : vector<128x256xf32>
    %56 = vector.extract_strided_slice %14 {offsets = [0, 0], sizes = [128, 1], strides = [1, 1]} : vector<128x9xf32> to vector<128x1xf32>
    %57 = vector.broadcast %56 : vector<128x1xf32> to vector<128x256xf32>
    %58 = arith.mulf %55, %57 : vector<128x256xf32>
    %59 = arith.addf %52, %58 : vector<128x256xf32>
    %c16_i32_13 = arith.constant 16 : i32
    %60 = tpu.dynamic_rotate %8 by %c16_i32_13 dim 1 : vector<128x256xf32>, i32 -> vector<128x256xf32>
    %61 = vector.broadcast %12 : vector<1x256xf32> to vector<128x256xf32>
    %62 = arith.mulf %60, %61 : vector<128x256xf32>
    %63 = vector.extract_strided_slice %14 {offsets = [0, 1], sizes = [128, 1], strides = [1, 1]} : vector<128x9xf32> to vector<128x1xf32>
    %64 = vector.broadcast %63 : vector<128x1xf32> to vector<128x256xf32>
    %65 = arith.mulf %62, %64 : vector<128x256xf32>
    %66 = arith.addf %59, %65 : vector<128x256xf32>
    %c16_i32_14 = arith.constant 16 : i32
    %67 = tpu.dynamic_rotate %17 by %c16_i32_14 dim 1 : vector<128x256xf32>, i32 -> vector<128x256xf32>
    %68 = vector.broadcast %12 : vector<1x256xf32> to vector<128x256xf32>
    %69 = arith.mulf %67, %68 : vector<128x256xf32>
    %70 = vector.extract_strided_slice %14 {offsets = [0, 2], sizes = [128, 1], strides = [1, 1]} : vector<128x9xf32> to vector<128x1xf32>
    %71 = vector.broadcast %70 : vector<128x1xf32> to vector<128x256xf32>
    %72 = arith.mulf %69, %71 : vector<128x256xf32>
    %73 = arith.addf %66, %72 : vector<128x256xf32>
    %c0_15 = arith.constant 0 : index
    %c0_16 = arith.constant 0 : index
    %74 = vector.load %arg6[%c0_15, %c0_16] : memref<128x1xf32, #tpu.memory_space<vmem>>, vector<128x1xf32>
    %75 = vector.broadcast %74 : vector<128x1xf32> to vector<128x256xf32>
    %76 = arith.addf %73, %75 : vector<128x256xf32>
    %cst_17 = arith.constant 0.000000e+00 : f32
    %77 = vector.broadcast %cst_17 : f32 to vector<128x256xf32>
    %78 = arith.maximumf %76, %77 : vector<128x256xf32>
    %c0_18 = arith.constant 0 : index
    %c0_19 = arith.constant 0 : index
    %79 = vector.load %arg7[%c0_18, %c0_19] : memref<128x9xf32, #tpu.memory_space<vmem>>, vector<128x9xf32>
    %c255_i32_20 = arith.constant 255 : i32
    %80 = tpu.dynamic_rotate %78 by %c255_i32_20 dim 1 : vector<128x256xf32>, i32 -> vector<128x256xf32>
    %81 = vector.broadcast %11 : vector<1x256xf32> to vector<128x256xf32>
    %82 = arith.mulf %80, %81 : vector<128x256xf32>
    %c1_i32_21 = arith.constant 1 : i32
    %83 = tpu.dynamic_rotate %78 by %c1_i32_21 dim 1 : vector<128x256xf32>, i32 -> vector<128x256xf32>
    %84 = vector.broadcast %10 : vector<1x256xf32> to vector<128x256xf32>
    %85 = arith.mulf %83, %84 : vector<128x256xf32>
    %86 = vector.extract_strided_slice %79 {offsets = [0, 4], sizes = [128, 1], strides = [1, 1]} : vector<128x9xf32> to vector<128x1xf32>
    %87 = vector.broadcast %86 : vector<128x1xf32> to vector<128x256xf32>
    %88 = arith.mulf %78, %87 : vector<128x256xf32>
    %89 = vector.extract_strided_slice %79 {offsets = [0, 3], sizes = [128, 1], strides = [1, 1]} : vector<128x9xf32> to vector<128x1xf32>
    %90 = vector.broadcast %89 : vector<128x1xf32> to vector<128x256xf32>
    %91 = arith.mulf %85, %90 : vector<128x256xf32>
    %92 = arith.addf %88, %91 : vector<128x256xf32>
    %93 = vector.extract_strided_slice %79 {offsets = [0, 5], sizes = [128, 1], strides = [1, 1]} : vector<128x9xf32> to vector<128x1xf32>
    %94 = vector.broadcast %93 : vector<128x1xf32> to vector<128x256xf32>
    %95 = arith.mulf %82, %94 : vector<128x256xf32>
    %96 = arith.addf %92, %95 : vector<128x256xf32>
    %c240_i32_22 = arith.constant 240 : i32
    %97 = tpu.dynamic_rotate %85 by %c240_i32_22 dim 1 : vector<128x256xf32>, i32 -> vector<128x256xf32>
    %98 = vector.broadcast %13 : vector<1x256xf32> to vector<128x256xf32>
    %99 = arith.mulf %97, %98 : vector<128x256xf32>
    %100 = vector.extract_strided_slice %79 {offsets = [0, 6], sizes = [128, 1], strides = [1, 1]} : vector<128x9xf32> to vector<128x1xf32>
    %101 = vector.broadcast %100 : vector<128x1xf32> to vector<128x256xf32>
    %102 = arith.mulf %99, %101 : vector<128x256xf32>
    %103 = arith.addf %96, %102 : vector<128x256xf32>
    %c240_i32_23 = arith.constant 240 : i32
    %104 = tpu.dynamic_rotate %78 by %c240_i32_23 dim 1 : vector<128x256xf32>, i32 -> vector<128x256xf32>
    %105 = vector.broadcast %13 : vector<1x256xf32> to vector<128x256xf32>
    %106 = arith.mulf %104, %105 : vector<128x256xf32>
    %107 = vector.extract_strided_slice %79 {offsets = [0, 7], sizes = [128, 1], strides = [1, 1]} : vector<128x9xf32> to vector<128x1xf32>
    %108 = vector.broadcast %107 : vector<128x1xf32> to vector<128x256xf32>
    %109 = arith.mulf %106, %108 : vector<128x256xf32>
    %110 = arith.addf %103, %109 : vector<128x256xf32>
    %c240_i32_24 = arith.constant 240 : i32
    %111 = tpu.dynamic_rotate %82 by %c240_i32_24 dim 1 : vector<128x256xf32>, i32 -> vector<128x256xf32>
    %112 = vector.broadcast %13 : vector<1x256xf32> to vector<128x256xf32>
    %113 = arith.mulf %111, %112 : vector<128x256xf32>
    %114 = vector.extract_strided_slice %79 {offsets = [0, 8], sizes = [128, 1], strides = [1, 1]} : vector<128x9xf32> to vector<128x1xf32>
    %115 = vector.broadcast %114 : vector<128x1xf32> to vector<128x256xf32>
    %116 = arith.mulf %113, %115 : vector<128x256xf32>
    %117 = arith.addf %110, %116 : vector<128x256xf32>
    %c16_i32_25 = arith.constant 16 : i32
    %118 = tpu.dynamic_rotate %85 by %c16_i32_25 dim 1 : vector<128x256xf32>, i32 -> vector<128x256xf32>
    %119 = vector.broadcast %12 : vector<1x256xf32> to vector<128x256xf32>
    %120 = arith.mulf %118, %119 : vector<128x256xf32>
    %121 = vector.extract_strided_slice %79 {offsets = [0, 0], sizes = [128, 1], strides = [1, 1]} : vector<128x9xf32> to vector<128x1xf32>
    %122 = vector.broadcast %121 : vector<128x1xf32> to vector<128x256xf32>
    %123 = arith.mulf %120, %122 : vector<128x256xf32>
    %124 = arith.addf %117, %123 : vector<128x256xf32>
    %c16_i32_26 = arith.constant 16 : i32
    %125 = tpu.dynamic_rotate %78 by %c16_i32_26 dim 1 : vector<128x256xf32>, i32 -> vector<128x256xf32>
    %126 = vector.broadcast %12 : vector<1x256xf32> to vector<128x256xf32>
    %127 = arith.mulf %125, %126 : vector<128x256xf32>
    %128 = vector.extract_strided_slice %79 {offsets = [0, 1], sizes = [128, 1], strides = [1, 1]} : vector<128x9xf32> to vector<128x1xf32>
    %129 = vector.broadcast %128 : vector<128x1xf32> to vector<128x256xf32>
    %130 = arith.mulf %127, %129 : vector<128x256xf32>
    %131 = arith.addf %124, %130 : vector<128x256xf32>
    %c16_i32_27 = arith.constant 16 : i32
    %132 = tpu.dynamic_rotate %82 by %c16_i32_27 dim 1 : vector<128x256xf32>, i32 -> vector<128x256xf32>
    %133 = vector.broadcast %12 : vector<1x256xf32> to vector<128x256xf32>
    %134 = arith.mulf %132, %133 : vector<128x256xf32>
    %135 = vector.extract_strided_slice %79 {offsets = [0, 2], sizes = [128, 1], strides = [1, 1]} : vector<128x9xf32> to vector<128x1xf32>
    %136 = vector.broadcast %135 : vector<128x1xf32> to vector<128x256xf32>
    %137 = arith.mulf %134, %136 : vector<128x256xf32>
    %138 = arith.addf %131, %137 : vector<128x256xf32>
    %c0_28 = arith.constant 0 : index
    %c0_29 = arith.constant 0 : index
    %139 = vector.load %arg8[%c0_28, %c0_29] : memref<128x1xf32, #tpu.memory_space<vmem>>, vector<128x1xf32>
    %140 = vector.broadcast %139 : vector<128x1xf32> to vector<128x256xf32>
    %141 = arith.addf %138, %140 : vector<128x256xf32>
    %cst_30 = arith.constant 0.000000e+00 : f32
    %142 = vector.broadcast %cst_30 : f32 to vector<128x256xf32>
    %143 = arith.maximumf %141, %142 : vector<128x256xf32>
    %c0_31 = arith.constant 0 : index
    %c0_32 = arith.constant 0 : index
    %144 = vector.load %arg9[%c0_31, %c0_32] : memref<8x128xbf16, #tpu.memory_space<vmem>>, vector<8x128xbf16>
    %145 = arith.truncf %143 : vector<128x256xf32> to vector<128x256xbf16>
    %cst_33 = arith.constant dense<0.000000e+00> : vector<8x256xf32>
    %146 = tpu.matmul %144, %145, %cst_33 {dimension_numbers = #tpu.dot_dimension_numbers<[1], [0], [0], [1], [0, 0, 1, 1], [], []>} : vector<8x128xbf16>, vector<128x256xbf16>, vector<8x256xf32> -> vector<8x256xf32>
    %c0_34 = arith.constant 0 : index
    %c0_35 = arith.constant 0 : index
    %147 = vector.load %arg10[%c0_34, %c0_35] : memref<8x1xf32, #tpu.memory_space<vmem>>, vector<8x1xf32>
    %148 = vector.broadcast %147 : vector<8x1xf32> to vector<8x256xf32>
    %149 = arith.addf %146, %148 : vector<8x256xf32>
    %c0_36 = arith.constant 0 : index
    %c0_37 = arith.constant 0 : index
    %c0_38 = arith.constant 0 : index
    %150 = vector.load %arg11[%c0_36, %c0_37, %c0_38] : memref<1x8x256xf32, #tpu.memory_space<vmem>>, vector<1x8x256xf32>
    %151 = vector.shape_cast %150 : vector<1x8x256xf32> to vector<8x256xf32>
    %152 = vector.shape_cast %149 : vector<8x256xf32> to vector<1x8x256xf32>
    tpu.vector_store %arg11[%c0_36, %c0_37, %c0_38], %152 {strides = array<i32>} : memref<1x8x256xf32, #tpu.memory_space<vmem>>, vector<1x8x256xf32>,
    return
  }
  func.func @transform_0(%arg0: i32) -> (i32, i32, i32) {
    %c0_i32 = arith.constant 0 : i32
    %c0_i32_0 = arith.constant 0 : i32
    %c0_i32_1 = arith.constant 0 : i32
    return %arg0, %c0_i32, %c0_i32_0 : i32, i32, i32
  }
  func.func @transform_1(%arg0: i32) -> (i32, i32) {
    %c0_i32 = arith.constant 0 : i32
    %c0_i32_0 = arith.constant 0 : i32
    %c0_i32_1 = arith.constant 0 : i32
    return %c0_i32, %c0_i32_0 : i32, i32
  }
  func.func @transform_2(%arg0: i32) -> (i32, i32) {
    %c0_i32 = arith.constant 0 : i32
    %c0_i32_0 = arith.constant 0 : i32
    %c0_i32_1 = arith.constant 0 : i32
    return %c0_i32, %c0_i32_0 : i32, i32
  }
  func.func @transform_3(%arg0: i32) -> (i32, i32) {
    %c0_i32 = arith.constant 0 : i32
    %c0_i32_0 = arith.constant 0 : i32
    %c0_i32_1 = arith.constant 0 : i32
    return %c0_i32, %c0_i32_0 : i32, i32
  }
  func.func @transform_4(%arg0: i32) -> (i32, i32) {
    %c0_i32 = arith.constant 0 : i32
    %c0_i32_0 = arith.constant 0 : i32
    %c0_i32_1 = arith.constant 0 : i32
    return %c0_i32, %c0_i32_0 : i32, i32
  }
  func.func @transform_5(%arg0: i32) -> (i32, i32) {
    %c0_i32 = arith.constant 0 : i32
    %c0_i32_0 = arith.constant 0 : i32
    %c0_i32_1 = arith.constant 0 : i32
    return %c0_i32, %c0_i32_0 : i32, i32
  }
  func.func @transform_6(%arg0: i32) -> (i32, i32) {
    %c0_i32 = arith.constant 0 : i32
    %c0_i32_0 = arith.constant 0 : i32
    %c0_i32_1 = arith.constant 0 : i32
    return %c0_i32, %c0_i32_0 : i32, i32
  }
  func.func @transform_7(%arg0: i32) -> (i32, i32) {
    %c0_i32 = arith.constant 0 : i32
    %c0_i32_0 = arith.constant 0 : i32
    %c0_i32_1 = arith.constant 0 : i32
    return %c0_i32, %c0_i32_0 : i32, i32
  }
  func.func @transform_8(%arg0: i32) -> (i32, i32) {
    %c0_i32 = arith.constant 0 : i32
    %c0_i32_0 = arith.constant 0 : i32
    %c0_i32_1 = arith.constant 0 : i32
    return %c0_i32, %c0_i32_0 : i32, i32
  }
  func.func @transform_9(%arg0: i32) -> (i32, i32) {
    %c0_i32 = arith.constant 0 : i32
    %c0_i32_0 = arith.constant 0 : i32
    %c0_i32_1 = arith.constant 0 : i32
    return %c0_i32, %c0_i32_0 : i32, i32
  }
  func.func @transform_10(%arg0: i32) -> (i32, i32, i32) {
    %c0_i32 = arith.constant 0 : i32
    %c0_i32_0 = arith.constant 0 : i32
    %c0_i32_1 = arith.constant 0 : i32
    return %arg0, %c0_i32, %c0_i32_0 : i32, i32, i32
  }
}

</mosaic_0001>

<llo_original>
// kernel: run_cascade.2
$region0: #{run_cascade.2}
  #allocation0 [shape = 'u32[]', space=smem, size = 0x4, offset = 0x4, fixed_abs, tag = 'smem constant byte address 0x4 - core index']
  #allocation1 [shape = 'u32[72,128]{1,0:T(1,128)}', space=vmem, size = 0x9000, scoped, tag = 'internal scratch']
  %s0 = inlined_call_operand.vmem [shape: bf16[2,8,256], index: 0, kind: input, shape index: {}]
  %s1 = inlined_call_operand.vmem [shape: f32[8,256], index: 1, kind: input, shape index: {}]
  %s2 = inlined_call_operand.vmem [shape: bf16[128,8], index: 2, kind: input, shape index: {}]
  %s3 = inlined_call_operand.vmem [shape: f32[128,1], index: 3, kind: input, shape index: {}]
  %s4 = inlined_call_operand.vmem [shape: f32[128,9], index: 4, kind: input, shape index: {}]
  %s5 = inlined_call_operand.vmem [shape: f32[128,1], index: 5, kind: input, shape index: {}]
  %s6 = inlined_call_operand.vmem [shape: f32[128,9], index: 6, kind: input, shape index: {}]
  %s7 = inlined_call_operand.vmem [shape: f32[128,1], index: 7, kind: input, shape index: {}]
  %s8 = inlined_call_operand.vmem [shape: bf16[8,128], index: 8, kind: input, shape index: {}]
  %s9 = inlined_call_operand.vmem [shape: f32[8,1], index: 9, kind: input, shape index: {}]
  %s10 = inlined_call_operand.vmem [shape: f32[2,8,256], index: 10, kind: output, shape index: {}]
  %s11 = sld [smem:[#allocation0]]
  $region73: #{run_cascade.2} parent=0
    _
  %s13 = ssub.s32 1, %s11
  %s14 = scalar_select 0, %s13, %s11
  loop: start=0, step=1, limit=4
  $region2: #{run_cascade.2} parent=0 // loop_pre_header
    _
  $region3: #{run_cascade.2} parent=0 // loop_header
    %s16 = sphi 0, %s20
    %p17 = scmp.ge.s32.totalorder %s16, 4
    %s26 = sphi 0, %s28
    %s29 = sphi 0, %s26
    %s30 = sphi 0, %s29
    %s46 = sphi 0, %s30
    %s50 = sphi 0, %s50
    %s52 = sphi 0, %s50
    %s53 = sphi 0, %s52
    %s67 = sphi 0, %s53
    %s71 = sphi 0, %s71
    %s73 = sphi 0, %s71
    %s74 = sphi 0, %s73
    %s88 = sphi 0, %s74
    %s92 = sphi 0, %s92
    %s94 = sphi 0, %s92
    %s95 = sphi 0, %s94
    %s109 = sphi 0, %s95
    %s113 = sphi 0, %s113
    %s115 = sphi 0, %s113
    %s116 = sphi 0, %s115
    %s130 = sphi 0, %s116
    %s134 = sphi 0, %s134
    %s136 = sphi 0, %s134
    %s137 = sphi 0, %s136
    %s151 = sphi 0, %s137
    %s155 = sphi 0, %s155
    %s157 = sphi 0, %s155
    %s158 = sphi 0, %s157
    %s172 = sphi 0, %s158
    %s176 = sphi 0, %s176
    %s178 = sphi 0, %s176
    %s179 = sphi 0, %s178
    %s193 = sphi 0, %s179
    %s197 = sphi 0, %s197
    %s199 = sphi 0, %s197
    %s200 = sphi 0, %s199
    %s214 = sphi 0, %s200
    %s218 = sphi 0, %s218
    %s220 = sphi 0, %s218
    %s221 = sphi 0, %s220
    %s235 = sphi 0, %s221
    %s241 = sphi 0, %s243
    %s244 = sphi 0, %s241
    %s245 = sphi 0, %s244
    %s261 = sphi 0, %s245
  $region4: #{run_cascade.2} parent=0 // loop_header_branch
    %19 = sbr.rel (%p17) target = $region8
  $region5: #{run_cascade.2} parent=0 // loop_body
    %s21 = ssub.s32 %s16, 1
    %s22 = ssub.s32 %s16, 2
    %s23 = sadd.s32 %s16, 1
    %s24 = ssub.s32 %s16, %s23
    %p25 = scmp.eq.s32.totalorder %s24, 0
    %s27 = sadd.s32 %s26, 1
    %s28 = scalar_select %p25, %s26, %s27
    %p31 = pneg %p25
    %p32 = scmp.eq.s32.totalorder %s16, 1
    %p33 = por %p31, %p32
    %p34 = scmp.ne.s32.totalorder %s26, %s29
    %p35 = scmp.eq.s32.totalorder %s16, 0
    %p36 = por %p34, %p35
    %p37 = scmp.ne.s32.totalorder %s26, %s29
    %p38 = scmp.eq.s32.totalorder %s21, 1
    %p39 = por %p37, %p38
    %p40 = scmp.ne.s32.totalorder %s29, %s30
    %p41 = scmp.eq.s32.totalorder %s21, 0
    %p42 = por %p40, %p41
    %p43 = scmp.ne.s32.totalorder %s29, %s30
    %p44 = scmp.eq.s32.totalorder %s22, 1
    %p45 = por %p43, %p44
    %p47 = scmp.ne.s32.totalorder %s30, %s46
    %p48 = scmp.eq.s32.totalorder %s22, 0
    %p49 = por %p47, %p48
    %s51 = sadd.s32 %s50, 1
    %p54 = scmp.eq.s32.totalorder %s16, 1
    %p55 = scmp.ne.s32.totalorder %s50, %s52
    %p56 = scmp.eq.s32.totalorder %s16, 0
    %p57 = por %p55, %p56
    %p58 = scmp.ne.s32.totalorder %s50, %s52
    %p59 = scmp.eq.s32.totalorder %s21, 1
    %p60 = por %p58, %p59
    %p61 = scmp.ne.s32.totalorder %s52, %s53
    %p62 = scmp.eq.s32.totalorder %s21, 0
    %p63 = por %p61, %p62
    %p64 = scmp.ne.s32.totalorder %s52, %s53
    %p65 = scmp.eq.s32.totalorder %s22, 1
    %p66 = por %p64, %p65
    %p68 = scmp.ne.s32.totalorder %s53, %s67
    %p69 = scmp.eq.s32.totalorder %s22, 0
    %p70 = por %p68, %p69
    %s72 = sadd.s32 %s71, 1
    %p75 = scmp.eq.s32.totalorder %s16, 1
    %p76 = scmp.ne.s32.totalorder %s71, %s73
    %p77 = scmp.eq.s32.totalorder %s16, 0
    %p78 = por %p76, %p77
    %p79 = scmp.ne.s32.totalorder %s71, %s73
    %p80 = scmp.eq.s32.totalorder %s21, 1
    %p81 = por %p79, %p80
    %p82 = scmp.ne.s32.totalorder %s73, %s74
    %p83 = scmp.eq.s32.totalorder %s21, 0
    %p84 = por %p82, %p83
    %p85 = scmp.ne.s32.totalorder %s73, %s74
    %p86 = scmp.eq.s32.totalorder %s22, 1
    %p87 = por %p85, %p86
    %p89 = scmp.ne.s32.totalorder %s74, %s88
    %p90 = scmp.eq.s32.totalorder %s22, 0
    %p91 = por %p89, %p90
    %s93 = sadd.s32 %s92, 1
    %p96 = scmp.eq.s32.totalorder %s16, 1
    %p97 = scmp.ne.s32.totalorder %s92, %s94
    %p98 = scmp.eq.s32.totalorder %s16, 0
    %p99 = por %p97, %p98
    %p100 = scmp.ne.s32.totalorder %s92, %s94
    %p101 = scmp.eq.s32.totalorder %s21, 1
    %p102 = por %p100, %p101
    %p103 = scmp.ne.s32.totalorder %s94, %s95
    %p104 = scmp.eq.s32.totalorder %s21, 0
    %p105 = por %p103, %p104
    %p106 = scmp.ne.s32.totalorder %s94, %s95
    %p107 = scmp.eq.s32.totalorder %s22, 1
    %p108 = por %p106, %p107
    %p110 = scmp.ne.s32.totalorder %s95, %s109
    %p111 = scmp.eq.s32.totalorder %s22, 0
    %p112 = por %p110, %p111
    %s114 = sadd.s32 %s113, 1
    %p117 = scmp.eq.s32.totalorder %s16, 1
    %p118 = scmp.ne.s32.totalorder %s113, %s115
    %p119 = scmp.eq.s32.totalorder %s16, 0
    %p120 = por %p118, %p119
    %p121 = scmp.ne.s32.totalorder %s113, %s115
    %p122 = scmp.eq.s32.totalorder %s21, 1
    %p123 = por %p121, %p122
    %p124 = scmp.ne.s32.totalorder %s115, %s116
    %p125 = scmp.eq.s32.totalorder %s21, 0
    %p126 = por %p124, %p125
    %p127 = scmp.ne.s32.totalorder %s115, %s116
    %p128 = scmp.eq.s32.totalorder %s22, 1
    %p129 = por %p127, %p128
    %p131 = scmp.ne.s32.totalorder %s116, %s130
    %p132 = scmp.eq.s32.totalorder %s22, 0
    %p133 = por %p131, %p132
    %s135 = sadd.s32 %s134, 1
    %p138 = scmp.eq.s32.totalorder %s16, 1
    %p139 = scmp.ne.s32.totalorder %s134, %s136
    %p140 = scmp.eq.s32.totalorder %s16, 0
    %p141 = por %p139, %p140
    %p142 = scmp.ne.s32.totalorder %s134, %s136
    %p143 = scmp.eq.s32.totalorder %s21, 1
    %p144 = por %p142, %p143
    %p145 = scmp.ne.s32.totalorder %s136, %s137
    %p146 = scmp.eq.s32.totalorder %s21, 0
    %p147 = por %p145, %p146
    %p148 = scmp.ne.s32.totalorder %s136, %s137
    %p149 = scmp.eq.s32.totalorder %s22, 1
    %p150 = por %p148, %p149
    %p152 = scmp.ne.s32.totalorder %s137, %s151
    %p153 = scmp.eq.s32.totalorder %s22, 0
    %p154 = por %p152, %p153
    %s156 = sadd.s32 %s155, 1
    %p159 = scmp.eq.s32.totalorder %s16, 1
    %p160 = scmp.ne.s32.totalorder %s155, %s157
    %p161 = scmp.eq.s32.totalorder %s16, 0
    %p162 = por %p160, %p161
    %p163 = scmp.ne.s32.totalorder %s155, %s157
    %p164 = scmp.eq.s32.totalorder %s21, 1
    %p165 = por %p163, %p164
    %p166 = scmp.ne.s32.totalorder %s157, %s158
    %p167 = scmp.eq.s32.totalorder %s21, 0
    %p168 = por %p166, %p167
    %p169 = scmp.ne.s32.totalorder %s157, %s158
    %p170 = scmp.eq.s32.totalorder %s22, 1
    %p171 = por %p169, %p170
    %p173 = scmp.ne.s32.totalorder %s158, %s172
    %p174 = scmp.eq.s32.totalorder %s22, 0
    %p175 = por %p173, %p174
    %s177 = sadd.s32 %s176, 1
    %p180 = scmp.eq.s32.totalorder %s16, 1
    %p181 = scmp.ne.s32.totalorder %s176, %s178
    %p182 = scmp.eq.s32.totalorder %s16, 0
    %p183 = por %p181, %p182
    %p184 = scmp.ne.s32.totalorder %s176, %s178
    %p185 = scmp.eq.s32.totalorder %s21, 1
    %p186 = por %p184, %p185
    %p187 = scmp.ne.s32.totalorder %s178, %s179
    %p188 = scmp.eq.s32.totalorder %s21, 0
    %p189 = por %p187, %p188
    %p190 = scmp.ne.s32.totalorder %s178, %s179
    %p191 = scmp.eq.s32.totalorder %s22, 1
    %p192 = por %p190, %p191
    %p194 = scmp.ne.s32.totalorder %s179, %s193
    %p195 = scmp.eq.s32.totalorder %s22, 0
    %p196 = por %p194, %p195
    %s198 = sadd.s32 %s197, 1
    %p201 = scmp.eq.s32.totalorder %s16, 1
    %p202 = scmp.ne.s32.totalorder %s197, %s199
    %p203 = scmp.eq.s32.totalorder %s16, 0
    %p204 = por %p202, %p203
    %p205 = scmp.ne.s32.totalorder %s197, %s199
    %p206 = scmp.eq.s32.totalorder %s21, 1
    %p207 = por %p205, %p206
    %p208 = scmp.ne.s32.totalorder %s199, %s200
    %p209 = scmp.eq.s32.totalorder %s21, 0
    %p210 = por %p208, %p209
    %p211 = scmp.ne.s32.totalorder %s199, %s200
    %p212 = scmp.eq.s32.totalorder %s22, 1
    %p213 = por %p211, %p212
    %p215 = scmp.ne.s32.totalorder %s200, %s214
    %p216 = scmp.eq.s32.totalorder %s22, 0
    %p217 = por %p215, %p216
    %s219 = sadd.s32 %s218, 1
    %p222 = scmp.eq.s32.totalorder %s16, 1
    %p223 = scmp.ne.s32.totalorder %s218, %s220
    %p224 = scmp.eq.s32.totalorder %s16, 0
    %p225 = por %p223, %p224
    %p226 = scmp.ne.s32.totalorder %s218, %s220
    %p227 = scmp.eq.s32.totalorder %s21, 1
    %p228 = por %p226, %p227
    %p229 = scmp.ne.s32.totalorder %s220, %s221
    %p230 = scmp.eq.s32.totalorder %s21, 0
    %p231 = por %p229, %p230
    %p232 = scmp.ne.s32.totalorder %s220, %s221
    %p233 = scmp.eq.s32.totalorder %s22, 1
    %p234 = por %p232, %p233
    %p236 = scmp.ne.s32.totalorder %s221, %s235
    %p237 = scmp.eq.s32.totalorder %s22, 0
    %p238 = por %p236, %p237
    %s239 = ssub.s32 %s16, %s23
    %p240 = scmp.eq.s32.totalorder %s239, 0
    %s242 = sadd.s32 %s241, 1
    %s243 = scalar_select %p240, %s241, %s242
    %p246 = pneg %p240
    %p247 = scmp.eq.s32.totalorder %s16, 1
    %p248 = por %p246, %p247
    %p249 = scmp.ne.s32.totalorder %s241, %s244
    %p250 = scmp.eq.s32.totalorder %s16, 0
    %p251 = por %p249, %p250
    %p252 = scmp.ne.s32.totalorder %s241, %s244
    %p253 = scmp.eq.s32.totalorder %s21, 1
    %p254 = por %p252, %p253
    %p255 = scmp.ne.s32.totalorder %s244, %s245
    %p256 = scmp.eq.s32.totalorder %s21, 0
    %p257 = por %p255, %p256
    %p258 = scmp.ne.s32.totalorder %s244, %s245
    %p259 = scmp.eq.s32.totalorder %s22, 1
    %p260 = por %p258, %p259
    %p262 = scmp.ne.s32.totalorder %s245, %s261
    %p263 = scmp.eq.s32.totalorder %s22, 0
    %p264 = por %p262, %p263
    %p265 = scmp.le.s32.totalorder 1, %s16
    %p266 = scmp.lt.s32.totalorder %s16, 3
    %p267 = pnand %p265, %p266
    %p268 = pneg %p267
    // Predicated region
    $region9: #{run_cascade.2} parent=5 // pred_check
      _
    $region10: #{run_cascade.2} parent=5 // pred_check_branch
      %270 = sbr.rel (%p267) target = $region12
    $region11: #{run_cascade.2} parent=5 // pred_region
      %s271 = ssub.s32 %s16, 1
      // Predicated region
      $region13: #{run_cascade.2} parent=11 // pred_check
        %p272 = pneg %p63
      $region14: #{run_cascade.2} parent=11 // pred_check_branch
        %274 = sbr.rel (%p272) target = $region16
      $region15: #{run_cascade.2} parent=11 // pred_region
        _
      $region16: #{run_cascade.2} parent=11 // pred_fallthru
        _
      // Predicated region
      $region17: #{run_cascade.2} parent=11 // pred_check
        %p275 = pneg %p84
      $region18: #{run_cascade.2} parent=11 // pred_check_branch
        %277 = sbr.rel (%p275) target = $region20
      $region19: #{run_cascade.2} parent=11 // pred_region
        _
      $region20: #{run_cascade.2} parent=11 // pred_fallthru
        _
      // Predicated region
      $region21: #{run_cascade.2} parent=11 // pred_check
        %p278 = pneg %p105
      $region22: #{run_cascade.2} parent=11 // pred_check_branch
        %280 = sbr.rel (%p278) target = $region24
      $region23: #{run_cascade.2} parent=11 // pred_region
        _
      $region24: #{run_cascade.2} parent=11 // pred_fallthru
        _
      // Predicated region
      $region25: #{run_cascade.2} parent=11 // pred_check
        %p281 = pneg %p126
      $region26: #{run_cascade.2} parent=11 // pred_check_branch
        %283 = sbr.rel (%p281) target = $region28
      $region27: #{run_cascade.2} parent=11 // pred_region
        _
      $region28: #{run_cascade.2} parent=11 // pred_fallthru
        _
      // Predicated region
      $region29: #{run_cascade.2} parent=11 // pred_check
        %p284 = pneg %p147
      $region30: #{run_cascade.2} parent=11 // pred_check_branch
        %286 = sbr.rel (%p284) target = $region32
      $region31: #{run_cascade.2} parent=11 // pred_region
        _
      $region32: #{run_cascade.2} parent=11 // pred_fallthru
        _
      // Predicated region
      $region33: #{run_cascade.2} parent=11 // pred_check
        %p287 = pneg %p168
      $region34: #{run_cascade.2} parent=11 // pred_check_branch
        %289 = sbr.rel (%p287) target = $region36
      $region35: #{run_cascade.2} parent=11 // pred_region
        _
      $region36: #{run_cascade.2} parent=11 // pred_fallthru
        _
      // Predicated region
      $region37: #{run_cascade.2} parent=11 // pred_check
        %p290 = pneg %p189
      $region38: #{run_cascade.2} parent=11 // pred_check_branch
        %292 = sbr.rel (%p290) target = $region40
      $region39: #{run_cascade.2} parent=11 // pred_region
        _
      $region40: #{run_cascade.2} parent=11 // pred_fallthru
        _
      // Predicated region
      $region41: #{run_cascade.2} parent=11 // pred_check
        %p293 = pneg %p210
      $region42: #{run_cascade.2} parent=11 // pred_check_branch
        %295 = sbr.rel (%p293) target = $region44
      $region43: #{run_cascade.2} parent=11 // pred_region
        _
      $region44: #{run_cascade.2} parent=11 // pred_fallthru
        _
      // Predicated region
      $region45: #{run_cascade.2} parent=11 // pred_check
        %p296 = pneg %p231
      $region46: #{run_cascade.2} parent=11 // pred_check_branch
        %298 = sbr.rel (%p296) target = $region48
      $region47: #{run_cascade.2} parent=11 // pred_region
        _
      $region48: #{run_cascade.2} parent=11 // pred_fallthru
        _
    $region12: #{run_cascade.2} parent=5 // pred_fallthru
      _
    %p299 = scmp.lt.s32.totalorder %s16, 2
    // Predicated region
    $region49: #{run_cascade.2} parent=5 // pred_check
      %p300 = pneg %p299
    $region50: #{run_cascade.2} parent=5 // pred_check_branch
      %302 = sbr.rel (%p300) target = $region52
    $region51: #{run_cascade.2} parent=5 // pred_region
      // Predicated region
      $region53: #{run_cascade.2} parent=51 // pred_check
        %p303 = pneg %p36
      $region54: #{run_cascade.2} parent=51 // pred_check_branch
        %305 = sbr.rel (%p303) target = $region56
      $region55: #{run_cascade.2} parent=51 // pred_region
        %p306 = scmp.lt.s32.totalorder %s16, 1
        %s307 = scalar_select %p306, %s16, 1
        %s308 = smul.addr %s307, 2
        %s309 = smul.addr %s308, 4
        %s310 = scalar_lea.vmem %s0, %s309
      $region56: #{run_cascade.2} parent=51 // pred_fallthru
        _
    $region52: #{run_cascade.2} parent=5 // pred_fallthru
      _
    %p311 = scmp.le.s32.totalorder 1, %s16
    %p312 = scmp.lt.s32.totalorder %s16, 3
    %p313 = pnand %p311, %p312
    %p314 = pneg %p313
    // Predicated region
    $region57: #{run_cascade.2} parent=5 // pred_check
      _
    $region58: #{run_cascade.2} parent=5 // pred_check_branch
      %316 = sbr.rel (%p313) target = $region60
    $region59: #{run_cascade.2} parent=5 // pred_region
      %s317 = ssub.s32 %s16, 1
      %p318 = scmp.lt.s32.totalorder %s21, 1
      %s319 = scalar_select %p318, %s21, 1
      %s320 = smul.addr %s319, 2
      %s321 = smul.addr %s320, 4
      %s322 = scalar_lea.vmem %s0, %s321
      %p323 = pneg %p42
      %p324 = pneg %p39
      %p325 = pneg %p63
      %p326 = pneg %p60
      %p327 = pneg %p84
      %p328 = pneg %p81
      %p329 = pneg %p105
      %p330 = pneg %p102
      %p331 = pneg %p126
      %p332 = pneg %p123
      %p333 = pneg %p147
      %p334 = pneg %p144
      %p335 = pneg %p168
      %p336 = pneg %p165
      %p337 = pneg %p189
      %p338 = pneg %p186
      %p339 = pneg %p210
      %p340 = pneg %p207
      %p341 = pneg %p231
      %p342 = pneg %p228
      %p343 = pneg %p257
      %p344 = pneg %p254
      %p345 = scmp.lt.s32.totalorder %s21, 1
      %s346 = scalar_select %p345, %s21, 1
      %s347 = smul.addr %s346, 2
      %s348 = smul.addr %s347, 8
      %s349 = scalar_lea.vmem %s10, %s348
      %p350 = scmp.lt.s32.totalorder %s21, 1
      %s351 = scalar_select %p350, %s21, 1
      %s352 = smul.addr %s351, 2
      %s353 = smul.addr %s352, 4
      %s354 = scalar_lea.vmem %s0, %s353
      %p355 = scmp.lt.s32.totalorder %s21, 1
      %s356 = scalar_select %p355, %s21, 1
      %s357 = smul.addr %s356, 2
      %s358 = smul.addr %s357, 8
      %s359 = scalar_lea.vmem %s10, %s358
      %v361 = vld [vmem:[%s354] sm:$0xff]
      %v362 = vld [vmem:[%s2] sm:$0xf]
      %v363 = vld [vmem:[%s2 + $0x4] sm:$0xf]
      %v364 = vld [vmem:[%s2 + $0x8] sm:$0xf]
      %v365 = vld [vmem:[%s2 + $0xc] sm:$0xf]
      %v366 = vld [vmem:[%s2 + $0x10] sm:$0xf]
      %v367 = vld [vmem:[%s2 + $0x14] sm:$0xf]
      %v368 = vld [vmem:[%s2 + $0x18] sm:$0xf]
      %v369 = vld [vmem:[%s2 + $0x1c] sm:$0xf]
      %v370 = vld [vmem:[%s2 + $0x20] sm:$0xf]
      %v371 = vld [vmem:[%s2 + $0x24] sm:$0xf]
      %v372 = vld [vmem:[%s2 + $0x28] sm:$0xf]
      %v373 = vld [vmem:[%s2 + $0x2c] sm:$0xf]
      %v374 = vld [vmem:[%s2 + $0x30] sm:$0xf]
      %v375 = vld [vmem:[%s2 + $0x34] sm:$0xf]
      %v376 = vld [vmem:[%s2 + $0x38] sm:$0xf]
      %v377 = vld [vmem:[%s2 + $0x3c] sm:$0xf]
      %v378 = vld [vmem:[%s3] sm:$0xff]
      %v379 = vld [vmem:[%s3 + $0x8] sm:$0xff]
      %v380 = vld [vmem:[%s3 + $0x10] sm:$0xff]
      %v381 = vld [vmem:[%s3 + $0x18] sm:$0xff]
      %v382 = vld [vmem:[%s3 + $0x20] sm:$0xff]
      %v383 = vld [vmem:[%s3 + $0x28] sm:$0xff]
      %v384 = vld [vmem:[%s3 + $0x30] sm:$0xff]
      %v385 = vld [vmem:[%s3 + $0x38] sm:$0xff]
      %v386 = vld [vmem:[%s3 + $0x40] sm:$0xff]
      %v387 = vld [vmem:[%s3 + $0x48] sm:$0xff]
      %v388 = vld [vmem:[%s3 + $0x50] sm:$0xff]
      %v389 = vld [vmem:[%s3 + $0x58] sm:$0xff]
      %v390 = vld [vmem:[%s3 + $0x60] sm:$0xff]
      %v391 = vld [vmem:[%s3 + $0x68] sm:$0xff]
      %v392 = vld [vmem:[%s3 + $0x70] sm:$0xff]
      %v393 = vld [vmem:[%s3 + $0x78] sm:$0xff]
      %395 = vset.pattern.permute.xlu0 0
      %396 = vperm.xlu0 %395, %v378
      %v397 = vpop.permute.xlu0 %396
      %400 = vset.pattern.permute.xlu0 0
      %401 = vperm.xlu0 %400, %v379
      %v402 = vpop.permute.xlu0 %401
      %405 = vset.pattern.permute.xlu0 0
      %406 = vperm.xlu0 %405, %v380
      %v407 = vpop.permute.xlu0 %406
      %410 = vset.pattern.permute.xlu0 0
      %411 = vperm.xlu0 %410, %v381
      %v412 = vpop.permute.xlu0 %411
      %415 = vset.pattern.permute.xlu0 0
      %416 = vperm.xlu0 %415, %v382
      %v417 = vpop.permute.xlu0 %416
      %420 = vset.pattern.permute.xlu0 0
      %421 = vperm.xlu0 %420, %v383
      %v422 = vpop.permute.xlu0 %421
      %425 = vset.pattern.permute.xlu0 0
      %426 = vperm.xlu0 %425, %v384
      %v427 = vpop.permute.xlu0 %426
      %430 = vset.pattern.permute.xlu0 0
      %431 = vperm.xlu0 %430, %v385
      %v432 = vpop.permute.xlu0 %431
      %435 = vset.pattern.permute.xlu0 0
      %436 = vperm.xlu0 %435, %v386
      %v437 = vpop.permute.xlu0 %436
      %440 = vset.pattern.permute.xlu0 0
      %441 = vperm.xlu0 %440, %v387
      %v442 = vpop.permute.xlu0 %441
      %445 = vset.pattern.permute.xlu0 0
      %446 = vperm.xlu0 %445, %v388
      %v447 = vpop.permute.xlu0 %446
      %450 = vset.pattern.permute.xlu0 0
      %451 = vperm.xlu0 %450, %v389
      %v452 = vpop.permute.xlu0 %451
      %455 = vset.pattern.permute.xlu0 0
      %456 = vperm.xlu0 %455, %v390
      %v457 = vpop.permute.xlu0 %456
      %460 = vset.pattern.permute.xlu0 0
      %461 = vperm.xlu0 %460, %v391
      %v462 = vpop.permute.xlu0 %461
      %465 = vset.pattern.permute.xlu0 0
      %466 = vperm.xlu0 %465, %v392
      %v467 = vpop.permute.xlu0 %466
      %470 = vset.pattern.permute.xlu0 0
      %471 = vperm.xlu0 %470, %v393
      %v472 = vpop.permute.xlu0 %471
      %v490 = vunpack.c.l.b16 %v362
      %v491 = vunpack.c.l.b16 %v363
      %v492 = vunpack.c.l.b16 %v364
      %v493 = vunpack.c.l.b16 %v365
      %v494 = vunpack.c.l.b16 %v366
      %v495 = vunpack.c.l.b16 %v367
      %v496 = vunpack.c.l.b16 %v368
      %v497 = vunpack.c.l.b16 %v369
      %v498 = vunpack.c.l.b16 %v370
      %v499 = vunpack.c.l.b16 %v371
      %v500 = vunpack.c.l.b16 %v372
      %v501 = vunpack.c.l.b16 %v373
      %v502 = vunpack.c.l.b16 %v374
      %v503 = vunpack.c.l.b16 %v375
      %v504 = vunpack.c.l.b16 %v376
      %v505 = vunpack.c.l.b16 %v377
      %v506 = vpack.c.b16 %v491, %v490
      %v507 = vpack.c.b16 %v493, %v492
      %v508 = vpack.c.b16 %v495, %v494
      %v509 = vpack.c.b16 %v497, %v496
      %v510 = vpack.c.b16 %v499, %v498
      %v511 = vpack.c.b16 %v501, %v500
      %v512 = vpack.c.b16 %v503, %v502
      %v513 = vpack.c.b16 %v505, %v504
      %v515 = vunpack.c.l.b16 %v361
      %v516 = vunpack.c.h.b16 %v361
      %v517 = vpack.c.b16 %v515, %v515
      %v518 = vpack.c.b16 %v516, %v516
      %vm519 = vcmask 64512
      %v521 = vsel %vm519, %v506, 0
      %v524 = vsel %vm519, %v507, 0
      %v527 = vsel %vm519, %v508, 0
      %v530 = vsel %vm519, %v509, 0
      %v533 = vsel %vm519, %v510, 0
      %v536 = vsel %vm519, %v511, 0
      %v539 = vsel %vm519, %v512, 0
      %v542 = vsel %vm519, %v513, 0
      %vm544 = vcmask 1043456
      %v546 = vsel %vm544, %v517, 0
      %v549 = vsel %vm544, %v518, 0
      %551 = vmatpush.bf16.msra.mxu0 0
      %552 = vmatpush.bf16.msra.mxu0 0
      %553 = vmatpush.bf16.msra.mxu0 0
      %554 = vmatpush.bf16.msra.mxu0 0
      %555 = vmatpush.bf16.msra.mxu0 0
      %556 = vmatpush.bf16.msra.mxu0 0
      %557 = vmatpush.bf16.msra.mxu0 0
      %558 = vmatpush.bf16.msra.mxu0 %v546
      %559 = vmatmul.bf16.gmra.mxu0 %v521
      %v560 = vpop.f32.mrf.mxu0
      %v561 = vadd.f32 %v397, %v560
      %v562 = vpop.f32.mrf.mxu0
      %v563 = vadd.f32 %v402, %v562
      %564 = vmatmul.bf16.gmra.mxu0 %v524
      %v565 = vpop.f32.mrf.mxu0
      %v566 = vadd.f32 %v407, %v565
      %v567 = vpop.f32.mrf.mxu0
      %v568 = vadd.f32 %v412, %v567
      %569 = vmatmul.bf16.gmra.mxu0 %v527
      %v570 = vpop.f32.mrf.mxu0
      %v571 = vadd.f32 %v417, %v570
      %v572 = vpop.f32.mrf.mxu0
      %v573 = vadd.f32 %v422, %v572
      %574 = vmatmul.bf16.gmra.mxu0 %v530
      %v575 = vpop.f32.mrf.mxu0
      %v576 = vadd.f32 %v427, %v575
      %v577 = vpop.f32.mrf.mxu0
      %v578 = vadd.f32 %v432, %v577
      %579 = vmatmul.bf16.gmra.mxu0 %v533
      %v580 = vpop.f32.mrf.mxu0
      %v581 = vadd.f32 %v437, %v580
      %v582 = vpop.f32.mrf.mxu0
      %v583 = vadd.f32 %v442, %v582
      %584 = vmatmul.bf16.gmra.mxu0 %v536
      %v585 = vpop.f32.mrf.mxu0
      %v586 = vadd.f32 %v447, %v585
      %v587 = vpop.f32.mrf.mxu0
      %v588 = vadd.f32 %v452, %v587
      %589 = vmatmul.bf16.gmra.mxu0 %v539
      %v590 = vpop.f32.mrf.mxu0
      %v591 = vadd.f32 %v457, %v590
      %v592 = vpop.f32.mrf.mxu0
      %v593 = vadd.f32 %v462, %v592
      %594 = vmatmul.bf16.gmra.mxu0 %v542
      %v595 = vpop.f32.mrf.mxu0
      %v596 = vadd.f32 %v467, %v595
      %v597 = vpop.f32.mrf.mxu0
      %v598 = vadd.f32 %v472, %v597
      %599 = vdwg.mxu0
      %600 = vmatpush.bf16.msra.mxu0 0
      %601 = vmatpush.bf16.msra.mxu0 0
      %602 = vmatpush.bf16.msra.mxu0 0
      %603 = vmatpush.bf16.msra.mxu0 0
      %604 = vmatpush.bf16.msra.mxu0 0
      %605 = vmatpush.bf16.msra.mxu0 0
      %606 = vmatpush.bf16.msra.mxu0 0
      %607 = vmatpush.bf16.msra.mxu0 %v549
      %608 = vmatmul.bf16.gmra.mxu0 %v521
      %v609 = vpop.f32.mrf.mxu0
      %v610 = vadd.f32 %v397, %v609
      %v611 = vpop.f32.mrf.mxu0
      %v612 = vadd.f32 %v402, %v611
      %613 = vmatmul.bf16.gmra.mxu0 %v524
      %v614 = vpop.f32.mrf.mxu0
      %v615 = vadd.f32 %v407, %v614
      %v616 = vpop.f32.mrf.mxu0
      %v617 = vadd.f32 %v412, %v616
      %618 = vmatmul.bf16.gmra.mxu0 %v527
      %v619 = vpop.f32.mrf.mxu0
      %v620 = vadd.f32 %v417, %v619
      %v621 = vpop.f32.mrf.mxu0
      %v622 = vadd.f32 %v422, %v621
      %623 = vmatmul.bf16.gmra.mxu0 %v530
      %v624 = vpop.f32.mrf.mxu0
      %v625 = vadd.f32 %v427, %v624
      %v626 = vpop.f32.mrf.mxu0
      %v627 = vadd.f32 %v432, %v626
      %628 = vmatmul.bf16.gmra.mxu0 %v533
      %v629 = vpop.f32.mrf.mxu0
      %v630 = vadd.f32 %v437, %v629
      %v631 = vpop.f32.mrf.mxu0
      %v632 = vadd.f32 %v442, %v631
      %633 = vmatmul.bf16.gmra.mxu0 %v536
      %v634 = vpop.f32.mrf.mxu0
      %v635 = vadd.f32 %v447, %v634
      %v636 = vpop.f32.mrf.mxu0
      %v637 = vadd.f32 %v452, %v636
      %638 = vmatmul.bf16.gmra.mxu0 %v539
      %v639 = vpop.f32.mrf.mxu0
      %v640 = vadd.f32 %v457, %v639
      %v641 = vpop.f32.mrf.mxu0
      %v642 = vadd.f32 %v462, %v641
      %643 = vmatmul.bf16.gmra.mxu0 %v542
      %v644 = vpop.f32.mrf.mxu0
      %v645 = vadd.f32 %v467, %v644
      %v646 = vpop.f32.mrf.mxu0
      %v647 = vadd.f32 %v472, %v646
      %648 = vdwg.mxu0
      %v649 = vmax.f32 %v561, 0.0
      %v650 = vmax.f32 %v610, 0.0
      %v651 = vmax.f32 %v563, 0.0
      %v652 = vmax.f32 %v612, 0.0
      %v653 = vmax.f32 %v566, 0.0
      %v654 = vmax.f32 %v615, 0.0
      %v655 = vmax.f32 %v568, 0.0
      %v656 = vmax.f32 %v617, 0.0
      %v657 = vmax.f32 %v571, 0.0
      %v658 = vmax.f32 %v620, 0.0
      %v659 = vmax.f32 %v573, 0.0
      %v660 = vmax.f32 %v622, 0.0
      %v661 = vmax.f32 %v576, 0.0
      %v662 = vmax.f32 %v625, 0.0
      %v663 = vmax.f32 %v578, 0.0
      %v664 = vmax.f32 %v627, 0.0
      %v665 = vmax.f32 %v581, 0.0
      %v666 = vmax.f32 %v630, 0.0
      %v667 = vmax.f32 %v583, 0.0
      %v668 = vmax.f32 %v632, 0.0
      %v669 = vmax.f32 %v586, 0.0
      %v670 = vmax.f32 %v635, 0.0
      %v671 = vmax.f32 %v588, 0.0
      %v672 = vmax.f32 %v637, 0.0
      %v673 = vmax.f32 %v591, 0.0
      %v674 = vmax.f32 %v640, 0.0
      %v675 = vmax.f32 %v593, 0.0
      %v676 = vmax.f32 %v642, 0.0
      %v677 = vmax.f32 %v596, 0.0
      %v678 = vmax.f32 %v645, 0.0
      %v679 = vmax.f32 %v598, 0.0
      %v680 = vmax.f32 %v647, 0.0
      %v681 = vld [vmem:[%s1] sm:$0xff]
      %v682 = vld [vmem:[%s1 + $0x8] sm:$0xff]
      %v683 = vld [vmem:[%s4] sm:$0xff]
      %v684 = vld [vmem:[%s4 + $0x8] sm:$0xff]
      %v685 = vld [vmem:[%s4 + $0x10] sm:$0xff]
      %v686 = vld [vmem:[%s4 + $0x18] sm:$0xff]
      %v687 = vld [vmem:[%s4 + $0x20] sm:$0xff]
      %v688 = vld [vmem:[%s4 + $0x28] sm:$0xff]
      %v689 = vld [vmem:[%s4 + $0x30] sm:$0xff]
      %v690 = vld [vmem:[%s4 + $0x38] sm:$0xff]
      %v691 = vld [vmem:[%s4 + $0x40] sm:$0xff]
      %v692 = vld [vmem:[%s4 + $0x48] sm:$0xff]
      %v693 = vld [vmem:[%s4 + $0x50] sm:$0xff]
      %v694 = vld [vmem:[%s4 + $0x58] sm:$0xff]
      %v695 = vld [vmem:[%s4 + $0x60] sm:$0xff]
      %v696 = vld [vmem:[%s4 + $0x68] sm:$0xff]
      %v697 = vld [vmem:[%s4 + $0x70] sm:$0xff]
      %v698 = vld [vmem:[%s4 + $0x78] sm:$0xff]
      %699 = vrot.lane.b32.xlu0 %v649, 127
      %v700 = vpop.permute.xlu0 %699
      %701 = vrot.lane.b32.xlu0 %v651, 127
      %v702 = vpop.permute.xlu0 %701
      %703 = vrot.lane.b32.xlu0 %v653, 127
      %v704 = vpop.permute.xlu0 %703
      %705 = vrot.lane.b32.xlu0 %v655, 127
      %v706 = vpop.permute.xlu0 %705
      %707 = vrot.lane.b32.xlu0 %v657, 127
      %v708 = vpop.permute.xlu0 %707
      %709 = vrot.lane.b32.xlu0 %v659, 127
      %v710 = vpop.permute.xlu0 %709
      %711 = vrot.lane.b32.xlu0 %v661, 127
      %v712 = vpop.permute.xlu0 %711
      %713 = vrot.lane.b32.xlu0 %v663, 127
      %v714 = vpop.permute.xlu0 %713
      %715 = vrot.lane.b32.xlu0 %v665, 127
      %v716 = vpop.permute.xlu0 %715
      %717 = vrot.lane.b32.xlu0 %v667, 127
      %v718 = vpop.permute.xlu0 %717
      %719 = vrot.lane.b32.xlu0 %v669, 127
      %v720 = vpop.permute.xlu0 %719
      %721 = vrot.lane.b32.xlu0 %v671, 127
      %v722 = vpop.permute.xlu0 %721
      %723 = vrot.lane.b32.xlu0 %v673, 127
      %v724 = vpop.permute.xlu0 %723
      %725 = vrot.lane.b32.xlu0 %v675, 127
      %v726 = vpop.permute.xlu0 %725
      %727 = vrot.lane.b32.xlu0 %v677, 127
      %v728 = vpop.permute.xlu0 %727
      %729 = vrot.lane.b32.xlu0 %v679, 127
      %v730 = vpop.permute.xlu0 %729
      %731 = vrot.lane.b32.xlu0 %v650, 127
      %v732 = vpop.permute.xlu0 %731
      %733 = vrot.lane.b32.xlu0 %v652, 127
      %v734 = vpop.permute.xlu0 %733
      %735 = vrot.lane.b32.xlu0 %v654, 127
      %v736 = vpop.permute.xlu0 %735
      %737 = vrot.lane.b32.xlu0 %v656, 127
      %v738 = vpop.permute.xlu0 %737
      %739 = vrot.lane.b32.xlu0 %v658, 127
      %v740 = vpop.permute.xlu0 %739
      %741 = vrot.lane.b32.xlu0 %v660, 127
      %v742 = vpop.permute.xlu0 %741
      %743 = vrot.lane.b32.xlu0 %v662, 127
      %v744 = vpop.permute.xlu0 %743
      %745 = vrot.lane.b32.xlu0 %v664, 127
      %v746 = vpop.permute.xlu0 %745
      %747 = vrot.lane.b32.xlu0 %v666, 127
      %v748 = vpop.permute.xlu0 %747
      %749 = vrot.lane.b32.xlu0 %v668, 127
      %v750 = vpop.permute.xlu0 %749
      %751 = vrot.lane.b32.xlu0 %v670, 127
      %v752 = vpop.permute.xlu0 %751
      %753 = vrot.lane.b32.xlu0 %v672, 127
      %v754 = vpop.permute.xlu0 %753
      %755 = vrot.lane.b32.xlu0 %v674, 127
      %v756 = vpop.permute.xlu0 %755
      %757 = vrot.lane.b32.xlu0 %v676, 127
      %v758 = vpop.permute.xlu0 %757
      %759 = vrot.lane.b32.xlu0 %v678, 127
      %v760 = vpop.permute.xlu0 %759
      %761 = vrot.lane.b32.xlu0 %v680, 127
      %v762 = vpop.permute.xlu0 %761
      %v763 = vlaneseq
      %v764 = vand.u32 %v763, 127
      %vm765 = vcmp.lt.s32.totalorder %v764, 127
      %v766 = vsel %vm765, %v700, %v732
      %v767 = vsel %vm765, %v702, %v734
      %v768 = vsel %vm765, %v704, %v736
      %v769 = vsel %vm765, %v706, %v738
      %v770 = vsel %vm765, %v708, %v740
      %v771 = vsel %vm765, %v710, %v742
      %v772 = vsel %vm765, %v712, %v744
      %v773 = vsel %vm765, %v714, %v746
      %v774 = vsel %vm765, %v716, %v748
      %v775 = vsel %vm765, %v718, %v750
      %v776 = vsel %vm765, %v720, %v752
      %v777 = vsel %vm765, %v722, %v754
      %v778 = vsel %vm765, %v724, %v756
      %v779 = vsel %vm765, %v726, %v758
      %v780 = vsel %vm765, %v728, %v760
      %v781 = vsel %vm765, %v730, %v762
      %v782 = vsel %vm765, %v732, %v700
      %v783 = vsel %vm765, %v734, %v702
      %v784 = vsel %vm765, %v736, %v704
      %v785 = vsel %vm765, %v738, %v706
      %v786 = vsel %vm765, %v740, %v708
      %v787 = vsel %vm765, %v742, %v710
      %v788 = vsel %vm765, %v744, %v712
      %v789 = vsel %vm765, %v746, %v714
      %v790 = vsel %vm765, %v748, %v716
      %v791 = vsel %vm765, %v750, %v718
      %v792 = vsel %vm765, %v752, %v720
      %v793 = vsel %vm765, %v754, %v722
      %v794 = vsel %vm765, %v756, %v724
      %v795 = vsel %vm765, %v758, %v726
      %v796 = vsel %vm765, %v760, %v728
      %v797 = vsel %vm765, %v762, %v730
      %v798 = vperm.slane %v681, 1
      %v799 = vperm.slane %v682, 1
      %v800 = vmul.f32 %v766, %v798
      %v801 = vmul.f32 %v782, %v799
      %v802 = vmul.f32 %v767, %v798
      %v803 = vmul.f32 %v783, %v799
      %v804 = vmul.f32 %v768, %v798
      %v805 = vmul.f32 %v784, %v799
      %v806 = vmul.f32 %v769, %v798
      %v807 = vmul.f32 %v785, %v799
      %v808 = vmul.f32 %v770, %v798
      %v809 = vmul.f32 %v786, %v799
      %v810 = vmul.f32 %v771, %v798
      %v811 = vmul.f32 %v787, %v799
      %v812 = vmul.f32 %v772, %v798
      %v813 = vmul.f32 %v788, %v799
      %v814 = vmul.f32 %v773, %v798
      %v815 = vmul.f32 %v789, %v799
      %v816 = vmul.f32 %v774, %v798
      %v817 = vmul.f32 %v790, %v799
      %v818 = vmul.f32 %v775, %v798
      %v819 = vmul.f32 %v791, %v799
      %v820 = vmul.f32 %v776, %v798
      %v821 = vmul.f32 %v792, %v799
      %v822 = vmul.f32 %v777, %v798
      %v823 = vmul.f32 %v793, %v799
      %v824 = vmul.f32 %v778, %v798
      %v825 = vmul.f32 %v794, %v799
      %v826 = vmul.f32 %v779, %v798
      %v827 = vmul.f32 %v795, %v799
      %v828 = vmul.f32 %v780, %v798
      %v829 = vmul.f32 %v796, %v799
      %v830 = vmul.f32 %v781, %v798
      %v831 = vmul.f32 %v797, %v799
      %832 = vrot.lane.b32.xlu0 %v649, 1
      %v833 = vpop.permute.xlu0 %832
      %834 = vrot.lane.b32.xlu0 %v651, 1
      %v835 = vpop.permute.xlu0 %834
      %836 = vrot.lane.b32.xlu0 %v653, 1
      %v837 = vpop.permute.xlu0 %836
      %838 = vrot.lane.b32.xlu0 %v655, 1
      %v839 = vpop.permute.xlu0 %838
      %840 = vrot.lane.b32.xlu0 %v657, 1
      %v841 = vpop.permute.xlu0 %840
      %842 = vrot.lane.b32.xlu0 %v659, 1
      %v843 = vpop.permute.xlu0 %842
      %844 = vrot.lane.b32.xlu0 %v661, 1
      %v845 = vpop.permute.xlu0 %844
      %846 = vrot.lane.b32.xlu0 %v663, 1
      %v847 = vpop.permute.xlu0 %846
      %848 = vrot.lane.b32.xlu0 %v665, 1
      %v849 = vpop.permute.xlu0 %848
      %850 = vrot.lane.b32.xlu0 %v667, 1
      %v851 = vpop.permute.xlu0 %850
      %852 = vrot.lane.b32.xlu0 %v669, 1
      %v853 = vpop.permute.xlu0 %852
      %854 = vrot.lane.b32.xlu0 %v671, 1
      %v855 = vpop.permute.xlu0 %854
      %856 = vrot.lane.b32.xlu0 %v673, 1
      %v857 = vpop.permute.xlu0 %856
      %858 = vrot.lane.b32.xlu0 %v675, 1
      %v859 = vpop.permute.xlu0 %858
      %860 = vrot.lane.b32.xlu0 %v677, 1
      %v861 = vpop.permute.xlu0 %860
      %862 = vrot.lane.b32.xlu0 %v679, 1
      %v863 = vpop.permute.xlu0 %862
      %864 = vrot.lane.b32.xlu0 %v650, 1
      %v865 = vpop.permute.xlu0 %864
      %866 = vrot.lane.b32.xlu0 %v652, 1
      %v867 = vpop.permute.xlu0 %866
      %868 = vrot.lane.b32.xlu0 %v654, 1
      %v869 = vpop.permute.xlu0 %868
      %870 = vrot.lane.b32.xlu0 %v656, 1
      %v871 = vpop.permute.xlu0 %870
      %872 = vrot.lane.b32.xlu0 %v658, 1
      %v873 = vpop.permute.xlu0 %872
      %874 = vrot.lane.b32.xlu0 %v660, 1
      %v875 = vpop.permute.xlu0 %874
      %876 = vrot.lane.b32.xlu0 %v662, 1
      %v877 = vpop.permute.xlu0 %876
      %878 = vrot.lane.b32.xlu0 %v664, 1
      %v879 = vpop.permute.xlu0 %878
      %880 = vrot.lane.b32.xlu0 %v666, 1
      %v881 = vpop.permute.xlu0 %880
      %882 = vrot.lane.b32.xlu0 %v668, 1
      %v883 = vpop.permute.xlu0 %882
      %884 = vrot.lane.b32.xlu0 %v670, 1
      %v885 = vpop.permute.xlu0 %884
      %886 = vrot.lane.b32.xlu0 %v672, 1
      %v887 = vpop.permute.xlu0 %886
      %888 = vrot.lane.b32.xlu0 %v674, 1
      %v889 = vpop.permute.xlu0 %888
      %890 = vrot.lane.b32.xlu0 %v676, 1
      %v891 = vpop.permute.xlu0 %890
      %892 = vrot.lane.b32.xlu0 %v678, 1
      %v893 = vpop.permute.xlu0 %892
      %894 = vrot.lane.b32.xlu0 %v680, 1
      %v895 = vpop.permute.xlu0 %894
      %vm896 = vcmp.lt.s32.totalorder %v764, 1
      %v897 = vsel %vm896, %v833, %v865
      %v898 = vsel %vm896, %v835, %v867
      %v899 = vsel %vm896, %v837, %v869
      %v900 = vsel %vm896, %v839, %v871
      %v901 = vsel %vm896, %v841, %v873
      %v902 = vsel %vm896, %v843, %v875
      %v903 = vsel %vm896, %v845, %v877
      %v904 = vsel %vm896, %v847, %v879
      %v905 = vsel %vm896, %v849, %v881
      %v906 = vsel %vm896, %v851, %v883
      %v907 = vsel %vm896, %v853, %v885
      %v908 = vsel %vm896, %v855, %v887
      %v909 = vsel %vm896, %v857, %v889
      %v910 = vsel %vm896, %v859, %v891
      %v911 = vsel %vm896, %v861, %v893
      %v912 = vsel %vm896, %v863, %v895
      %v913 = vsel %vm896, %v865, %v833
      %v914 = vsel %vm896, %v867, %v835
      %v915 = vsel %vm896, %v869, %v837
      %v916 = vsel %vm896, %v871, %v839
      %v917 = vsel %vm896, %v873, %v841
      %v918 = vsel %vm896, %v875, %v843
      %v919 = vsel %vm896, %v877, %v845
      %v920 = vsel %vm896, %v879, %v847
      %v921 = vsel %vm896, %v881, %v849
      %v922 = vsel %vm896, %v883, %v851
      %v923 = vsel %vm896, %v885, %v853
      %v924 = vsel %vm896, %v887, %v855
      %v925 = vsel %vm896, %v889, %v857
      %v926 = vsel %vm896, %v891, %v859
      %v927 = vsel %vm896, %v893, %v861
      %v928 = vsel %vm896, %v895, %v863
      %v929 = vperm.slane %v681, 0
      %v930 = vperm.slane %v682, 0
      %v931 = vmul.f32 %v913, %v929
      %v932 = vmul.f32 %v897, %v930
      %v933 = vmul.f32 %v914, %v929
      %v934 = vmul.f32 %v898, %v930
      %v935 = vmul.f32 %v915, %v929
      %v936 = vmul.f32 %v899, %v930
      %v937 = vmul.f32 %v916, %v929
      %v938 = vmul.f32 %v900, %v930
      %v939 = vmul.f32 %v917, %v929
      %v940 = vmul.f32 %v901, %v930
      %v941 = vmul.f32 %v918, %v929
      %v942 = vmul.f32 %v902, %v930
      %v943 = vmul.f32 %v919, %v929
      %v944 = vmul.f32 %v903, %v930
      %v945 = vmul.f32 %v920, %v929
      %v946 = vmul.f32 %v904, %v930
      %v947 = vmul.f32 %v921, %v929
      %v948 = vmul.f32 %v905, %v930
      %v949 = vmul.f32 %v922, %v929
      %v950 = vmul.f32 %v906, %v930
      %v951 = vmul.f32 %v923, %v929
      %v952 = vmul.f32 %v907, %v930
      %v953 = vmul.f32 %v924, %v929
      %v954 = vmul.f32 %v908, %v930
      %v955 = vmul.f32 %v925, %v929
      %v956 = vmul.f32 %v909, %v930
      %v957 = vmul.f32 %v926, %v929
      %v958 = vmul.f32 %v910, %v930
      %v959 = vmul.f32 %v927, %v929
      %v960 = vmul.f32 %v911, %v930
      %v961 = vmul.f32 %v928, %v929
      %v962 = vmul.f32 %v912, %v930
      %964 = vset.pattern.permute.xlu0 4
      %965 = vperm.xlu0 %964, %v683
      %v966 = vpop.permute.xlu0 %965
      %969 = vset.pattern.permute.xlu0 4
      %970 = vperm.xlu0 %969, %v684
      %v971 = vpop.permute.xlu0 %970
      %974 = vset.pattern.permute.xlu0 4
      %975 = vperm.xlu0 %974, %v685
      %v976 = vpop.permute.xlu0 %975
      %979 = vset.pattern.permute.xlu0 4
      %980 = vperm.xlu0 %979, %v686
      %v981 = vpop.permute.xlu0 %980
      %984 = vset.pattern.permute.xlu0 4
      %985 = vperm.xlu0 %984, %v687
      %v986 = vpop.permute.xlu0 %985
      %989 = vset.pattern.permute.xlu0 4
      %990 = vperm.xlu0 %989, %v688
      %v991 = vpop.permute.xlu0 %990
      %994 = vset.pattern.permute.xlu0 4
      %995 = vperm.xlu0 %994, %v689
      %v996 = vpop.permute.xlu0 %995
      %999 = vset.pattern.permute.xlu0 4
      %1000 = vperm.xlu0 %999, %v690
      %v1001 = vpop.permute.xlu0 %1000
      %1004 = vset.pattern.permute.xlu0 4
      %1005 = vperm.xlu0 %1004, %v691
      %v1006 = vpop.permute.xlu0 %1005
      %1009 = vset.pattern.permute.xlu0 4
      %1010 = vperm.xlu0 %1009, %v692
      %v1011 = vpop.permute.xlu0 %1010
      %1014 = vset.pattern.permute.xlu0 4
      %1015 = vperm.xlu0 %1014, %v693
      %v1016 = vpop.permute.xlu0 %1015
      %1019 = vset.pattern.permute.xlu0 4
      %1020 = vperm.xlu0 %1019, %v694
      %v1021 = vpop.permute.xlu0 %1020
      %1024 = vset.pattern.permute.xlu0 4
      %1025 = vperm.xlu0 %1024, %v695
      %v1026 = vpop.permute.xlu0 %1025
      %1029 = vset.pattern.permute.xlu0 4
      %1030 = vperm.xlu0 %1029, %v696
      %v1031 = vpop.permute.xlu0 %1030
      %1034 = vset.pattern.permute.xlu0 4
      %1035 = vperm.xlu0 %1034, %v697
      %v1036 = vpop.permute.xlu0 %1035
      %1039 = vset.pattern.permute.xlu0 4
      %1040 = vperm.xlu0 %1039, %v698
      %v1041 = vpop.permute.xlu0 %1040
      %v1043 = vmul.f32 %v649, %v966
      %v1044 = vmul.f32 %v650, %v966
      %v1045 = vmul.f32 %v651, %v971
      %v1046 = vmul.f32 %v652, %v971
      %v1047 = vmul.f32 %v653, %v976
      %v1048 = vmul.f32 %v654, %v976
      %v1049 = vmul.f32 %v655, %v981
      %v1050 = vmul.f32 %v656, %v981
      %v1051 = vmul.f32 %v657, %v986
      %v1052 = vmul.f32 %v658, %v986
      %v1053 = vmul.f32 %v659, %v991
      %v1054 = vmul.f32 %v660, %v991
      %v1055 = vmul.f32 %v661, %v996
      %v1056 = vmul.f32 %v662, %v996
      %v1057 = vmul.f32 %v663, %v1001
      %v1058 = vmul.f32 %v664, %v1001
      %v1059 = vmul.f32 %v665, %v1006
      %v1060 = vmul.f32 %v666, %v1006
      %v1061 = vmul.f32 %v667, %v1011
      %v1062 = vmul.f32 %v668, %v1011
      %v1063 = vmul.f32 %v669, %v1016
      %v1064 = vmul.f32 %v670, %v1016
      %v1065 = vmul.f32 %v671, %v1021
      %v1066 = vmul.f32 %v672, %v1021
      %v1067 = vmul.f32 %v673, %v1026
      %v1068 = vmul.f32 %v674, %v1026
      %v1069 = vmul.f32 %v675, %v1031
      %v1070 = vmul.f32 %v676, %v1031
      %v1071 = vmul.f32 %v677, %v1036
      %v1072 = vmul.f32 %v678, %v1036
      %v1073 = vmul.f32 %v679, %v1041
      %v1074 = vmul.f32 %v680, %v1041
      %1075 = vset.pattern.permute.xlu0 3
      %1076 = vperm.xlu0 %1075, %v683
      %v1077 = vpop.permute.xlu0 %1076
      %1079 = vset.pattern.permute.xlu0 3
      %1080 = vperm.xlu0 %1079, %v684
      %v1081 = vpop.permute.xlu0 %1080
      %1083 = vset.pattern.permute.xlu0 3
      %1084 = vperm.xlu0 %1083, %v685
      %v1085 = vpop.permute.xlu0 %1084
      %1087 = vset.pattern.permute.xlu0 3
      %1088 = vperm.xlu0 %1087, %v686
      %v1089 = vpop.permute.xlu0 %1088
      %1091 = vset.pattern.permute.xlu0 3
      %1092 = vperm.xlu0 %1091, %v687
      %v1093 = vpop.permute.xlu0 %1092
      %1095 = vset.pattern.permute.xlu0 3
      %1096 = vperm.xlu0 %1095, %v688
      %v1097 = vpop.permute.xlu0 %1096
      %1099 = vset.pattern.permute.xlu0 3
      %1100 = vperm.xlu0 %1099, %v689
      %v1101 = vpop.permute.xlu0 %1100
      %1103 = vset.pattern.permute.xlu0 3
      %1104 = vperm.xlu0 %1103, %v690
      %v1105 = vpop.permute.xlu0 %1104
      %1107 = vset.pattern.permute.xlu0 3
      %1108 = vperm.xlu0 %1107, %v691
      %v1109 = vpop.permute.xlu0 %1108
      %1111 = vset.pattern.permute.xlu0 3
      %1112 = vperm.xlu0 %1111, %v692
      %v1113 = vpop.permute.xlu0 %1112
      %1115 = vset.pattern.permute.xlu0 3
      %1116 = vperm.xlu0 %1115, %v693
      %v1117 = vpop.permute.xlu0 %1116
      %1119 = vset.pattern.permute.xlu0 3
      %1120 = vperm.xlu0 %1119, %v694
      %v1121 = vpop.permute.xlu0 %1120
      %1123 = vset.pattern.permute.xlu0 3
      %1124 = vperm.xlu0 %1123, %v695
      %v1125 = vpop.permute.xlu0 %1124
      %1127 = vset.pattern.permute.xlu0 3
      %1128 = vperm.xlu0 %1127, %v696
      %v1129 = vpop.permute.xlu0 %1128
      %1131 = vset.pattern.permute.xlu0 3
      %1132 = vperm.xlu0 %1131, %v697
      %v1133 = vpop.permute.xlu0 %1132
      %1135 = vset.pattern.permute.xlu0 3
      %1136 = vperm.xlu0 %1135, %v698
      %v1137 = vpop.permute.xlu0 %1136
      %v1139 = vmul.f32 %v931, %v1077
      %v1140 = vmul.f32 %v932, %v1077
      %v1141 = vmul.f32 %v933, %v1081
      %v1142 = vmul.f32 %v934, %v1081
      %v1143 = vmul.f32 %v935, %v1085
      %v1144 = vmul.f32 %v936, %v1085
      %v1145 = vmul.f32 %v937, %v1089
      %v1146 = vmul.f32 %v938, %v1089
      %v1147 = vmul.f32 %v939, %v1093
      %v1148 = vmul.f32 %v940, %v1093
      %v1149 = vmul.f32 %v941, %v1097
      %v1150 = vmul.f32 %v942, %v1097
      %v1151 = vmul.f32 %v943, %v1101
      %v1152 = vmul.f32 %v944, %v1101
      %v1153 = vmul.f32 %v945, %v1105
      %v1154 = vmul.f32 %v946, %v1105
      %v1155 = vmul.f32 %v947, %v1109
      %v1156 = vmul.f32 %v948, %v1109
      %v1157 = vmul.f32 %v949, %v1113
      %v1158 = vmul.f32 %v950, %v1113
      %v1159 = vmul.f32 %v951, %v1117
      %v1160 = vmul.f32 %v952, %v1117
      %v1161 = vmul.f32 %v953, %v1121
      %v1162 = vmul.f32 %v954, %v1121
      %v1163 = vmul.f32 %v955, %v1125
      %v1164 = vmul.f32 %v956, %v1125
      %v1165 = vmul.f32 %v957, %v1129
      %v1166 = vmul.f32 %v958, %v1129
      %v1167 = vmul.f32 %v959, %v1133
      %v1168 = vmul.f32 %v960, %v1133
      %v1169 = vmul.f32 %v961, %v1137
      %v1170 = vmul.f32 %v962, %v1137
      %v1171 = vadd.f32 %v1043, %v1139
      %v1172 = vadd.f32 %v1044, %v1140
      %v1173 = vadd.f32 %v1045, %v1141
      %v1174 = vadd.f32 %v1046, %v1142
      %v1175 = vadd.f32 %v1047, %v1143
      %v1176 = vadd.f32 %v1048, %v1144
      %v1177 = vadd.f32 %v1049, %v1145
      %v1178 = vadd.f32 %v1050, %v1146
      %v1179 = vadd.f32 %v1051, %v1147
      %v1180 = vadd.f32 %v1052, %v1148
      %v1181 = vadd.f32 %v1053, %v1149
      %v1182 = vadd.f32 %v1054, %v1150
      %v1183 = vadd.f32 %v1055, %v1151
      %v1184 = vadd.f32 %v1056, %v1152
      %v1185 = vadd.f32 %v1057, %v1153
      %v1186 = vadd.f32 %v1058, %v1154
      %v1187 = vadd.f32 %v1059, %v1155
      %v1188 = vadd.f32 %v1060, %v1156
      %v1189 = vadd.f32 %v1061, %v1157
      %v1190 = vadd.f32 %v1062, %v1158
      %v1191 = vadd.f32 %v1063, %v1159
      %v1192 = vadd.f32 %v1064, %v1160
      %v1193 = vadd.f32 %v1065, %v1161
      %v1194 = vadd.f32 %v1066, %v1162
      %v1195 = vadd.f32 %v1067, %v1163
      %v1196 = vadd.f32 %v1068, %v1164
      %v1197 = vadd.f32 %v1069, %v1165
      %v1198 = vadd.f32 %v1070, %v1166
      %v1199 = vadd.f32 %v1071, %v1167
      %v1200 = vadd.f32 %v1072, %v1168
      %v1201 = vadd.f32 %v1073, %v1169
      %v1202 = vadd.f32 %v1074, %v1170
      %1203 = vset.pattern.permute.xlu0 5
      %1204 = vperm.xlu0 %1203, %v683
      %v1205 = vpop.permute.xlu0 %1204
      %1207 = vset.pattern.permute.xlu0 5
      %1208 = vperm.xlu0 %1207, %v684
      %v1209 = vpop.permute.xlu0 %1208
      %1211 = vset.pattern.permute.xlu0 5
      %1212 = vperm.xlu0 %1211, %v685
      %v1213 = vpop.permute.xlu0 %1212
      %1215 = vset.pattern.permute.xlu0 5
      %1216 = vperm.xlu0 %1215, %v686
      %v1217 = vpop.permute.xlu0 %1216
      %1219 = vset.pattern.permute.xlu0 5
      %1220 = vperm.xlu0 %1219, %v687
      %v1221 = vpop.permute.xlu0 %1220
      %1223 = vset.pattern.permute.xlu0 5
      %1224 = vperm.xlu0 %1223, %v688
      %v1225 = vpop.permute.xlu0 %1224
      %1227 = vset.pattern.permute.xlu0 5
      %1228 = vperm.xlu0 %1227, %v689
      %v1229 = vpop.permute.xlu0 %1228
      %1231 = vset.pattern.permute.xlu0 5
      %1232 = vperm.xlu0 %1231, %v690
      %v1233 = vpop.permute.xlu0 %1232
      %1235 = vset.pattern.permute.xlu0 5
      %1236 = vperm.xlu0 %1235, %v691
      %v1237 = vpop.permute.xlu0 %1236
      %1239 = vset.pattern.permute.xlu0 5
      %1240 = vperm.xlu0 %1239, %v692
      %v1241 = vpop.permute.xlu0 %1240
      %1243 = vset.pattern.permute.xlu0 5
      %1244 = vperm.xlu0 %1243, %v693
      %v1245 = vpop.permute.xlu0 %1244
      %1247 = vset.pattern.permute.xlu0 5
      %1248 = vperm.xlu0 %1247, %v694
      %v1249 = vpop.permute.xlu0 %1248
      %1251 = vset.pattern.permute.xlu0 5
      %1252 = vperm.xlu0 %1251, %v695
      %v1253 = vpop.permute.xlu0 %1252
      %1255 = vset.pattern.permute.xlu0 5
      %1256 = vperm.xlu0 %1255, %v696
      %v1257 = vpop.permute.xlu0 %1256
      %1259 = vset.pattern.permute.xlu0 5
      %1260 = vperm.xlu0 %1259, %v697
      %v1261 = vpop.permute.xlu0 %1260
      %1263 = vset.pattern.permute.xlu0 5
      %1264 = vperm.xlu0 %1263, %v698
      %v1265 = vpop.permute.xlu0 %1264
      %v1267 = vmul.f32 %v800, %v1205
      %v1268 = vmul.f32 %v801, %v1205
      %v1269 = vmul.f32 %v802, %v1209
      %v1270 = vmul.f32 %v803, %v1209
      %v1271 = vmul.f32 %v804, %v1213
      %v1272 = vmul.f32 %v805, %v1213
      %v1273 = vmul.f32 %v806, %v1217
      %v1274 = vmul.f32 %v807, %v1217
      %v1275 = vmul.f32 %v808, %v1221
      %v1276 = vmul.f32 %v809, %v1221
      %v1277 = vmul.f32 %v810, %v1225
      %v1278 = vmul.f32 %v811, %v1225
      %v1279 = vmul.f32 %v812, %v1229
      %v1280 = vmul.f32 %v813, %v1229
      %v1281 = vmul.f32 %v814, %v1233
      %v1282 = vmul.f32 %v815, %v1233
      %v1283 = vmul.f32 %v816, %v1237
      %v1284 = vmul.f32 %v817, %v1237
      %v1285 = vmul.f32 %v818, %v1241
      %v1286 = vmul.f32 %v819, %v1241
      %v1287 = vmul.f32 %v820, %v1245
      %v1288 = vmul.f32 %v821, %v1245
      %v1289 = vmul.f32 %v822, %v1249
      %v1290 = vmul.f32 %v823, %v1249
      %v1291 = vmul.f32 %v824, %v1253
      %v1292 = vmul.f32 %v825, %v1253
      %v1293 = vmul.f32 %v826, %v1257
      %v1294 = vmul.f32 %v827, %v1257
      %v1295 = vmul.f32 %v828, %v1261
      %v1296 = vmul.f32 %v829, %v1261
      %v1297 = vmul.f32 %v830, %v1265
      %v1298 = vmul.f32 %v831, %v1265
      %v1299 = vadd.f32 %v1171, %v1267
      %v1300 = vadd.f32 %v1172, %v1268
      %v1301 = vadd.f32 %v1173, %v1269
      %v1302 = vadd.f32 %v1174, %v1270
      %v1303 = vadd.f32 %v1175, %v1271
      %v1304 = vadd.f32 %v1176, %v1272
      %v1305 = vadd.f32 %v1177, %v1273
      %v1306 = vadd.f32 %v1178, %v1274
      %v1307 = vadd.f32 %v1179, %v1275
      %v1308 = vadd.f32 %v1180, %v1276
      %v1309 = vadd.f32 %v1181, %v1277
      %v1310 = vadd.f32 %v1182, %v1278
      %v1311 = vadd.f32 %v1183, %v1279
      %v1312 = vadd.f32 %v1184, %v1280
      %v1313 = vadd.f32 %v1185, %v1281
      %v1314 = vadd.f32 %v1186, %v1282
      %v1315 = vadd.f32 %v1187, %v1283
      %v1316 = vadd.f32 %v1188, %v1284
      %v1317 = vadd.f32 %v1189, %v1285
      %v1318 = vadd.f32 %v1190, %v1286
      %v1319 = vadd.f32 %v1191, %v1287
      %v1320 = vadd.f32 %v1192, %v1288
      %v1321 = vadd.f32 %v1193, %v1289
      %v1322 = vadd.f32 %v1194, %v1290
      %v1323 = vadd.f32 %v1195, %v1291
      %v1324 = vadd.f32 %v1196, %v1292
      %v1325 = vadd.f32 %v1197, %v1293
      %v1326 = vadd.f32 %v1198, %v1294
      %v1327 = vadd.f32 %v1199, %v1295
      %v1328 = vadd.f32 %v1200, %v1296
      %v1329 = vadd.f32 %v1201, %v1297
      %v1330 = vadd.f32 %v1202, %v1298
      %1331 = vrot.lane.b32.xlu0 %v931, 112
      %v1332 = vpop.permute.xlu0 %1331
      %1333 = vrot.lane.b32.xlu0 %v933, 112
      %v1334 = vpop.permute.xlu0 %1333
      %1335 = vrot.lane.b32.xlu0 %v935, 112
      %v1336 = vpop.permute.xlu0 %1335
      %1337 = vrot.lane.b32.xlu0 %v937, 112
      %v1338 = vpop.permute.xlu0 %1337
      %1339 = vrot.lane.b32.xlu0 %v939, 112
      %v1340 = vpop.permute.xlu0 %1339
      %1341 = vrot.lane.b32.xlu0 %v941, 112
      %v1342 = vpop.permute.xlu0 %1341
      %1343 = vrot.lane.b32.xlu0 %v943, 112
      %v1344 = vpop.permute.xlu0 %1343
      %1345 = vrot.lane.b32.xlu0 %v945, 112
      %v1346 = vpop.permute.xlu0 %1345
      %1347 = vrot.lane.b32.xlu0 %v947, 112
      %v1348 = vpop.permute.xlu0 %1347
      %1349 = vrot.lane.b32.xlu0 %v949, 112
      %v1350 = vpop.permute.xlu0 %1349
      %1351 = vrot.lane.b32.xlu0 %v951, 112
      %v1352 = vpop.permute.xlu0 %1351
      %1353 = vrot.lane.b32.xlu0 %v953, 112
      %v1354 = vpop.permute.xlu0 %1353
      %1355 = vrot.lane.b32.xlu0 %v955, 112
      %v1356 = vpop.permute.xlu0 %1355
      %1357 = vrot.lane.b32.xlu0 %v957, 112
      %v1358 = vpop.permute.xlu0 %1357
      %1359 = vrot.lane.b32.xlu0 %v959, 112
      %v1360 = vpop.permute.xlu0 %1359
      %1361 = vrot.lane.b32.xlu0 %v961, 112
      %v1362 = vpop.permute.xlu0 %1361
      %1363 = vrot.lane.b32.xlu0 %v932, 112
      %v1364 = vpop.permute.xlu0 %1363
      %1365 = vrot.lane.b32.xlu0 %v934, 112
      %v1366 = vpop.permute.xlu0 %1365
      %1367 = vrot.lane.b32.xlu0 %v936, 112
      %v1368 = vpop.permute.xlu0 %1367
      %1369 = vrot.lane.b32.xlu0 %v938, 112
      %v1370 = vpop.permute.xlu0 %1369
      %1371 = vrot.lane.b32.xlu0 %v940, 112
      %v1372 = vpop.permute.xlu0 %1371
      %1373 = vrot.lane.b32.xlu0 %v942, 112
      %v1374 = vpop.permute.xlu0 %1373
      %1375 = vrot.lane.b32.xlu0 %v944, 112
      %v1376 = vpop.permute.xlu0 %1375
      %1377 = vrot.lane.b32.xlu0 %v946, 112
      %v1378 = vpop.permute.xlu0 %1377
      %1379 = vrot.lane.b32.xlu0 %v948, 112
      %v1380 = vpop.permute.xlu0 %1379
      %1381 = vrot.lane.b32.xlu0 %v950, 112
      %v1382 = vpop.permute.xlu0 %1381
      %1383 = vrot.lane.b32.xlu0 %v952, 112
      %v1384 = vpop.permute.xlu0 %1383
      %1385 = vrot.lane.b32.xlu0 %v954, 112
      %v1386 = vpop.permute.xlu0 %1385
      %1387 = vrot.lane.b32.xlu0 %v956, 112
      %v1388 = vpop.permute.xlu0 %1387
      %1389 = vrot.lane.b32.xlu0 %v958, 112
      %v1390 = vpop.permute.xlu0 %1389
      %1391 = vrot.lane.b32.xlu0 %v960, 112
      %v1392 = vpop.permute.xlu0 %1391
      %1393 = vrot.lane.b32.xlu0 %v962, 112
      %v1394 = vpop.permute.xlu0 %1393
      %vm1395 = vcmp.lt.s32.totalorder %v764, 112
      %v1396 = vsel %vm1395, %v1332, %v1364
      %v1397 = vsel %vm1395, %v1334, %v1366
      %v1398 = vsel %vm1395, %v1336, %v1368
      %v1399 = vsel %vm1395, %v1338, %v1370
      %v1400 = vsel %vm1395, %v1340, %v1372
      %v1401 = vsel %vm1395, %v1342, %v1374
      %v1402 = vsel %vm1395, %v1344, %v1376
      %v1403 = vsel %vm1395, %v1346, %v1378
      %v1404 = vsel %vm1395, %v1348, %v1380
      %v1405 = vsel %vm1395, %v1350, %v1382
      %v1406 = vsel %vm1395, %v1352, %v1384
      %v1407 = vsel %vm1395, %v1354, %v1386
      %v1408 = vsel %vm1395, %v1356, %v1388
      %v1409 = vsel %vm1395, %v1358, %v1390
      %v1410 = vsel %vm1395, %v1360, %v1392
      %v1411 = vsel %vm1395, %v1362, %v1394
      %v1412 = vsel %vm1395, %v1364, %v1332
      %v1413 = vsel %vm1395, %v1366, %v1334
      %v1414 = vsel %vm1395, %v1368, %v1336
      %v1415 = vsel %vm1395, %v1370, %v1338
      %v1416 = vsel %vm1395, %v1372, %v1340
      %v1417 = vsel %vm1395, %v1374, %v1342
      %v1418 = vsel %vm1395, %v1376, %v1344
      %v1419 = vsel %vm1395, %v1378, %v1346
      %v1420 = vsel %vm1395, %v1380, %v1348
      %v1421 = vsel %vm1395, %v1382, %v1350
      %v1422 = vsel %vm1395, %v1384, %v1352
      %v1423 = vsel %vm1395, %v1386, %v1354
      %v1424 = vsel %vm1395, %v1388, %v1356
      %v1425 = vsel %vm1395, %v1390, %v1358
      %v1426 = vsel %vm1395, %v1392, %v1360
      %v1427 = vsel %vm1395, %v1394, %v1362
      %v1428 = vperm.slane %v681, 3
      %v1429 = vperm.slane %v682, 3
      %v1430 = vmul.f32 %v1396, %v1428
      %v1431 = vmul.f32 %v1412, %v1429
      %v1432 = vmul.f32 %v1397, %v1428
      %v1433 = vmul.f32 %v1413, %v1429
      %v1434 = vmul.f32 %v1398, %v1428
      %v1435 = vmul.f32 %v1414, %v1429
      %v1436 = vmul.f32 %v1399, %v1428
      %v1437 = vmul.f32 %v1415, %v1429
      %v1438 = vmul.f32 %v1400, %v1428
      %v1439 = vmul.f32 %v1416, %v1429
      %v1440 = vmul.f32 %v1401, %v1428
      %v1441 = vmul.f32 %v1417, %v1429
      %v1442 = vmul.f32 %v1402, %v1428
      %v1443 = vmul.f32 %v1418, %v1429
      %v1444 = vmul.f32 %v1403, %v1428
      %v1445 = vmul.f32 %v1419, %v1429
      %v1446 = vmul.f32 %v1404, %v1428
      %v1447 = vmul.f32 %v1420, %v1429
      %v1448 = vmul.f32 %v1405, %v1428
      %v1449 = vmul.f32 %v1421, %v1429
      %v1450 = vmul.f32 %v1406, %v1428
      %v1451 = vmul.f32 %v1422, %v1429
      %v1452 = vmul.f32 %v1407, %v1428
      %v1453 = vmul.f32 %v1423, %v1429
      %v1454 = vmul.f32 %v1408, %v1428
      %v1455 = vmul.f32 %v1424, %v1429
      %v1456 = vmul.f32 %v1409, %v1428
      %v1457 = vmul.f32 %v1425, %v1429
      %v1458 = vmul.f32 %v1410, %v1428
      %v1459 = vmul.f32 %v1426, %v1429
      %v1460 = vmul.f32 %v1411, %v1428
      %v1461 = vmul.f32 %v1427, %v1429
      %1462 = vset.pattern.permute.xlu0 6
      %1463 = vperm.xlu0 %1462, %v683
      %v1464 = vpop.permute.xlu0 %1463
      %1466 = vset.pattern.permute.xlu0 6
      %1467 = vperm.xlu0 %1466, %v684
      %v1468 = vpop.permute.xlu0 %1467
      %1470 = vset.pattern.permute.xlu0 6
      %1471 = vperm.xlu0 %1470, %v685
      %v1472 = vpop.permute.xlu0 %1471
      %1474 = vset.pattern.permute.xlu0 6
      %1475 = vperm.xlu0 %1474, %v686
      %v1476 = vpop.permute.xlu0 %1475
      %1478 = vset.pattern.permute.xlu0 6
      %1479 = vperm.xlu0 %1478, %v687
      %v1480 = vpop.permute.xlu0 %1479
      %1482 = vset.pattern.permute.xlu0 6
      %1483 = vperm.xlu0 %1482, %v688
      %v1484 = vpop.permute.xlu0 %1483
      %1486 = vset.pattern.permute.xlu0 6
      %1487 = vperm.xlu0 %1486, %v689
      %v1488 = vpop.permute.xlu0 %1487
      %1490 = vset.pattern.permute.xlu0 6
      %1491 = vperm.xlu0 %1490, %v690
      %v1492 = vpop.permute.xlu0 %1491
      %1494 = vset.pattern.permute.xlu0 6
      %1495 = vperm.xlu0 %1494, %v691
      %v1496 = vpop.permute.xlu0 %1495
      %1498 = vset.pattern.permute.xlu0 6
      %1499 = vperm.xlu0 %1498, %v692
      %v1500 = vpop.permute.xlu0 %1499
      %1502 = vset.pattern.permute.xlu0 6
      %1503 = vperm.xlu0 %1502, %v693
      %v1504 = vpop.permute.xlu0 %1503
      %1506 = vset.pattern.permute.xlu0 6
      %1507 = vperm.xlu0 %1506, %v694
      %v1508 = vpop.permute.xlu0 %1507
      %1510 = vset.pattern.permute.xlu0 6
      %1511 = vperm.xlu0 %1510, %v695
      %v1512 = vpop.permute.xlu0 %1511
      %1514 = vset.pattern.permute.xlu0 6
      %1515 = vperm.xlu0 %1514, %v696
      %v1516 = vpop.permute.xlu0 %1515
      %1518 = vset.pattern.permute.xlu0 6
      %1519 = vperm.xlu0 %1518, %v697
      %v1520 = vpop.permute.xlu0 %1519
      %1522 = vset.pattern.permute.xlu0 6
      %1523 = vperm.xlu0 %1522, %v698
      %v1524 = vpop.permute.xlu0 %1523
      %v1526 = vmul.f32 %v1430, %v1464
      %v1527 = vmul.f32 %v1431, %v1464
      %v1528 = vmul.f32 %v1432, %v1468
      %v1529 = vmul.f32 %v1433, %v1468
      %v1530 = vmul.f32 %v1434, %v1472
      %v1531 = vmul.f32 %v1435, %v1472
      %v1532 = vmul.f32 %v1436, %v1476
      %v1533 = vmul.f32 %v1437, %v1476
      %v1534 = vmul.f32 %v1438, %v1480
      %v1535 = vmul.f32 %v1439, %v1480
      %v1536 = vmul.f32 %v1440, %v1484
      %v1537 = vmul.f32 %v1441, %v1484
      %v1538 = vmul.f32 %v1442, %v1488
      %v1539 = vmul.f32 %v1443, %v1488
      %v1540 = vmul.f32 %v1444, %v1492
      %v1541 = vmul.f32 %v1445, %v1492
      %v1542 = vmul.f32 %v1446, %v1496
      %v1543 = vmul.f32 %v1447, %v1496
      %v1544 = vmul.f32 %v1448, %v1500
      %v1545 = vmul.f32 %v1449, %v1500
      %v1546 = vmul.f32 %v1450, %v1504
      %v1547 = vmul.f32 %v1451, %v1504
      %v1548 = vmul.f32 %v1452, %v1508
      %v1549 = vmul.f32 %v1453, %v1508
      %v1550 = vmul.f32 %v1454, %v1512
      %v1551 = vmul.f32 %v1455, %v1512
      %v1552 = vmul.f32 %v1456, %v1516
      %v1553 = vmul.f32 %v1457, %v1516
      %v1554 = vmul.f32 %v1458, %v1520
      %v1555 = vmul.f32 %v1459, %v1520
      %v1556 = vmul.f32 %v1460, %v1524
      %v1557 = vmul.f32 %v1461, %v1524
      %v1558 = vadd.f32 %v1299, %v1526
      %v1559 = vadd.f32 %v1300, %v1527
      %v1560 = vadd.f32 %v1301, %v1528
      %v1561 = vadd.f32 %v1302, %v1529
      %v1562 = vadd.f32 %v1303, %v1530
      %v1563 = vadd.f32 %v1304, %v1531
      %v1564 = vadd.f32 %v1305, %v1532
      %v1565 = vadd.f32 %v1306, %v1533
      %v1566 = vadd.f32 %v1307, %v1534
      %v1567 = vadd.f32 %v1308, %v1535
      %v1568 = vadd.f32 %v1309, %v1536
      %v1569 = vadd.f32 %v1310, %v1537
      %v1570 = vadd.f32 %v1311, %v1538
      %v1571 = vadd.f32 %v1312, %v1539
      %v1572 = vadd.f32 %v1313, %v1540
      %v1573 = vadd.f32 %v1314, %v1541
      %v1574 = vadd.f32 %v1315, %v1542
      %v1575 = vadd.f32 %v1316, %v1543
      %v1576 = vadd.f32 %v1317, %v1544
      %v1577 = vadd.f32 %v1318, %v1545
      %v1578 = vadd.f32 %v1319, %v1546
      %v1579 = vadd.f32 %v1320, %v1547
      %v1580 = vadd.f32 %v1321, %v1548
      %v1581 = vadd.f32 %v1322, %v1549
      %v1582 = vadd.f32 %v1323, %v1550
      %v1583 = vadd.f32 %v1324, %v1551
      %v1584 = vadd.f32 %v1325, %v1552
      %v1585 = vadd.f32 %v1326, %v1553
      %v1586 = vadd.f32 %v1327, %v1554
      %v1587 = vadd.f32 %v1328, %v1555
      %v1588 = vadd.f32 %v1329, %v1556
      %v1589 = vadd.f32 %v1330, %v1557
      %1590 = vrot.lane.b32.xlu0 %v649, 112
      %v1591 = vpop.permute.xlu0 %1590
      %1592 = vrot.lane.b32.xlu0 %v651, 112
      %v1593 = vpop.permute.xlu0 %1592
      %1594 = vrot.lane.b32.xlu0 %v653, 112
      %v1595 = vpop.permute.xlu0 %1594
      %1596 = vrot.lane.b32.xlu0 %v655, 112
      %v1597 = vpop.permute.xlu0 %1596
      %1598 = vrot.lane.b32.xlu0 %v657, 112
      %v1599 = vpop.permute.xlu0 %1598
      %1600 = vrot.lane.b32.xlu0 %v659, 112
      %v1601 = vpop.permute.xlu0 %1600
      %1602 = vrot.lane.b32.xlu0 %v661, 112
      %v1603 = vpop.permute.xlu0 %1602
      %1604 = vrot.lane.b32.xlu0 %v663, 112
      %v1605 = vpop.permute.xlu0 %1604
      %1606 = vrot.lane.b32.xlu0 %v665, 112
      %v1607 = vpop.permute.xlu0 %1606
      %1608 = vrot.lane.b32.xlu0 %v667, 112
      %v1609 = vpop.permute.xlu0 %1608
      %1610 = vrot.lane.b32.xlu0 %v669, 112
      %v1611 = vpop.permute.xlu0 %1610
      %1612 = vrot.lane.b32.xlu0 %v671, 112
      %v1613 = vpop.permute.xlu0 %1612
      %1614 = vrot.lane.b32.xlu0 %v673, 112
      %v1615 = vpop.permute.xlu0 %1614
      %1616 = vrot.lane.b32.xlu0 %v675, 112
      %v1617 = vpop.permute.xlu0 %1616
      %1618 = vrot.lane.b32.xlu0 %v677, 112
      %v1619 = vpop.permute.xlu0 %1618
      %1620 = vrot.lane.b32.xlu0 %v679, 112
      %v1621 = vpop.permute.xlu0 %1620
      %1622 = vrot.lane.b32.xlu0 %v650, 112
      %v1623 = vpop.permute.xlu0 %1622
      %1624 = vrot.lane.b32.xlu0 %v652, 112
      %v1625 = vpop.permute.xlu0 %1624
      %1626 = vrot.lane.b32.xlu0 %v654, 112
      %v1627 = vpop.permute.xlu0 %1626
      %1628 = vrot.lane.b32.xlu0 %v656, 112
      %v1629 = vpop.permute.xlu0 %1628
      %1630 = vrot.lane.b32.xlu0 %v658, 112
      %v1631 = vpop.permute.xlu0 %1630
      %1632 = vrot.lane.b32.xlu0 %v660, 112
      %v1633 = vpop.permute.xlu0 %1632
      %1634 = vrot.lane.b32.xlu0 %v662, 112
      %v1635 = vpop.permute.xlu0 %1634
      %1636 = vrot.lane.b32.xlu0 %v664, 112
      %v1637 = vpop.permute.xlu0 %1636
      %1638 = vrot.lane.b32.xlu0 %v666, 112
      %v1639 = vpop.permute.xlu0 %1638
      %1640 = vrot.lane.b32.xlu0 %v668, 112
      %v1641 = vpop.permute.xlu0 %1640
      %1642 = vrot.lane.b32.xlu0 %v670, 112
      %v1643 = vpop.permute.xlu0 %1642
      %1644 = vrot.lane.b32.xlu0 %v672, 112
      %v1645 = vpop.permute.xlu0 %1644
      %1646 = vrot.lane.b32.xlu0 %v674, 112
      %v1647 = vpop.permute.xlu0 %1646
      %1648 = vrot.lane.b32.xlu0 %v676, 112
      %v1649 = vpop.permute.xlu0 %1648
      %1650 = vrot.lane.b32.xlu0 %v678, 112
      %v1651 = vpop.permute.xlu0 %1650
      %1652 = vrot.lane.b32.xlu0 %v680, 112
      %v1653 = vpop.permute.xlu0 %1652
      %v1654 = vsel %vm1395, %v1591, %v1623
      %v1655 = vsel %vm1395, %v1593, %v1625
      %v1656 = vsel %vm1395, %v1595, %v1627
      %v1657 = vsel %vm1395, %v1597, %v1629
      %v1658 = vsel %vm1395, %v1599, %v1631
      %v1659 = vsel %vm1395, %v1601, %v1633
      %v1660 = vsel %vm1395, %v1603, %v1635
      %v1661 = vsel %vm1395, %v1605, %v1637
      %v1662 = vsel %vm1395, %v1607, %v1639
      %v1663 = vsel %vm1395, %v1609, %v1641
      %v1664 = vsel %vm1395, %v1611, %v1643
      %v1665 = vsel %vm1395, %v1613, %v1645
      %v1666 = vsel %vm1395, %v1615, %v1647
      %v1667 = vsel %vm1395, %v1617, %v1649
      %v1668 = vsel %vm1395, %v1619, %v1651
      %v1669 = vsel %vm1395, %v1621, %v1653
      %v1670 = vsel %vm1395, %v1623, %v1591
      %v1671 = vsel %vm1395, %v1625, %v1593
      %v1672 = vsel %vm1395, %v1627, %v1595
      %v1673 = vsel %vm1395, %v1629, %v1597
      %v1674 = vsel %vm1395, %v1631, %v1599
      %v1675 = vsel %vm1395, %v1633, %v1601
      %v1676 = vsel %vm1395, %v1635, %v1603
      %v1677 = vsel %vm1395, %v1637, %v1605
      %v1678 = vsel %vm1395, %v1639, %v1607
      %v1679 = vsel %vm1395, %v1641, %v1609
      %v1680 = vsel %vm1395, %v1643, %v1611
      %v1681 = vsel %vm1395, %v1645, %v1613
      %v1682 = vsel %vm1395, %v1647, %v1615
      %v1683 = vsel %vm1395, %v1649, %v1617
      %v1684 = vsel %vm1395, %v1651, %v1619
      %v1685 = vsel %vm1395, %v1653, %v1621
      %v1686 = vmul.f32 %v1654, %v1428
      %v1687 = vmul.f32 %v1670, %v1429
      %v1688 = vmul.f32 %v1655, %v1428
      %v1689 = vmul.f32 %v1671, %v1429
      %v1690 = vmul.f32 %v1656, %v1428
      %v1691 = vmul.f32 %v1672, %v1429
      %v1692 = vmul.f32 %v1657, %v1428
      %v1693 = vmul.f32 %v1673, %v1429
      %v1694 = vmul.f32 %v1658, %v1428
      %v1695 = vmul.f32 %v1674, %v1429
      %v1696 = vmul.f32 %v1659, %v1428
      %v1697 = vmul.f32 %v1675, %v1429
      %v1698 = vmul.f32 %v1660, %v1428
      %v1699 = vmul.f32 %v1676, %v1429
      %v1700 = vmul.f32 %v1661, %v1428
      %v1701 = vmul.f32 %v1677, %v1429
      %v1702 = vmul.f32 %v1662, %v1428
      %v1703 = vmul.f32 %v1678, %v1429
      %v1704 = vmul.f32 %v1663, %v1428
      %v1705 = vmul.f32 %v1679, %v1429
      %v1706 = vmul.f32 %v1664, %v1428
      %v1707 = vmul.f32 %v1680, %v1429
      %v1708 = vmul.f32 %v1665, %v1428
      %v1709 = vmul.f32 %v1681, %v1429
      %v1710 = vmul.f32 %v1666, %v1428
      %v1711 = vmul.f32 %v1682, %v1429
      %v1712 = vmul.f32 %v1667, %v1428
      %v1713 = vmul.f32 %v1683, %v1429
      %v1714 = vmul.f32 %v1668, %v1428
      %v1715 = vmul.f32 %v1684, %v1429
      %v1716 = vmul.f32 %v1669, %v1428
      %v1717 = vmul.f32 %v1685, %v1429
      %1718 = vset.pattern.permute.xlu0 7
      %1719 = vperm.xlu0 %1718, %v683
      %v1720 = vpop.permute.xlu0 %1719
      %1722 = vset.pattern.permute.xlu0 7
      %1723 = vperm.xlu0 %1722, %v684
      %v1724 = vpop.permute.xlu0 %1723
      %1726 = vset.pattern.permute.xlu0 7
      %1727 = vperm.xlu0 %1726, %v685
      %v1728 = vpop.permute.xlu0 %1727
      %1730 = vset.pattern.permute.xlu0 7
      %1731 = vperm.xlu0 %1730, %v686
      %v1732 = vpop.permute.xlu0 %1731
      %1734 = vset.pattern.permute.xlu0 7
      %1735 = vperm.xlu0 %1734, %v687
      %v1736 = vpop.permute.xlu0 %1735
      %1738 = vset.pattern.permute.xlu0 7
      %1739 = vperm.xlu0 %1738, %v688
      %v1740 = vpop.permute.xlu0 %1739
      %1742 = vset.pattern.permute.xlu0 7
      %1743 = vperm.xlu0 %1742, %v689
      %v1744 = vpop.permute.xlu0 %1743
      %1746 = vset.pattern.permute.xlu0 7
      %1747 = vperm.xlu0 %1746, %v690
      %v1748 = vpop.permute.xlu0 %1747
      %1750 = vset.pattern.permute.xlu0 7
      %1751 = vperm.xlu0 %1750, %v691
      %v1752 = vpop.permute.xlu0 %1751
      %1754 = vset.pattern.permute.xlu0 7
      %1755 = vperm.xlu0 %1754, %v692
      %v1756 = vpop.permute.xlu0 %1755
      %1758 = vset.pattern.permute.xlu0 7
      %1759 = vperm.xlu0 %1758, %v693
      %v1760 = vpop.permute.xlu0 %1759
      %1762 = vset.pattern.permute.xlu0 7
      %1763 = vperm.xlu0 %1762, %v694
      %v1764 = vpop.permute.xlu0 %1763
      %1766 = vset.pattern.permute.xlu0 7
      %1767 = vperm.xlu0 %1766, %v695
      %v1768 = vpop.permute.xlu0 %1767
      %1770 = vset.pattern.permute.xlu0 7
      %1771 = vperm.xlu0 %1770, %v696
      %v1772 = vpop.permute.xlu0 %1771
      %1774 = vset.pattern.permute.xlu0 7
      %1775 = vperm.xlu0 %1774, %v697
      %v1776 = vpop.permute.xlu0 %1775
      %1778 = vset.pattern.permute.xlu0 7
      %1779 = vperm.xlu0 %1778, %v698
      %v1780 = vpop.permute.xlu0 %1779
      %v1782 = vmul.f32 %v1686, %v1720
      %v1783 = vmul.f32 %v1687, %v1720
      %v1784 = vmul.f32 %v1688, %v1724
      %v1785 = vmul.f32 %v1689, %v1724
      %v1786 = vmul.f32 %v1690, %v1728
      %v1787 = vmul.f32 %v1691, %v1728
      %v1788 = vmul.f32 %v1692, %v1732
      %v1789 = vmul.f32 %v1693, %v1732
      %v1790 = vmul.f32 %v1694, %v1736
      %v1791 = vmul.f32 %v1695, %v1736
      %v1792 = vmul.f32 %v1696, %v1740
      %v1793 = vmul.f32 %v1697, %v1740
      %v1794 = vmul.f32 %v1698, %v1744
      %v1795 = vmul.f32 %v1699, %v1744
      %v1796 = vmul.f32 %v1700, %v1748
      %v1797 = vmul.f32 %v1701, %v1748
      %v1798 = vmul.f32 %v1702, %v1752
      %v1799 = vmul.f32 %v1703, %v1752
      %v1800 = vmul.f32 %v1704, %v1756
      %v1801 = vmul.f32 %v1705, %v1756
      %v1802 = vmul.f32 %v1706, %v1760
      %v1803 = vmul.f32 %v1707, %v1760
      %v1804 = vmul.f32 %v1708, %v1764
      %v1805 = vmul.f32 %v1709, %v1764
      %v1806 = vmul.f32 %v1710, %v1768
      %v1807 = vmul.f32 %v1711, %v1768
      %v1808 = vmul.f32 %v1712, %v1772
      %v1809 = vmul.f32 %v1713, %v1772
      %v1810 = vmul.f32 %v1714, %v1776
      %v1811 = vmul.f32 %v1715, %v1776
      %v1812 = vmul.f32 %v1716, %v1780
      %v1813 = vmul.f32 %v1717, %v1780
      %v1814 = vadd.f32 %v1558, %v1782
      %v1815 = vadd.f32 %v1559, %v1783
      %v1816 = vadd.f32 %v1560, %v1784
      %v1817 = vadd.f32 %v1561, %v1785
      %v1818 = vadd.f32 %v1562, %v1786
      %v1819 = vadd.f32 %v1563, %v1787
      %v1820 = vadd.f32 %v1564, %v1788
      %v1821 = vadd.f32 %v1565, %v1789
      %v1822 = vadd.f32 %v1566, %v1790
      %v1823 = vadd.f32 %v1567, %v1791
      %v1824 = vadd.f32 %v1568, %v1792
      %v1825 = vadd.f32 %v1569, %v1793
      %v1826 = vadd.f32 %v1570, %v1794
      %v1827 = vadd.f32 %v1571, %v1795
      %v1828 = vadd.f32 %v1572, %v1796
      %v1829 = vadd.f32 %v1573, %v1797
      %v1830 = vadd.f32 %v1574, %v1798
      %v1831 = vadd.f32 %v1575, %v1799
      %v1832 = vadd.f32 %v1576, %v1800
      %v1833 = vadd.f32 %v1577, %v1801
      %v1834 = vadd.f32 %v1578, %v1802
      %v1835 = vadd.f32 %v1579, %v1803
      %v1836 = vadd.f32 %v1580, %v1804
      %v1837 = vadd.f32 %v1581, %v1805
      %v1838 = vadd.f32 %v1582, %v1806
      %v1839 = vadd.f32 %v1583, %v1807
      %v1840 = vadd.f32 %v1584, %v1808
      %v1841 = vadd.f32 %v1585, %v1809
      %v1842 = vadd.f32 %v1586, %v1810
      %v1843 = vadd.f32 %v1587, %v1811
      %v1844 = vadd.f32 %v1588, %v1812
      %v1845 = vadd.f32 %v1589, %v1813
      %1846 = vrot.lane.b32.xlu0 %v800, 112
      %v1847 = vpop.permute.xlu0 %1846
      %1848 = vrot.lane.b32.xlu0 %v802, 112
      %v1849 = vpop.permute.xlu0 %1848
      %1850 = vrot.lane.b32.xlu0 %v804, 112
      %v1851 = vpop.permute.xlu0 %1850
      %1852 = vrot.lane.b32.xlu0 %v806, 112
      %v1853 = vpop.permute.xlu0 %1852
      %1854 = vrot.lane.b32.xlu0 %v808, 112
      %v1855 = vpop.permute.xlu0 %1854
      %1856 = vrot.lane.b32.xlu0 %v810, 112
      %v1857 = vpop.permute.xlu0 %1856
      %1858 = vrot.lane.b32.xlu0 %v812, 112
      %v1859 = vpop.permute.xlu0 %1858
      %1860 = vrot.lane.b32.xlu0 %v814, 112
      %v1861 = vpop.permute.xlu0 %1860
      %1862 = vrot.lane.b32.xlu0 %v816, 112
      %v1863 = vpop.permute.xlu0 %1862
      %1864 = vrot.lane.b32.xlu0 %v818, 112
      %v1865 = vpop.permute.xlu0 %1864
      %1866 = vrot.lane.b32.xlu0 %v820, 112
      %v1867 = vpop.permute.xlu0 %1866
      %1868 = vrot.lane.b32.xlu0 %v822, 112
      %v1869 = vpop.permute.xlu0 %1868
      %1870 = vrot.lane.b32.xlu0 %v824, 112
      %v1871 = vpop.permute.xlu0 %1870
      %1872 = vrot.lane.b32.xlu0 %v826, 112
      %v1873 = vpop.permute.xlu0 %1872
      %1874 = vrot.lane.b32.xlu0 %v828, 112
      %v1875 = vpop.permute.xlu0 %1874
      %1876 = vrot.lane.b32.xlu0 %v830, 112
      %v1877 = vpop.permute.xlu0 %1876
      %1878 = vrot.lane.b32.xlu0 %v801, 112
      %v1879 = vpop.permute.xlu0 %1878
      %1880 = vrot.lane.b32.xlu0 %v803, 112
      %v1881 = vpop.permute.xlu0 %1880
      %1882 = vrot.lane.b32.xlu0 %v805, 112
      %v1883 = vpop.permute.xlu0 %1882
      %1884 = vrot.lane.b32.xlu0 %v807, 112
      %v1885 = vpop.permute.xlu0 %1884
      %1886 = vrot.lane.b32.xlu0 %v809, 112
      %v1887 = vpop.permute.xlu0 %1886
      %1888 = vrot.lane.b32.xlu0 %v811, 112
      %v1889 = vpop.permute.xlu0 %1888
      %1890 = vrot.lane.b32.xlu0 %v813, 112
      %v1891 = vpop.permute.xlu0 %1890
      %1892 = vrot.lane.b32.xlu0 %v815, 112
      %v1893 = vpop.permute.xlu0 %1892
      %1894 = vrot.lane.b32.xlu0 %v817, 112
      %v1895 = vpop.permute.xlu0 %1894
      %1896 = vrot.lane.b32.xlu0 %v819, 112
      %v1897 = vpop.permute.xlu0 %1896
      %1898 = vrot.lane.b32.xlu0 %v821, 112
      %v1899 = vpop.permute.xlu0 %1898
      %1900 = vrot.lane.b32.xlu0 %v823, 112
      %v1901 = vpop.permute.xlu0 %1900
      %1902 = vrot.lane.b32.xlu0 %v825, 112
      %v1903 = vpop.permute.xlu0 %1902
      %1904 = vrot.lane.b32.xlu0 %v827, 112
      %v1905 = vpop.permute.xlu0 %1904
      %1906 = vrot.lane.b32.xlu0 %v829, 112
      %v1907 = vpop.permute.xlu0 %1906
      %1908 = vrot.lane.b32.xlu0 %v831, 112
      %v1909 = vpop.permute.xlu0 %1908
      %v1910 = vsel %vm1395, %v1847, %v1879
      %v1911 = vsel %vm1395, %v1849, %v1881
      %v1912 = vsel %vm1395, %v1851, %v1883
      %v1913 = vsel %vm1395, %v1853, %v1885
      %v1914 = vsel %vm1395, %v1855, %v1887
      %v1915 = vsel %vm1395, %v1857, %v1889
      %v1916 = vsel %vm1395, %v1859, %v1891
      %v1917 = vsel %vm1395, %v1861, %v1893
      %v1918 = vsel %vm1395, %v1863, %v1895
      %v1919 = vsel %vm1395, %v1865, %v1897
      %v1920 = vsel %vm1395, %v1867, %v1899
      %v1921 = vsel %vm1395, %v1869, %v1901
      %v1922 = vsel %vm1395, %v1871, %v1903
      %v1923 = vsel %vm1395, %v1873, %v1905
      %v1924 = vsel %vm1395, %v1875, %v1907
      %v1925 = vsel %vm1395, %v1877, %v1909
      %v1926 = vsel %vm1395, %v1879, %v1847
      %v1927 = vsel %vm1395, %v1881, %v1849
      %v1928 = vsel %vm1395, %v1883, %v1851
      %v1929 = vsel %vm1395, %v1885, %v1853
      %v1930 = vsel %vm1395, %v1887, %v1855
      %v1931 = vsel %vm1395, %v1889, %v1857
      %v1932 = vsel %vm1395, %v1891, %v1859
      %v1933 = vsel %vm1395, %v1893, %v1861
      %v1934 = vsel %vm1395, %v1895, %v1863
      %v1935 = vsel %vm1395, %v1897, %v1865
      %v1936 = vsel %vm1395, %v1899, %v1867
      %v1937 = vsel %vm1395, %v1901, %v1869
      %v1938 = vsel %vm1395, %v1903, %v1871
      %v1939 = vsel %vm1395, %v1905, %v1873
      %v1940 = vsel %vm1395, %v1907, %v1875
      %v1941 = vsel %vm1395, %v1909, %v1877
      %v1942 = vmul.f32 %v1910, %v1428
      %v1943 = vmul.f32 %v1926, %v1429
      %v1944 = vmul.f32 %v1911, %v1428
      %v1945 = vmul.f32 %v1927, %v1429
      %v1946 = vmul.f32 %v1912, %v1428
      %v1947 = vmul.f32 %v1928, %v1429
      %v1948 = vmul.f32 %v1913, %v1428
      %v1949 = vmul.f32 %v1929, %v1429
      %v1950 = vmul.f32 %v1914, %v1428
      %v1951 = vmul.f32 %v1930, %v1429
      %v1952 = vmul.f32 %v1915, %v1428
      %v1953 = vmul.f32 %v1931, %v1429
      %v1954 = vmul.f32 %v1916, %v1428
      %v1955 = vmul.f32 %v1932, %v1429
      %v1956 = vmul.f32 %v1917, %v1428
      %v1957 = vmul.f32 %v1933, %v1429
      %v1958 = vmul.f32 %v1918, %v1428
      %v1959 = vmul.f32 %v1934, %v1429
      %v1960 = vmul.f32 %v1919, %v1428
      %v1961 = vmul.f32 %v1935, %v1429
      %v1962 = vmul.f32 %v1920, %v1428
      %v1963 = vmul.f32 %v1936, %v1429
      %v1964 = vmul.f32 %v1921, %v1428
      %v1965 = vmul.f32 %v1937, %v1429
      %v1966 = vmul.f32 %v1922, %v1428
      %v1967 = vmul.f32 %v1938, %v1429
      %v1968 = vmul.f32 %v1923, %v1428
      %v1969 = vmul.f32 %v1939, %v1429
      %v1970 = vmul.f32 %v1924, %v1428
      %v1971 = vmul.f32 %v1940, %v1429
      %v1972 = vmul.f32 %v1925, %v1428
      %v1973 = vmul.f32 %v1941, %v1429
      %1974 = vset.pattern.permute.xlu0 8
      %1975 = vperm.xlu0 %1974, %v683
      %v1976 = vpop.permute.xlu0 %1975
      %1978 = vset.pattern.permute.xlu0 8
      %1979 = vperm.xlu0 %1978, %v684
      %v1980 = vpop.permute.xlu0 %1979
      %1982 = vset.pattern.permute.xlu0 8
      %1983 = vperm.xlu0 %1982, %v685
      %v1984 = vpop.permute.xlu0 %1983
      %1986 = vset.pattern.permute.xlu0 8
      %1987 = vperm.xlu0 %1986, %v686
      %v1988 = vpop.permute.xlu0 %1987
      %1990 = vset.pattern.permute.xlu0 8
      %1991 = vperm.xlu0 %1990, %v687
      %v1992 = vpop.permute.xlu0 %1991
      %1994 = vset.pattern.permute.xlu0 8
      %1995 = vperm.xlu0 %1994, %v688
      %v1996 = vpop.permute.xlu0 %1995
      %1998 = vset.pattern.permute.xlu0 8
      %1999 = vperm.xlu0 %1998, %v689
      %v2000 = vpop.permute.xlu0 %1999
      %2002 = vset.pattern.permute.xlu0 8
      %2003 = vperm.xlu0 %2002, %v690
      %v2004 = vpop.permute.xlu0 %2003
      %2006 = vset.pattern.permute.xlu0 8
      %2007 = vperm.xlu0 %2006, %v691
      %v2008 = vpop.permute.xlu0 %2007
      %2010 = vset.pattern.permute.xlu0 8
      %2011 = vperm.xlu0 %2010, %v692
      %v2012 = vpop.permute.xlu0 %2011
      %2014 = vset.pattern.permute.xlu0 8
      %2015 = vperm.xlu0 %2014, %v693
      %v2016 = vpop.permute.xlu0 %2015
      %2018 = vset.pattern.permute.xlu0 8
      %2019 = vperm.xlu0 %2018, %v694
      %v2020 = vpop.permute.xlu0 %2019
      %2022 = vset.pattern.permute.xlu0 8
      %2023 = vperm.xlu0 %2022, %v695
      %v2024 = vpop.permute.xlu0 %2023
      %2026 = vset.pattern.permute.xlu0 8
      %2027 = vperm.xlu0 %2026, %v696
      %v2028 = vpop.permute.xlu0 %2027
      %2030 = vset.pattern.permute.xlu0 8
      %2031 = vperm.xlu0 %2030, %v697
      %v2032 = vpop.permute.xlu0 %2031
      %2034 = vset.pattern.permute.xlu0 8
      %2035 = vperm.xlu0 %2034, %v698
      %v2036 = vpop.permute.xlu0 %2035
      %v2038 = vmul.f32 %v1942, %v1976
      %v2039 = vmul.f32 %v1943, %v1976
      %v2040 = vmul.f32 %v1944, %v1980
      %v2041 = vmul.f32 %v1945, %v1980
      %v2042 = vmul.f32 %v1946, %v1984
      %v2043 = vmul.f32 %v1947, %v1984
      %v2044 = vmul.f32 %v1948, %v1988
      %v2045 = vmul.f32 %v1949, %v1988
      %v2046 = vmul.f32 %v1950, %v1992
      %v2047 = vmul.f32 %v1951, %v1992
      %v2048 = vmul.f32 %v1952, %v1996
      %v2049 = vmul.f32 %v1953, %v1996
      %v2050 = vmul.f32 %v1954, %v2000
      %v2051 = vmul.f32 %v1955, %v2000
      %v2052 = vmul.f32 %v1956, %v2004
      %v2053 = vmul.f32 %v1957, %v2004
      %v2054 = vmul.f32 %v1958, %v2008
      %v2055 = vmul.f32 %v1959, %v2008
      %v2056 = vmul.f32 %v1960, %v2012
      %v2057 = vmul.f32 %v1961, %v2012
      %v2058 = vmul.f32 %v1962, %v2016
      %v2059 = vmul.f32 %v1963, %v2016
      %v2060 = vmul.f32 %v1964, %v2020
      %v2061 = vmul.f32 %v1965, %v2020
      %v2062 = vmul.f32 %v1966, %v2024
      %v2063 = vmul.f32 %v1967, %v2024
      %v2064 = vmul.f32 %v1968, %v2028
      %v2065 = vmul.f32 %v1969, %v2028
      %v2066 = vmul.f32 %v1970, %v2032
      %v2067 = vmul.f32 %v1971, %v2032
      %v2068 = vmul.f32 %v1972, %v2036
      %v2069 = vmul.f32 %v1973, %v2036
      %v2070 = vadd.f32 %v1814, %v2038
      %v2071 = vadd.f32 %v1815, %v2039
      %v2072 = vadd.f32 %v1816, %v2040
      %v2073 = vadd.f32 %v1817, %v2041
      %v2074 = vadd.f32 %v1818, %v2042
      %v2075 = vadd.f32 %v1819, %v2043
      %v2076 = vadd.f32 %v1820, %v2044
      %v2077 = vadd.f32 %v1821, %v2045
      %v2078 = vadd.f32 %v1822, %v2046
      %v2079 = vadd.f32 %v1823, %v2047
      %v2080 = vadd.f32 %v1824, %v2048
      %v2081 = vadd.f32 %v1825, %v2049
      %v2082 = vadd.f32 %v1826, %v2050
      %v2083 = vadd.f32 %v1827, %v2051
      %v2084 = vadd.f32 %v1828, %v2052
      %v2085 = vadd.f32 %v1829, %v2053
      %v2086 = vadd.f32 %v1830, %v2054
      %v2087 = vadd.f32 %v1831, %v2055
      %v2088 = vadd.f32 %v1832, %v2056
      %v2089 = vadd.f32 %v1833, %v2057
      %v2090 = vadd.f32 %v1834, %v2058
      %v2091 = vadd.f32 %v1835, %v2059
      %v2092 = vadd.f32 %v1836, %v2060
      %v2093 = vadd.f32 %v1837, %v2061
      %v2094 = vadd.f32 %v1838, %v2062
      %v2095 = vadd.f32 %v1839, %v2063
      %v2096 = vadd.f32 %v1840, %v2064
      %v2097 = vadd.f32 %v1841, %v2065
      %v2098 = vadd.f32 %v1842, %v2066
      %v2099 = vadd.f32 %v1843, %v2067
      %v2100 = vadd.f32 %v1844, %v2068
      %v2101 = vadd.f32 %v1845, %v2069
      %2102 = vrot.lane.b32.xlu0 %v931, 16
      %v2103 = vpop.permute.xlu0 %2102
      %2104 = vrot.lane.b32.xlu0 %v933, 16
      %v2105 = vpop.permute.xlu0 %2104
      %2106 = vrot.lane.b32.xlu0 %v935, 16
      %v2107 = vpop.permute.xlu0 %2106
      %2108 = vrot.lane.b32.xlu0 %v937, 16
      %v2109 = vpop.permute.xlu0 %2108
      %2110 = vrot.lane.b32.xlu0 %v939, 16
      %v2111 = vpop.permute.xlu0 %2110
      %2112 = vrot.lane.b32.xlu0 %v941, 16
      %v2113 = vpop.permute.xlu0 %2112
      %2114 = vrot.lane.b32.xlu0 %v943, 16
      %v2115 = vpop.permute.xlu0 %2114
      %2116 = vrot.lane.b32.xlu0 %v945, 16
      %v2117 = vpop.permute.xlu0 %2116
      %2118 = vrot.lane.b32.xlu0 %v947, 16
      %v2119 = vpop.permute.xlu0 %2118
      %2120 = vrot.lane.b32.xlu0 %v949, 16
      %v2121 = vpop.permute.xlu0 %2120
      %2122 = vrot.lane.b32.xlu0 %v951, 16
      %v2123 = vpop.permute.xlu0 %2122
      %2124 = vrot.lane.b32.xlu0 %v953, 16
      %v2125 = vpop.permute.xlu0 %2124
      %2126 = vrot.lane.b32.xlu0 %v955, 16
      %v2127 = vpop.permute.xlu0 %2126
      %2128 = vrot.lane.b32.xlu0 %v957, 16
      %v2129 = vpop.permute.xlu0 %2128
      %2130 = vrot.lane.b32.xlu0 %v959, 16
      %v2131 = vpop.permute.xlu0 %2130
      %2132 = vrot.lane.b32.xlu0 %v961, 16
      %v2133 = vpop.permute.xlu0 %2132
      %2134 = vrot.lane.b32.xlu0 %v932, 16
      %v2135 = vpop.permute.xlu0 %2134
      %2136 = vrot.lane.b32.xlu0 %v934, 16
      %v2137 = vpop.permute.xlu0 %2136
      %2138 = vrot.lane.b32.xlu0 %v936, 16
      %v2139 = vpop.permute.xlu0 %2138
      %2140 = vrot.lane.b32.xlu0 %v938, 16
      %v2141 = vpop.permute.xlu0 %2140
      %2142 = vrot.lane.b32.xlu0 %v940, 16
      %v2143 = vpop.permute.xlu0 %2142
      %2144 = vrot.lane.b32.xlu0 %v942, 16
      %v2145 = vpop.permute.xlu0 %2144
      %2146 = vrot.lane.b32.xlu0 %v944, 16
      %v2147 = vpop.permute.xlu0 %2146
      %2148 = vrot.lane.b32.xlu0 %v946, 16
      %v2149 = vpop.permute.xlu0 %2148
      %2150 = vrot.lane.b32.xlu0 %v948, 16
      %v2151 = vpop.permute.xlu0 %2150
      %2152 = vrot.lane.b32.xlu0 %v950, 16
      %v2153 = vpop.permute.xlu0 %2152
      %2154 = vrot.lane.b32.xlu0 %v952, 16
      %v2155 = vpop.permute.xlu0 %2154
      %2156 = vrot.lane.b32.xlu0 %v954, 16
      %v2157 = vpop.permute.xlu0 %2156
      %2158 = vrot.lane.b32.xlu0 %v956, 16
      %v2159 = vpop.permute.xlu0 %2158
      %2160 = vrot.lane.b32.xlu0 %v958, 16
      %v2161 = vpop.permute.xlu0 %2160
      %2162 = vrot.lane.b32.xlu0 %v960, 16
      %v2163 = vpop.permute.xlu0 %2162
      %2164 = vrot.lane.b32.xlu0 %v962, 16
      %v2165 = vpop.permute.xlu0 %2164
      %vm2166 = vcmp.lt.s32.totalorder %v764, 16
      %v2167 = vsel %vm2166, %v2103, %v2135
      %v2168 = vsel %vm2166, %v2105, %v2137
      %v2169 = vsel %vm2166, %v2107, %v2139
      %v2170 = vsel %vm2166, %v2109, %v2141
      %v2171 = vsel %vm2166, %v2111, %v2143
      %v2172 = vsel %vm2166, %v2113, %v2145
      %v2173 = vsel %vm2166, %v2115, %v2147
      %v2174 = vsel %vm2166, %v2117, %v2149
      %v2175 = vsel %vm2166, %v2119, %v2151
      %v2176 = vsel %vm2166, %v2121, %v2153
      %v2177 = vsel %vm2166, %v2123, %v2155
      %v2178 = vsel %vm2166, %v2125, %v2157
      %v2179 = vsel %vm2166, %v2127, %v2159
      %v2180 = vsel %vm2166, %v2129, %v2161
      %v2181 = vsel %vm2166, %v2131, %v2163
      %v2182 = vsel %vm2166, %v2133, %v2165
      %v2183 = vsel %vm2166, %v2135, %v2103
      %v2184 = vsel %vm2166, %v2137, %v2105
      %v2185 = vsel %vm2166, %v2139, %v2107
      %v2186 = vsel %vm2166, %v2141, %v2109
      %v2187 = vsel %vm2166, %v2143, %v2111
      %v2188 = vsel %vm2166, %v2145, %v2113
      %v2189 = vsel %vm2166, %v2147, %v2115
      %v2190 = vsel %vm2166, %v2149, %v2117
      %v2191 = vsel %vm2166, %v2151, %v2119
      %v2192 = vsel %vm2166, %v2153, %v2121
      %v2193 = vsel %vm2166, %v2155, %v2123
      %v2194 = vsel %vm2166, %v2157, %v2125
      %v2195 = vsel %vm2166, %v2159, %v2127
      %v2196 = vsel %vm2166, %v2161, %v2129
      %v2197 = vsel %vm2166, %v2163, %v2131
      %v2198 = vsel %vm2166, %v2165, %v2133
      %v2199 = vperm.slane %v681, 2
      %v2200 = vperm.slane %v682, 2
      %v2201 = vmul.f32 %v2183, %v2199
      %v2202 = vmul.f32 %v2167, %v2200
      %v2203 = vmul.f32 %v2184, %v2199
      %v2204 = vmul.f32 %v2168, %v2200
      %v2205 = vmul.f32 %v2185, %v2199
      %v2206 = vmul.f32 %v2169, %v2200
      %v2207 = vmul.f32 %v2186, %v2199
      %v2208 = vmul.f32 %v2170, %v2200
      %v2209 = vmul.f32 %v2187, %v2199
      %v2210 = vmul.f32 %v2171, %v2200
      %v2211 = vmul.f32 %v2188, %v2199
      %v2212 = vmul.f32 %v2172, %v2200
      %v2213 = vmul.f32 %v2189, %v2199
      %v2214 = vmul.f32 %v2173, %v2200
      %v2215 = vmul.f32 %v2190, %v2199
      %v2216 = vmul.f32 %v2174, %v2200
      %v2217 = vmul.f32 %v2191, %v2199
      %v2218 = vmul.f32 %v2175, %v2200
      %v2219 = vmul.f32 %v2192, %v2199
      %v2220 = vmul.f32 %v2176, %v2200
      %v2221 = vmul.f32 %v2193, %v2199
      %v2222 = vmul.f32 %v2177, %v2200
      %v2223 = vmul.f32 %v2194, %v2199
      %v2224 = vmul.f32 %v2178, %v2200
      %v2225 = vmul.f32 %v2195, %v2199
      %v2226 = vmul.f32 %v2179, %v2200
      %v2227 = vmul.f32 %v2196, %v2199
      %v2228 = vmul.f32 %v2180, %v2200
      %v2229 = vmul.f32 %v2197, %v2199
      %v2230 = vmul.f32 %v2181, %v2200
      %v2231 = vmul.f32 %v2198, %v2199
      %v2232 = vmul.f32 %v2182, %v2200
      %2233 = vset.pattern.permute.xlu0 0
      %2234 = vperm.xlu0 %2233, %v683
      %v2235 = vpop.permute.xlu0 %2234
      %2237 = vset.pattern.permute.xlu0 0
      %2238 = vperm.xlu0 %2237, %v684
      %v2239 = vpop.permute.xlu0 %2238
      %2241 = vset.pattern.permute.xlu0 0
      %2242 = vperm.xlu0 %2241, %v685
      %v2243 = vpop.permute.xlu0 %2242
      %2245 = vset.pattern.permute.xlu0 0
      %2246 = vperm.xlu0 %2245, %v686
      %v2247 = vpop.permute.xlu0 %2246
      %2249 = vset.pattern.permute.xlu0 0
      %2250 = vperm.xlu0 %2249, %v687
      %v2251 = vpop.permute.xlu0 %2250
      %2253 = vset.pattern.permute.xlu0 0
      %2254 = vperm.xlu0 %2253, %v688
      %v2255 = vpop.permute.xlu0 %2254
      %2257 = vset.pattern.permute.xlu0 0
      %2258 = vperm.xlu0 %2257, %v689
      %v2259 = vpop.permute.xlu0 %2258
      %2261 = vset.pattern.permute.xlu0 0
      %2262 = vperm.xlu0 %2261, %v690
      %v2263 = vpop.permute.xlu0 %2262
      %2265 = vset.pattern.permute.xlu0 0
      %2266 = vperm.xlu0 %2265, %v691
      %v2267 = vpop.permute.xlu0 %2266
      %2269 = vset.pattern.permute.xlu0 0
      %2270 = vperm.xlu0 %2269, %v692
      %v2271 = vpop.permute.xlu0 %2270
      %2273 = vset.pattern.permute.xlu0 0
      %2274 = vperm.xlu0 %2273, %v693
      %v2275 = vpop.permute.xlu0 %2274
      %2277 = vset.pattern.permute.xlu0 0
      %2278 = vperm.xlu0 %2277, %v694
      %v2279 = vpop.permute.xlu0 %2278
      %2281 = vset.pattern.permute.xlu0 0
      %2282 = vperm.xlu0 %2281, %v695
      %v2283 = vpop.permute.xlu0 %2282
      %2285 = vset.pattern.permute.xlu0 0
      %2286 = vperm.xlu0 %2285, %v696
      %v2287 = vpop.permute.xlu0 %2286
      %2289 = vset.pattern.permute.xlu0 0
      %2290 = vperm.xlu0 %2289, %v697
      %v2291 = vpop.permute.xlu0 %2290
      %2293 = vset.pattern.permute.xlu0 0
      %2294 = vperm.xlu0 %2293, %v698
      %v2295 = vpop.permute.xlu0 %2294
      %v2297 = vmul.f32 %v2201, %v2235
      %v2298 = vmul.f32 %v2202, %v2235
      %v2299 = vmul.f32 %v2203, %v2239
      %v2300 = vmul.f32 %v2204, %v2239
      %v2301 = vmul.f32 %v2205, %v2243
      %v2302 = vmul.f32 %v2206, %v2243
      %v2303 = vmul.f32 %v2207, %v2247
      %v2304 = vmul.f32 %v2208, %v2247
      %v2305 = vmul.f32 %v2209, %v2251
      %v2306 = vmul.f32 %v2210, %v2251
      %v2307 = vmul.f32 %v2211, %v2255
      %v2308 = vmul.f32 %v2212, %v2255
      %v2309 = vmul.f32 %v2213, %v2259
      %v2310 = vmul.f32 %v2214, %v2259
      %v2311 = vmul.f32 %v2215, %v2263
      %v2312 = vmul.f32 %v2216, %v2263
      %v2313 = vmul.f32 %v2217, %v2267
      %v2314 = vmul.f32 %v2218, %v2267
      %v2315 = vmul.f32 %v2219, %v2271
      %v2316 = vmul.f32 %v2220, %v2271
      %v2317 = vmul.f32 %v2221, %v2275
      %v2318 = vmul.f32 %v2222, %v2275
      %v2319 = vmul.f32 %v2223, %v2279
      %v2320 = vmul.f32 %v2224, %v2279
      %v2321 = vmul.f32 %v2225, %v2283
      %v2322 = vmul.f32 %v2226, %v2283
      %v2323 = vmul.f32 %v2227, %v2287
      %v2324 = vmul.f32 %v2228, %v2287
      %v2325 = vmul.f32 %v2229, %v2291
      %v2326 = vmul.f32 %v2230, %v2291
      %v2327 = vmul.f32 %v2231, %v2295
      %v2328 = vmul.f32 %v2232, %v2295
      %v2329 = vadd.f32 %v2070, %v2297
      %v2330 = vadd.f32 %v2071, %v2298
      %v2331 = vadd.f32 %v2072, %v2299
      %v2332 = vadd.f32 %v2073, %v2300
      %v2333 = vadd.f32 %v2074, %v2301
      %v2334 = vadd.f32 %v2075, %v2302
      %v2335 = vadd.f32 %v2076, %v2303
      %v2336 = vadd.f32 %v2077, %v2304
      %v2337 = vadd.f32 %v2078, %v2305
      %v2338 = vadd.f32 %v2079, %v2306
      %v2339 = vadd.f32 %v2080, %v2307
      %v2340 = vadd.f32 %v2081, %v2308
      %v2341 = vadd.f32 %v2082, %v2309
      %v2342 = vadd.f32 %v2083, %v2310
      %v2343 = vadd.f32 %v2084, %v2311
      %v2344 = vadd.f32 %v2085, %v2312
      %v2345 = vadd.f32 %v2086, %v2313
      %v2346 = vadd.f32 %v2087, %v2314
      %v2347 = vadd.f32 %v2088, %v2315
      %v2348 = vadd.f32 %v2089, %v2316
      %v2349 = vadd.f32 %v2090, %v2317
      %v2350 = vadd.f32 %v2091, %v2318
      %v2351 = vadd.f32 %v2092, %v2319
      %v2352 = vadd.f32 %v2093, %v2320
      %v2353 = vadd.f32 %v2094, %v2321
      %v2354 = vadd.f32 %v2095, %v2322
      %v2355 = vadd.f32 %v2096, %v2323
      %v2356 = vadd.f32 %v2097, %v2324
      %v2357 = vadd.f32 %v2098, %v2325
      %v2358 = vadd.f32 %v2099, %v2326
      %v2359 = vadd.f32 %v2100, %v2327
      %v2360 = vadd.f32 %v2101, %v2328
      %2361 = vrot.lane.b32.xlu0 %v649, 16
      %v2362 = vpop.permute.xlu0 %2361
      %2363 = vrot.lane.b32.xlu0 %v651, 16
      %v2364 = vpop.permute.xlu0 %2363
      %2365 = vrot.lane.b32.xlu0 %v653, 16
      %v2366 = vpop.permute.xlu0 %2365
      %2367 = vrot.lane.b32.xlu0 %v655, 16
      %v2368 = vpop.permute.xlu0 %2367
      %2369 = vrot.lane.b32.xlu0 %v657, 16
      %v2370 = vpop.permute.xlu0 %2369
      %2371 = vrot.lane.b32.xlu0 %v659, 16
      %v2372 = vpop.permute.xlu0 %2371
      %2373 = vrot.lane.b32.xlu0 %v661, 16
      %v2374 = vpop.permute.xlu0 %2373
      %2375 = vrot.lane.b32.xlu0 %v663, 16
      %v2376 = vpop.permute.xlu0 %2375
      %2377 = vrot.lane.b32.xlu0 %v665, 16
      %v2378 = vpop.permute.xlu0 %2377
      %2379 = vrot.lane.b32.xlu0 %v667, 16
      %v2380 = vpop.permute.xlu0 %2379
      %2381 = vrot.lane.b32.xlu0 %v669, 16
      %v2382 = vpop.permute.xlu0 %2381
      %2383 = vrot.lane.b32.xlu0 %v671, 16
      %v2384 = vpop.permute.xlu0 %2383
      %2385 = vrot.lane.b32.xlu0 %v673, 16
      %v2386 = vpop.permute.xlu0 %2385
      %2387 = vrot.lane.b32.xlu0 %v675, 16
      %v2388 = vpop.permute.xlu0 %2387
      %2389 = vrot.lane.b32.xlu0 %v677, 16
      %v2390 = vpop.permute.xlu0 %2389
      %2391 = vrot.lane.b32.xlu0 %v679, 16
      %v2392 = vpop.permute.xlu0 %2391
      %2393 = vrot.lane.b32.xlu0 %v650, 16
      %v2394 = vpop.permute.xlu0 %2393
      %2395 = vrot.lane.b32.xlu0 %v652, 16
      %v2396 = vpop.permute.xlu0 %2395
      %2397 = vrot.lane.b32.xlu0 %v654, 16
      %v2398 = vpop.permute.xlu0 %2397
      %2399 = vrot.lane.b32.xlu0 %v656, 16
      %v2400 = vpop.permute.xlu0 %2399
      %2401 = vrot.lane.b32.xlu0 %v658, 16
      %v2402 = vpop.permute.xlu0 %2401
      %2403 = vrot.lane.b32.xlu0 %v660, 16
      %v2404 = vpop.permute.xlu0 %2403
      %2405 = vrot.lane.b32.xlu0 %v662, 16
      %v2406 = vpop.permute.xlu0 %2405
      %2407 = vrot.lane.b32.xlu0 %v664, 16
      %v2408 = vpop.permute.xlu0 %2407
      %2409 = vrot.lane.b32.xlu0 %v666, 16
      %v2410 = vpop.permute.xlu0 %2409
      %2411 = vrot.lane.b32.xlu0 %v668, 16
      %v2412 = vpop.permute.xlu0 %2411
      %2413 = vrot.lane.b32.xlu0 %v670, 16
      %v2414 = vpop.permute.xlu0 %2413
      %2415 = vrot.lane.b32.xlu0 %v672, 16
      %v2416 = vpop.permute.xlu0 %2415
      %2417 = vrot.lane.b32.xlu0 %v674, 16
      %v2418 = vpop.permute.xlu0 %2417
      %2419 = vrot.lane.b32.xlu0 %v676, 16
      %v2420 = vpop.permute.xlu0 %2419
      %2421 = vrot.lane.b32.xlu0 %v678, 16
      %v2422 = vpop.permute.xlu0 %2421
      %2423 = vrot.lane.b32.xlu0 %v680, 16
      %v2424 = vpop.permute.xlu0 %2423
      %v2425 = vsel %vm2166, %v2362, %v2394
      %v2426 = vsel %vm2166, %v2364, %v2396
      %v2427 = vsel %vm2166, %v2366, %v2398
      %v2428 = vsel %vm2166, %v2368, %v2400
      %v2429 = vsel %vm2166, %v2370, %v2402
      %v2430 = vsel %vm2166, %v2372, %v2404
      %v2431 = vsel %vm2166, %v2374, %v2406
      %v2432 = vsel %vm2166, %v2376, %v2408
      %v2433 = vsel %vm2166, %v2378, %v2410
      %v2434 = vsel %vm2166, %v2380, %v2412
      %v2435 = vsel %vm2166, %v2382, %v2414
      %v2436 = vsel %vm2166, %v2384, %v2416
      %v2437 = vsel %vm2166, %v2386, %v2418
      %v2438 = vsel %vm2166, %v2388, %v2420
      %v2439 = vsel %vm2166, %v2390, %v2422
      %v2440 = vsel %vm2166, %v2392, %v2424
      %v2441 = vsel %vm2166, %v2394, %v2362
      %v2442 = vsel %vm2166, %v2396, %v2364
      %v2443 = vsel %vm2166, %v2398, %v2366
      %v2444 = vsel %vm2166, %v2400, %v2368
      %v2445 = vsel %vm2166, %v2402, %v2370
      %v2446 = vsel %vm2166, %v2404, %v2372
      %v2447 = vsel %vm2166, %v2406, %v2374
      %v2448 = vsel %vm2166, %v2408, %v2376
      %v2449 = vsel %vm2166, %v2410, %v2378
      %v2450 = vsel %vm2166, %v2412, %v2380
      %v2451 = vsel %vm2166, %v2414, %v2382
      %v2452 = vsel %vm2166, %v2416, %v2384
      %v2453 = vsel %vm2166, %v2418, %v2386
      %v2454 = vsel %vm2166, %v2420, %v2388
      %v2455 = vsel %vm2166, %v2422, %v2390
      %v2456 = vsel %vm2166, %v2424, %v2392
      %v2457 = vmul.f32 %v2441, %v2199
      %v2458 = vmul.f32 %v2425, %v2200
      %v2459 = vmul.f32 %v2442, %v2199
      %v2460 = vmul.f32 %v2426, %v2200
      %v2461 = vmul.f32 %v2443, %v2199
      %v2462 = vmul.f32 %v2427, %v2200
      %v2463 = vmul.f32 %v2444, %v2199
      %v2464 = vmul.f32 %v2428, %v2200
      %v2465 = vmul.f32 %v2445, %v2199
      %v2466 = vmul.f32 %v2429, %v2200
      %v2467 = vmul.f32 %v2446, %v2199
      %v2468 = vmul.f32 %v2430, %v2200
      %v2469 = vmul.f32 %v2447, %v2199
      %v2470 = vmul.f32 %v2431, %v2200
      %v2471 = vmul.f32 %v2448, %v2199
      %v2472 = vmul.f32 %v2432, %v2200
      %v2473 = vmul.f32 %v2449, %v2199
      %v2474 = vmul.f32 %v2433, %v2200
      %v2475 = vmul.f32 %v2450, %v2199
      %v2476 = vmul.f32 %v2434, %v2200
      %v2477 = vmul.f32 %v2451, %v2199
      %v2478 = vmul.f32 %v2435, %v2200
      %v2479 = vmul.f32 %v2452, %v2199
      %v2480 = vmul.f32 %v2436, %v2200
      %v2481 = vmul.f32 %v2453, %v2199
      %v2482 = vmul.f32 %v2437, %v2200
      %v2483 = vmul.f32 %v2454, %v2199
      %v2484 = vmul.f32 %v2438, %v2200
      %v2485 = vmul.f32 %v2455, %v2199
      %v2486 = vmul.f32 %v2439, %v2200
      %v2487 = vmul.f32 %v2456, %v2199
      %v2488 = vmul.f32 %v2440, %v2200
      %2489 = vset.pattern.permute.xlu0 1
      %2490 = vperm.xlu0 %2489, %v683
      %v2491 = vpop.permute.xlu0 %2490
      %2493 = vset.pattern.permute.xlu0 1
      %2494 = vperm.xlu0 %2493, %v684
      %v2495 = vpop.permute.xlu0 %2494
      %2497 = vset.pattern.permute.xlu0 1
      %2498 = vperm.xlu0 %2497, %v685
      %v2499 = vpop.permute.xlu0 %2498
      %2501 = vset.pattern.permute.xlu0 1
      %2502 = vperm.xlu0 %2501, %v686
      %v2503 = vpop.permute.xlu0 %2502
      %2505 = vset.pattern.permute.xlu0 1
      %2506 = vperm.xlu0 %2505, %v687
      %v2507 = vpop.permute.xlu0 %2506
      %2509 = vset.pattern.permute.xlu0 1
      %2510 = vperm.xlu0 %2509, %v688
      %v2511 = vpop.permute.xlu0 %2510
      %2513 = vset.pattern.permute.xlu0 1
      %2514 = vperm.xlu0 %2513, %v689
      %v2515 = vpop.permute.xlu0 %2514
      %2517 = vset.pattern.permute.xlu0 1
      %2518 = vperm.xlu0 %2517, %v690
      %v2519 = vpop.permute.xlu0 %2518
      %2521 = vset.pattern.permute.xlu0 1
      %2522 = vperm.xlu0 %2521, %v691
      %v2523 = vpop.permute.xlu0 %2522
      %2525 = vset.pattern.permute.xlu0 1
      %2526 = vperm.xlu0 %2525, %v692
      %v2527 = vpop.permute.xlu0 %2526
      %2529 = vset.pattern.permute.xlu0 1
      %2530 = vperm.xlu0 %2529, %v693
      %v2531 = vpop.permute.xlu0 %2530
      %2533 = vset.pattern.permute.xlu0 1
      %2534 = vperm.xlu0 %2533, %v694
      %v2535 = vpop.permute.xlu0 %2534
      %2537 = vset.pattern.permute.xlu0 1
      %2538 = vperm.xlu0 %2537, %v695
      %v2539 = vpop.permute.xlu0 %2538
      %2541 = vset.pattern.permute.xlu0 1
      %2542 = vperm.xlu0 %2541, %v696
      %v2543 = vpop.permute.xlu0 %2542
      %2545 = vset.pattern.permute.xlu0 1
      %2546 = vperm.xlu0 %2545, %v697
      %v2547 = vpop.permute.xlu0 %2546
      %2549 = vset.pattern.permute.xlu0 1
      %2550 = vperm.xlu0 %2549, %v698
      %v2551 = vpop.permute.xlu0 %2550
      %v2553 = vmul.f32 %v2457, %v2491
      %v2554 = vmul.f32 %v2458, %v2491
      %v2555 = vmul.f32 %v2459, %v2495
      %v2556 = vmul.f32 %v2460, %v2495
      %v2557 = vmul.f32 %v2461, %v2499
      %v2558 = vmul.f32 %v2462, %v2499
      %v2559 = vmul.f32 %v2463, %v2503
      %v2560 = vmul.f32 %v2464, %v2503
      %v2561 = vmul.f32 %v2465, %v2507
      %v2562 = vmul.f32 %v2466, %v2507
      %v2563 = vmul.f32 %v2467, %v2511
      %v2564 = vmul.f32 %v2468, %v2511
      %v2565 = vmul.f32 %v2469, %v2515
      %v2566 = vmul.f32 %v2470, %v2515
      %v2567 = vmul.f32 %v2471, %v2519
      %v2568 = vmul.f32 %v2472, %v2519
      %v2569 = vmul.f32 %v2473, %v2523
      %v2570 = vmul.f32 %v2474, %v2523
      %v2571 = vmul.f32 %v2475, %v2527
      %v2572 = vmul.f32 %v2476, %v2527
      %v2573 = vmul.f32 %v2477, %v2531
      %v2574 = vmul.f32 %v2478, %v2531
      %v2575 = vmul.f32 %v2479, %v2535
      %v2576 = vmul.f32 %v2480, %v2535
      %v2577 = vmul.f32 %v2481, %v2539
      %v2578 = vmul.f32 %v2482, %v2539
      %v2579 = vmul.f32 %v2483, %v2543
      %v2580 = vmul.f32 %v2484, %v2543
      %v2581 = vmul.f32 %v2485, %v2547
      %v2582 = vmul.f32 %v2486, %v2547
      %v2583 = vmul.f32 %v2487, %v2551
      %v2584 = vmul.f32 %v2488, %v2551
      %v2585 = vadd.f32 %v2329, %v2553
      %v2586 = vadd.f32 %v2330, %v2554
      %v2587 = vadd.f32 %v2331, %v2555
      %v2588 = vadd.f32 %v2332, %v2556
      %v2589 = vadd.f32 %v2333, %v2557
      %v2590 = vadd.f32 %v2334, %v2558
      %v2591 = vadd.f32 %v2335, %v2559
      %v2592 = vadd.f32 %v2336, %v2560
      %v2593 = vadd.f32 %v2337, %v2561
      %v2594 = vadd.f32 %v2338, %v2562
      %v2595 = vadd.f32 %v2339, %v2563
      %v2596 = vadd.f32 %v2340, %v2564
      %v2597 = vadd.f32 %v2341, %v2565
      %v2598 = vadd.f32 %v2342, %v2566
      %v2599 = vadd.f32 %v2343, %v2567
      %v2600 = vadd.f32 %v2344, %v2568
      %v2601 = vadd.f32 %v2345, %v2569
      %v2602 = vadd.f32 %v2346, %v2570
      %v2603 = vadd.f32 %v2347, %v2571
      %v2604 = vadd.f32 %v2348, %v2572
      %v2605 = vadd.f32 %v2349, %v2573
      %v2606 = vadd.f32 %v2350, %v2574
      %v2607 = vadd.f32 %v2351, %v2575
      %v2608 = vadd.f32 %v2352, %v2576
      %v2609 = vadd.f32 %v2353, %v2577
      %v2610 = vadd.f32 %v2354, %v2578
      %v2611 = vadd.f32 %v2355, %v2579
      %v2612 = vadd.f32 %v2356, %v2580
      %v2613 = vadd.f32 %v2357, %v2581
      %v2614 = vadd.f32 %v2358, %v2582
      %v2615 = vadd.f32 %v2359, %v2583
      %v2616 = vadd.f32 %v2360, %v2584
      %2617 = vrot.lane.b32.xlu0 %v800, 16
      %v2618 = vpop.permute.xlu0 %2617
      %2619 = vrot.lane.b32.xlu0 %v802, 16
      %v2620 = vpop.permute.xlu0 %2619
      %2621 = vrot.lane.b32.xlu0 %v804, 16
      %v2622 = vpop.permute.xlu0 %2621
      %2623 = vrot.lane.b32.xlu0 %v806, 16
      %v2624 = vpop.permute.xlu0 %2623
      %2625 = vrot.lane.b32.xlu0 %v808, 16
      %v2626 = vpop.permute.xlu0 %2625
      %2627 = vrot.lane.b32.xlu0 %v810, 16
      %v2628 = vpop.permute.xlu0 %2627
      %2629 = vrot.lane.b32.xlu0 %v812, 16
      %v2630 = vpop.permute.xlu0 %2629
      %2631 = vrot.lane.b32.xlu0 %v814, 16
      %v2632 = vpop.permute.xlu0 %2631
      %2633 = vrot.lane.b32.xlu0 %v816, 16
      %v2634 = vpop.permute.xlu0 %2633
      %2635 = vrot.lane.b32.xlu0 %v818, 16
      %v2636 = vpop.permute.xlu0 %2635
      %2637 = vrot.lane.b32.xlu0 %v820, 16
      %v2638 = vpop.permute.xlu0 %2637
      %2639 = vrot.lane.b32.xlu0 %v822, 16
      %v2640 = vpop.permute.xlu0 %2639
      %2641 = vrot.lane.b32.xlu0 %v824, 16
      %v2642 = vpop.permute.xlu0 %2641
      %2643 = vrot.lane.b32.xlu0 %v826, 16
      %v2644 = vpop.permute.xlu0 %2643
      %2645 = vrot.lane.b32.xlu0 %v828, 16
      %v2646 = vpop.permute.xlu0 %2645
      %2647 = vrot.lane.b32.xlu0 %v830, 16
      %v2648 = vpop.permute.xlu0 %2647
      %2649 = vrot.lane.b32.xlu0 %v801, 16
      %v2650 = vpop.permute.xlu0 %2649
      %2651 = vrot.lane.b32.xlu0 %v803, 16
      %v2652 = vpop.permute.xlu0 %2651
      %2653 = vrot.lane.b32.xlu0 %v805, 16
      %v2654 = vpop.permute.xlu0 %2653
      %2655 = vrot.lane.b32.xlu0 %v807, 16
      %v2656 = vpop.permute.xlu0 %2655
      %2657 = vrot.lane.b32.xlu0 %v809, 16
      %v2658 = vpop.permute.xlu0 %2657
      %2659 = vrot.lane.b32.xlu0 %v811, 16
      %v2660 = vpop.permute.xlu0 %2659
      %2661 = vrot.lane.b32.xlu0 %v813, 16
      %v2662 = vpop.permute.xlu0 %2661
      %2663 = vrot.lane.b32.xlu0 %v815, 16
      %v2664 = vpop.permute.xlu0 %2663
      %2665 = vrot.lane.b32.xlu0 %v817, 16
      %v2666 = vpop.permute.xlu0 %2665
      %2667 = vrot.lane.b32.xlu0 %v819, 16
      %v2668 = vpop.permute.xlu0 %2667
      %2669 = vrot.lane.b32.xlu0 %v821, 16
      %v2670 = vpop.permute.xlu0 %2669
      %2671 = vrot.lane.b32.xlu0 %v823, 16
      %v2672 = vpop.permute.xlu0 %2671
      %2673 = vrot.lane.b32.xlu0 %v825, 16
      %v2674 = vpop.permute.xlu0 %2673
      %2675 = vrot.lane.b32.xlu0 %v827, 16
      %v2676 = vpop.permute.xlu0 %2675
      %2677 = vrot.lane.b32.xlu0 %v829, 16
      %v2678 = vpop.permute.xlu0 %2677
      %2679 = vrot.lane.b32.xlu0 %v831, 16
      %v2680 = vpop.permute.xlu0 %2679
      %v2681 = vsel %vm2166, %v2618, %v2650
      %v2682 = vsel %vm2166, %v2620, %v2652
      %v2683 = vsel %vm2166, %v2622, %v2654
      %v2684 = vsel %vm2166, %v2624, %v2656
      %v2685 = vsel %vm2166, %v2626, %v2658
      %v2686 = vsel %vm2166, %v2628, %v2660
      %v2687 = vsel %vm2166, %v2630, %v2662
      %v2688 = vsel %vm2166, %v2632, %v2664
      %v2689 = vsel %vm2166, %v2634, %v2666
      %v2690 = vsel %vm2166, %v2636, %v2668
      %v2691 = vsel %vm2166, %v2638, %v2670
      %v2692 = vsel %vm2166, %v2640, %v2672
      %v2693 = vsel %vm2166, %v2642, %v2674
      %v2694 = vsel %vm2166, %v2644, %v2676
      %v2695 = vsel %vm2166, %v2646, %v2678
      %v2696 = vsel %vm2166, %v2648, %v2680
      %v2697 = vsel %vm2166, %v2650, %v2618
      %v2698 = vsel %vm2166, %v2652, %v2620
      %v2699 = vsel %vm2166, %v2654, %v2622
      %v2700 = vsel %vm2166, %v2656, %v2624
      %v2701 = vsel %vm2166, %v2658, %v2626
      %v2702 = vsel %vm2166, %v2660, %v2628
      %v2703 = vsel %vm2166, %v2662, %v2630
      %v2704 = vsel %vm2166, %v2664, %v2632
      %v2705 = vsel %vm2166, %v2666, %v2634
      %v2706 = vsel %vm2166, %v2668, %v2636
      %v2707 = vsel %vm2166, %v2670, %v2638
      %v2708 = vsel %vm2166, %v2672, %v2640
      %v2709 = vsel %vm2166, %v2674, %v2642
      %v2710 = vsel %vm2166, %v2676, %v2644
      %v2711 = vsel %vm2166, %v2678, %v2646
      %v2712 = vsel %vm2166, %v2680, %v2648
      %v2713 = vmul.f32 %v2697, %v2199
      %v2714 = vmul.f32 %v2681, %v2200
      %v2715 = vmul.f32 %v2698, %v2199
      %v2716 = vmul.f32 %v2682, %v2200
      %v2717 = vmul.f32 %v2699, %v2199
      %v2718 = vmul.f32 %v2683, %v2200
      %v2719 = vmul.f32 %v2700, %v2199
      %v2720 = vmul.f32 %v2684, %v2200
      %v2721 = vmul.f32 %v2701, %v2199
      %v2722 = vmul.f32 %v2685, %v2200
      %v2723 = vmul.f32 %v2702, %v2199
      %v2724 = vmul.f32 %v2686, %v2200
      %v2725 = vmul.f32 %v2703, %v2199
      %v2726 = vmul.f32 %v2687, %v2200
      %v2727 = vmul.f32 %v2704, %v2199
      %v2728 = vmul.f32 %v2688, %v2200
      %v2729 = vmul.f32 %v2705, %v2199
      %v2730 = vmul.f32 %v2689, %v2200
      %v2731 = vmul.f32 %v2706, %v2199
      %v2732 = vmul.f32 %v2690, %v2200
      %v2733 = vmul.f32 %v2707, %v2199
      %v2734 = vmul.f32 %v2691, %v2200
      %v2735 = vmul.f32 %v2708, %v2199
      %v2736 = vmul.f32 %v2692, %v2200
      %v2737 = vmul.f32 %v2709, %v2199
      %v2738 = vmul.f32 %v2693, %v2200
      %v2739 = vmul.f32 %v2710, %v2199
      %v2740 = vmul.f32 %v2694, %v2200
      %v2741 = vmul.f32 %v2711, %v2199
      %v2742 = vmul.f32 %v2695, %v2200
      %v2743 = vmul.f32 %v2712, %v2199
      %v2744 = vmul.f32 %v2696, %v2200
      %2745 = vset.pattern.permute.xlu0 2
      %2746 = vperm.xlu0 %2745, %v683
      %v2747 = vpop.permute.xlu0 %2746
      %2749 = vset.pattern.permute.xlu0 2
      %2750 = vperm.xlu0 %2749, %v684
      %v2751 = vpop.permute.xlu0 %2750
      %2753 = vset.pattern.permute.xlu0 2
      %2754 = vperm.xlu0 %2753, %v685
      %v2755 = vpop.permute.xlu0 %2754
      %2757 = vset.pattern.permute.xlu0 2
      %2758 = vperm.xlu0 %2757, %v686
      %v2759 = vpop.permute.xlu0 %2758
      %2761 = vset.pattern.permute.xlu0 2
      %2762 = vperm.xlu0 %2761, %v687
      %v2763 = vpop.permute.xlu0 %2762
      %2765 = vset.pattern.permute.xlu0 2
      %2766 = vperm.xlu0 %2765, %v688
      %v2767 = vpop.permute.xlu0 %2766
      %2769 = vset.pattern.permute.xlu0 2
      %2770 = vperm.xlu0 %2769, %v689
      %v2771 = vpop.permute.xlu0 %2770
      %2773 = vset.pattern.permute.xlu0 2
      %2774 = vperm.xlu0 %2773, %v690
      %v2775 = vpop.permute.xlu0 %2774
      %2777 = vset.pattern.permute.xlu0 2
      %2778 = vperm.xlu0 %2777, %v691
      %v2779 = vpop.permute.xlu0 %2778
      %2781 = vset.pattern.permute.xlu0 2
      %2782 = vperm.xlu0 %2781, %v692
      %v2783 = vpop.permute.xlu0 %2782
      %2785 = vset.pattern.permute.xlu0 2
      %2786 = vperm.xlu0 %2785, %v693
      %v2787 = vpop.permute.xlu0 %2786
      %2789 = vset.pattern.permute.xlu0 2
      %2790 = vperm.xlu0 %2789, %v694
      %v2791 = vpop.permute.xlu0 %2790
      %2793 = vset.pattern.permute.xlu0 2
      %2794 = vperm.xlu0 %2793, %v695
      %v2795 = vpop.permute.xlu0 %2794
      %2797 = vset.pattern.permute.xlu0 2
      %2798 = vperm.xlu0 %2797, %v696
      %v2799 = vpop.permute.xlu0 %2798
      %2801 = vset.pattern.permute.xlu0 2
      %2802 = vperm.xlu0 %2801, %v697
      %v2803 = vpop.permute.xlu0 %2802
      %2805 = vset.pattern.permute.xlu0 2
      %2806 = vperm.xlu0 %2805, %v698
      %v2807 = vpop.permute.xlu0 %2806
      %v2809 = vmul.f32 %v2713, %v2747
      %v2810 = vmul.f32 %v2714, %v2747
      %v2811 = vmul.f32 %v2715, %v2751
      %v2812 = vmul.f32 %v2716, %v2751
      %v2813 = vmul.f32 %v2717, %v2755
      %v2814 = vmul.f32 %v2718, %v2755
      %v2815 = vmul.f32 %v2719, %v2759
      %v2816 = vmul.f32 %v2720, %v2759
      %v2817 = vmul.f32 %v2721, %v2763
      %v2818 = vmul.f32 %v2722, %v2763
      %v2819 = vmul.f32 %v2723, %v2767
      %v2820 = vmul.f32 %v2724, %v2767
      %v2821 = vmul.f32 %v2725, %v2771
      %v2822 = vmul.f32 %v2726, %v2771
      %v2823 = vmul.f32 %v2727, %v2775
      %v2824 = vmul.f32 %v2728, %v2775
      %v2825 = vmul.f32 %v2729, %v2779
      %v2826 = vmul.f32 %v2730, %v2779
      %v2827 = vmul.f32 %v2731, %v2783
      %v2828 = vmul.f32 %v2732, %v2783
      %v2829 = vmul.f32 %v2733, %v2787
      %v2830 = vmul.f32 %v2734, %v2787
      %v2831 = vmul.f32 %v2735, %v2791
      %v2832 = vmul.f32 %v2736, %v2791
      %v2833 = vmul.f32 %v2737, %v2795
      %v2834 = vmul.f32 %v2738, %v2795
      %v2835 = vmul.f32 %v2739, %v2799
      %v2836 = vmul.f32 %v2740, %v2799
      %v2837 = vmul.f32 %v2741, %v2803
      %v2838 = vmul.f32 %v2742, %v2803
      %v2839 = vmul.f32 %v2743, %v2807
      %v2840 = vmul.f32 %v2744, %v2807
      %v2841 = vadd.f32 %v2585, %v2809
      %v2842 = vadd.f32 %v2586, %v2810
      %v2843 = vadd.f32 %v2587, %v2811
      %v2844 = vadd.f32 %v2588, %v2812
      %v2845 = vadd.f32 %v2589, %v2813
      %v2846 = vadd.f32 %v2590, %v2814
      %v2847 = vadd.f32 %v2591, %v2815
      %v2848 = vadd.f32 %v2592, %v2816
      %v2849 = vadd.f32 %v2593, %v2817
      %v2850 = vadd.f32 %v2594, %v2818
      %v2851 = vadd.f32 %v2595, %v2819
      %v2852 = vadd.f32 %v2596, %v2820
      %v2853 = vadd.f32 %v2597, %v2821
      %v2854 = vadd.f32 %v2598, %v2822
      %v2855 = vadd.f32 %v2599, %v2823
      %v2856 = vadd.f32 %v2600, %v2824
      %v2857 = vadd.f32 %v2601, %v2825
      %v2858 = vadd.f32 %v2602, %v2826
      %v2859 = vadd.f32 %v2603, %v2827
      %v2860 = vadd.f32 %v2604, %v2828
      %v2861 = vadd.f32 %v2605, %v2829
      %v2862 = vadd.f32 %v2606, %v2830
      %v2863 = vadd.f32 %v2607, %v2831
      %v2864 = vadd.f32 %v2608, %v2832
      %v2865 = vadd.f32 %v2609, %v2833
      %v2866 = vadd.f32 %v2610, %v2834
      %v2867 = vadd.f32 %v2611, %v2835
      %v2868 = vadd.f32 %v2612, %v2836
      %v2869 = vadd.f32 %v2613, %v2837
      %v2870 = vadd.f32 %v2614, %v2838
      %v2871 = vadd.f32 %v2615, %v2839
      %v2872 = vadd.f32 %v2616, %v2840
      %v2873 = vld [vmem:[%s5] sm:$0xff]
      %v2874 = vld [vmem:[%s5 + $0x8] sm:$0xff]
      %v2875 = vld [vmem:[%s5 + $0x10] sm:$0xff]
      %v2876 = vld [vmem:[%s5 + $0x18] sm:$0xff]
      %v2877 = vld [vmem:[%s5 + $0x20] sm:$0xff]
      %v2878 = vld [vmem:[%s5 + $0x28] sm:$0xff]
      %v2879 = vld [vmem:[%s5 + $0x30] sm:$0xff]
      %v2880 = vld [vmem:[%s5 + $0x38] sm:$0xff]
      %v2881 = vld [vmem:[%s5 + $0x40] sm:$0xff]
      %v2882 = vld [vmem:[%s5 + $0x48] sm:$0xff]
      %v2883 = vld [vmem:[%s5 + $0x50] sm:$0xff]
      %v2884 = vld [vmem:[%s5 + $0x58] sm:$0xff]
      %v2885 = vld [vmem:[%s5 + $0x60] sm:$0xff]
      %v2886 = vld [vmem:[%s5 + $0x68] sm:$0xff]
      %v2887 = vld [vmem:[%s5 + $0x70] sm:$0xff]
      %v2888 = vld [vmem:[%s5 + $0x78] sm:$0xff]
      %2890 = vset.pattern.permute.xlu0 0
      %2891 = vperm.xlu0 %2890, %v2873
      %v2892 = vpop.permute.xlu0 %2891
      %2895 = vset.pattern.permute.xlu0 0
      %2896 = vperm.xlu0 %2895, %v2874
      %v2897 = vpop.permute.xlu0 %2896
      %2900 = vset.pattern.permute.xlu0 0
      %2901 = vperm.xlu0 %2900, %v2875
      %v2902 = vpop.permute.xlu0 %2901
      %2905 = vset.pattern.permute.xlu0 0
      %2906 = vperm.xlu0 %2905, %v2876
      %v2907 = vpop.permute.xlu0 %2906
      %2910 = vset.pattern.permute.xlu0 0
      %2911 = vperm.xlu0 %2910, %v2877
      %v2912 = vpop.permute.xlu0 %2911
      %2915 = vset.pattern.permute.xlu0 0
      %2916 = vperm.xlu0 %2915, %v2878
      %v2917 = vpop.permute.xlu0 %2916
      %2920 = vset.pattern.permute.xlu0 0
      %2921 = vperm.xlu0 %2920, %v2879
      %v2922 = vpop.permute.xlu0 %2921
      %2925 = vset.pattern.permute.xlu0 0
      %2926 = vperm.xlu0 %2925, %v2880
      %v2927 = vpop.permute.xlu0 %2926
      %2930 = vset.pattern.permute.xlu0 0
      %2931 = vperm.xlu0 %2930, %v2881
      %v2932 = vpop.permute.xlu0 %2931
      %2935 = vset.pattern.permute.xlu0 0
      %2936 = vperm.xlu0 %2935, %v2882
      %v2937 = vpop.permute.xlu0 %2936
      %2940 = vset.pattern.permute.xlu0 0
      %2941 = vperm.xlu0 %2940, %v2883
      %v2942 = vpop.permute.xlu0 %2941
      %2945 = vset.pattern.permute.xlu0 0
      %2946 = vperm.xlu0 %2945, %v2884
      %v2947 = vpop.permute.xlu0 %2946
      %2950 = vset.pattern.permute.xlu0 0
      %2951 = vperm.xlu0 %2950, %v2885
      %v2952 = vpop.permute.xlu0 %2951
      %2955 = vset.pattern.permute.xlu0 0
      %2956 = vperm.xlu0 %2955, %v2886
      %v2957 = vpop.permute.xlu0 %2956
      %2960 = vset.pattern.permute.xlu0 0
      %2961 = vperm.xlu0 %2960, %v2887
      %v2962 = vpop.permute.xlu0 %2961
      %2965 = vset.pattern.permute.xlu0 0
      %2966 = vperm.xlu0 %2965, %v2888
      %v2967 = vpop.permute.xlu0 %2966
      %v2969 = vadd.f32 %v2841, %v2892
      %v2970 = vadd.f32 %v2842, %v2892
      %v2971 = vadd.f32 %v2843, %v2897
      %v2972 = vadd.f32 %v2844, %v2897
      %v2973 = vadd.f32 %v2845, %v2902
      %v2974 = vadd.f32 %v2846, %v2902
      %v2975 = vadd.f32 %v2847, %v2907
      %v2976 = vadd.f32 %v2848, %v2907
      %v2977 = vadd.f32 %v2849, %v2912
      %v2978 = vadd.f32 %v2850, %v2912
      %v2979 = vadd.f32 %v2851, %v2917
      %v2980 = vadd.f32 %v2852, %v2917
      %v2981 = vadd.f32 %v2853, %v2922
      %v2982 = vadd.f32 %v2854, %v2922
      %v2983 = vadd.f32 %v2855, %v2927
      %v2984 = vadd.f32 %v2856, %v2927
      %v2985 = vadd.f32 %v2857, %v2932
      %v2986 = vadd.f32 %v2858, %v2932
      %v2987 = vadd.f32 %v2859, %v2937
      %v2988 = vadd.f32 %v2860, %v2937
      %v2989 = vadd.f32 %v2861, %v2942
      %v2990 = vadd.f32 %v2862, %v2942
      %v2991 = vadd.f32 %v2863, %v2947
      %v2992 = vadd.f32 %v2864, %v2947
      %v2993 = vadd.f32 %v2865, %v2952
      %v2994 = vadd.f32 %v2866, %v2952
      %v2995 = vadd.f32 %v2867, %v2957
      %v2996 = vadd.f32 %v2868, %v2957
      %v2997 = vadd.f32 %v2869, %v2962
      %v2998 = vadd.f32 %v2870, %v2962
      %v2999 = vadd.f32 %v2871, %v2967
      %v3000 = vadd.f32 %v2872, %v2967
      %v3001 = vmax.f32 %v2969, 0.0
      %v3002 = vmax.f32 %v2970, 0.0
      %v3003 = vmax.f32 %v2971, 0.0
      %v3004 = vmax.f32 %v2972, 0.0
      %v3005 = vmax.f32 %v2973, 0.0
      %v3006 = vmax.f32 %v2974, 0.0
      %v3007 = vmax.f32 %v2975, 0.0
      %v3008 = vmax.f32 %v2976, 0.0
      %v3009 = vmax.f32 %v2977, 0.0
      %v3010 = vmax.f32 %v2978, 0.0
      %v3011 = vmax.f32 %v2979, 0.0
      %v3012 = vmax.f32 %v2980, 0.0
      %v3013 = vmax.f32 %v2981, 0.0
      %v3014 = vmax.f32 %v2982, 0.0
      %v3015 = vmax.f32 %v2983, 0.0
      %v3016 = vmax.f32 %v2984, 0.0
      %v3017 = vmax.f32 %v2985, 0.0
      %v3018 = vmax.f32 %v2986, 0.0
      %v3019 = vmax.f32 %v2987, 0.0
      %v3020 = vmax.f32 %v2988, 0.0
      %v3021 = vmax.f32 %v2989, 0.0
      %v3022 = vmax.f32 %v2990, 0.0
      %v3023 = vmax.f32 %v2991, 0.0
      %v3024 = vmax.f32 %v2992, 0.0
      %v3025 = vmax.f32 %v2993, 0.0
      %v3026 = vmax.f32 %v2994, 0.0
      %v3027 = vmax.f32 %v2995, 0.0
      %v3028 = vmax.f32 %v2996, 0.0
      %v3029 = vmax.f32 %v2997, 0.0
      %v3030 = vmax.f32 %v2998, 0.0
      %v3031 = vmax.f32 %v2999, 0.0
      %v3032 = vmax.f32 %v3000, 0.0
      %v3033 = vld [vmem:[%s6] sm:$0xff]
      %v3034 = vld [vmem:[%s6 + $0x8] sm:$0xff]
      %v3035 = vld [vmem:[%s6 + $0x10] sm:$0xff]
      %v3036 = vld [vmem:[%s6 + $0x18] sm:$0xff]
      %v3037 = vld [vmem:[%s6 + $0x20] sm:$0xff]
      %v3038 = vld [vmem:[%s6 + $0x28] sm:$0xff]
      %v3039 = vld [vmem:[%s6 + $0x30] sm:$0xff]
      %v3040 = vld [vmem:[%s6 + $0x38] sm:$0xff]
      %v3041 = vld [vmem:[%s6 + $0x40] sm:$0xff]
      %v3042 = vld [vmem:[%s6 + $0x48] sm:$0xff]
      %v3043 = vld [vmem:[%s6 + $0x50] sm:$0xff]
      %v3044 = vld [vmem:[%s6 + $0x58] sm:$0xff]
      %v3045 = vld [vmem:[%s6 + $0x60] sm:$0xff]
      %v3046 = vld [vmem:[%s6 + $0x68] sm:$0xff]
      %v3047 = vld [vmem:[%s6 + $0x70] sm:$0xff]
      %v3048 = vld [vmem:[%s6 + $0x78] sm:$0xff]
      %3049 = vrot.lane.b32.xlu0 %v3001, 127
      %v3050 = vpop.permute.xlu0 %3049
      %3051 = vrot.lane.b32.xlu0 %v3003, 127
      %v3052 = vpop.permute.xlu0 %3051
      %3053 = vrot.lane.b32.xlu0 %v3005, 127
      %v3054 = vpop.permute.xlu0 %3053
      %3055 = vrot.lane.b32.xlu0 %v3007, 127
      %v3056 = vpop.permute.xlu0 %3055
      %3057 = vrot.lane.b32.xlu0 %v3009, 127
      %v3058 = vpop.permute.xlu0 %3057
      %3059 = vrot.lane.b32.xlu0 %v3011, 127
      %v3060 = vpop.permute.xlu0 %3059
      %3061 = vrot.lane.b32.xlu0 %v3013, 127
      %v3062 = vpop.permute.xlu0 %3061
      %3063 = vrot.lane.b32.xlu0 %v3015, 127
      %v3064 = vpop.permute.xlu0 %3063
      %3065 = vrot.lane.b32.xlu0 %v3017, 127
      %v3066 = vpop.permute.xlu0 %3065
      %3067 = vrot.lane.b32.xlu0 %v3019, 127
      %v3068 = vpop.permute.xlu0 %3067
      %3069 = vrot.lane.b32.xlu0 %v3021, 127
      %v3070 = vpop.permute.xlu0 %3069
      %3071 = vrot.lane.b32.xlu0 %v3023, 127
      %v3072 = vpop.permute.xlu0 %3071
      %3073 = vrot.lane.b32.xlu0 %v3025, 127
      %v3074 = vpop.permute.xlu0 %3073
      %3075 = vrot.lane.b32.xlu0 %v3027, 127
      %v3076 = vpop.permute.xlu0 %3075
      %3077 = vrot.lane.b32.xlu0 %v3029, 127
      %v3078 = vpop.permute.xlu0 %3077
      %3079 = vrot.lane.b32.xlu0 %v3031, 127
      %v3080 = vpop.permute.xlu0 %3079
      %3081 = vrot.lane.b32.xlu0 %v3002, 127
      %v3082 = vpop.permute.xlu0 %3081
      %3083 = vrot.lane.b32.xlu0 %v3004, 127
      %v3084 = vpop.permute.xlu0 %3083
      %3085 = vrot.lane.b32.xlu0 %v3006, 127
      %v3086 = vpop.permute.xlu0 %3085
      %3087 = vrot.lane.b32.xlu0 %v3008, 127
      %v3088 = vpop.permute.xlu0 %3087
      %3089 = vrot.lane.b32.xlu0 %v3010, 127
      %v3090 = vpop.permute.xlu0 %3089
      %3091 = vrot.lane.b32.xlu0 %v3012, 127
      %v3092 = vpop.permute.xlu0 %3091
      %3093 = vrot.lane.b32.xlu0 %v3014, 127
      %v3094 = vpop.permute.xlu0 %3093
      %3095 = vrot.lane.b32.xlu0 %v3016, 127
      %v3096 = vpop.permute.xlu0 %3095
      %3097 = vrot.lane.b32.xlu0 %v3018, 127
      %v3098 = vpop.permute.xlu0 %3097
      %3099 = vrot.lane.b32.xlu0 %v3020, 127
      %v3100 = vpop.permute.xlu0 %3099
      %3101 = vrot.lane.b32.xlu0 %v3022, 127
      %v3102 = vpop.permute.xlu0 %3101
      %3103 = vrot.lane.b32.xlu0 %v3024, 127
      %v3104 = vpop.permute.xlu0 %3103
      %3105 = vrot.lane.b32.xlu0 %v3026, 127
      %v3106 = vpop.permute.xlu0 %3105
      %3107 = vrot.lane.b32.xlu0 %v3028, 127
      %v3108 = vpop.permute.xlu0 %3107
      %3109 = vrot.lane.b32.xlu0 %v3030, 127
      %v3110 = vpop.permute.xlu0 %3109
      %3111 = vrot.lane.b32.xlu0 %v3032, 127
      %v3112 = vpop.permute.xlu0 %3111
      %v3113 = vsel %vm765, %v3050, %v3082
      %v3114 = vsel %vm765, %v3052, %v3084
      %v3115 = vsel %vm765, %v3054, %v3086
      %v3116 = vsel %vm765, %v3056, %v3088
      %v3117 = vsel %vm765, %v3058, %v3090
      %v3118 = vsel %vm765, %v3060, %v3092
      %v3119 = vsel %vm765, %v3062, %v3094
      %v3120 = vsel %vm765, %v3064, %v3096
      %v3121 = vsel %vm765, %v3066, %v3098
      %v3122 = vsel %vm765, %v3068, %v3100
      %v3123 = vsel %vm765, %v3070, %v3102
      %v3124 = vsel %vm765, %v3072, %v3104
      %v3125 = vsel %vm765, %v3074, %v3106
      %v3126 = vsel %vm765, %v3076, %v3108
      %v3127 = vsel %vm765, %v3078, %v3110
      %v3128 = vsel %vm765, %v3080, %v3112
      %v3129 = vsel %vm765, %v3082, %v3050
      %v3130 = vsel %vm765, %v3084, %v3052
      %v3131 = vsel %vm765, %v3086, %v3054
      %v3132 = vsel %vm765, %v3088, %v3056
      %v3133 = vsel %vm765, %v3090, %v3058
      %v3134 = vsel %vm765, %v3092, %v3060
      %v3135 = vsel %vm765, %v3094, %v3062
      %v3136 = vsel %vm765, %v3096, %v3064
      %v3137 = vsel %vm765, %v3098, %v3066
      %v3138 = vsel %vm765, %v3100, %v3068
      %v3139 = vsel %vm765, %v3102, %v3070
      %v3140 = vsel %vm765, %v3104, %v3072
      %v3141 = vsel %vm765, %v3106, %v3074
      %v3142 = vsel %vm765, %v3108, %v3076
      %v3143 = vsel %vm765, %v3110, %v3078
      %v3144 = vsel %vm765, %v3112, %v3080
      %v3145 = vmul.f32 %v3113, %v798
      %v3146 = vmul.f32 %v3129, %v799
      %v3147 = vmul.f32 %v3114, %v798
      %v3148 = vmul.f32 %v3130, %v799
      %v3149 = vmul.f32 %v3115, %v798
      %v3150 = vmul.f32 %v3131, %v799
      %v3151 = vmul.f32 %v3116, %v798
      %v3152 = vmul.f32 %v3132, %v799
      %v3153 = vmul.f32 %v3117, %v798
      %v3154 = vmul.f32 %v3133, %v799
      %v3155 = vmul.f32 %v3118, %v798
      %v3156 = vmul.f32 %v3134, %v799
      %v3157 = vmul.f32 %v3119, %v798
      %v3158 = vmul.f32 %v3135, %v799
      %v3159 = vmul.f32 %v3120, %v798
      %v3160 = vmul.f32 %v3136, %v799
      %v3161 = vmul.f32 %v3121, %v798
      %v3162 = vmul.f32 %v3137, %v799
      %v3163 = vmul.f32 %v3122, %v798
      %v3164 = vmul.f32 %v3138, %v799
      %v3165 = vmul.f32 %v3123, %v798
      %v3166 = vmul.f32 %v3139, %v799
      %v3167 = vmul.f32 %v3124, %v798
      %v3168 = vmul.f32 %v3140, %v799
      %v3169 = vmul.f32 %v3125, %v798
      %v3170 = vmul.f32 %v3141, %v799
      %v3171 = vmul.f32 %v3126, %v798
      %v3172 = vmul.f32 %v3142, %v799
      %v3173 = vmul.f32 %v3127, %v798
      %v3174 = vmul.f32 %v3143, %v799
      %v3175 = vmul.f32 %v3128, %v798
      %v3176 = vmul.f32 %v3144, %v799
      %3177 = vrot.lane.b32.xlu0 %v3001, 1
      %v3178 = vpop.permute.xlu0 %3177
      %3179 = vrot.lane.b32.xlu0 %v3003, 1
      %v3180 = vpop.permute.xlu0 %3179
      %3181 = vrot.lane.b32.xlu0 %v3005, 1
      %v3182 = vpop.permute.xlu0 %3181
      %3183 = vrot.lane.b32.xlu0 %v3007, 1
      %v3184 = vpop.permute.xlu0 %3183
      %3185 = vrot.lane.b32.xlu0 %v3009, 1
      %v3186 = vpop.permute.xlu0 %3185
      %3187 = vrot.lane.b32.xlu0 %v3011, 1
      %v3188 = vpop.permute.xlu0 %3187
      %3189 = vrot.lane.b32.xlu0 %v3013, 1
      %v3190 = vpop.permute.xlu0 %3189
      %3191 = vrot.lane.b32.xlu0 %v3015, 1
      %v3192 = vpop.permute.xlu0 %3191
      %3193 = vrot.lane.b32.xlu0 %v3017, 1
      %v3194 = vpop.permute.xlu0 %3193
      %3195 = vrot.lane.b32.xlu0 %v3019, 1
      %v3196 = vpop.permute.xlu0 %3195
      %3197 = vrot.lane.b32.xlu0 %v3021, 1
      %v3198 = vpop.permute.xlu0 %3197
      %3199 = vrot.lane.b32.xlu0 %v3023, 1
      %v3200 = vpop.permute.xlu0 %3199
      %3201 = vrot.lane.b32.xlu0 %v3025, 1
      %v3202 = vpop.permute.xlu0 %3201
      %3203 = vrot.lane.b32.xlu0 %v3027, 1
      %v3204 = vpop.permute.xlu0 %3203
      %3205 = vrot.lane.b32.xlu0 %v3029, 1
      %v3206 = vpop.permute.xlu0 %3205
      %3207 = vrot.lane.b32.xlu0 %v3031, 1
      %v3208 = vpop.permute.xlu0 %3207
      %3209 = vrot.lane.b32.xlu0 %v3002, 1
      %v3210 = vpop.permute.xlu0 %3209
      %3211 = vrot.lane.b32.xlu0 %v3004, 1
      %v3212 = vpop.permute.xlu0 %3211
      %3213 = vrot.lane.b32.xlu0 %v3006, 1
      %v3214 = vpop.permute.xlu0 %3213
      %3215 = vrot.lane.b32.xlu0 %v3008, 1
      %v3216 = vpop.permute.xlu0 %3215
      %3217 = vrot.lane.b32.xlu0 %v3010, 1
      %v3218 = vpop.permute.xlu0 %3217
      %3219 = vrot.lane.b32.xlu0 %v3012, 1
      %v3220 = vpop.permute.xlu0 %3219
      %3221 = vrot.lane.b32.xlu0 %v3014, 1
      %v3222 = vpop.permute.xlu0 %3221
      %3223 = vrot.lane.b32.xlu0 %v3016, 1
      %v3224 = vpop.permute.xlu0 %3223
      %3225 = vrot.lane.b32.xlu0 %v3018, 1
      %v3226 = vpop.permute.xlu0 %3225
      %3227 = vrot.lane.b32.xlu0 %v3020, 1
      %v3228 = vpop.permute.xlu0 %3227
      %3229 = vrot.lane.b32.xlu0 %v3022, 1
      %v3230 = vpop.permute.xlu0 %3229
      %3231 = vrot.lane.b32.xlu0 %v3024, 1
      %v3232 = vpop.permute.xlu0 %3231
      %3233 = vrot.lane.b32.xlu0 %v3026, 1
      %v3234 = vpop.permute.xlu0 %3233
      %3235 = vrot.lane.b32.xlu0 %v3028, 1
      %v3236 = vpop.permute.xlu0 %3235
      %3237 = vrot.lane.b32.xlu0 %v3030, 1
      %v3238 = vpop.permute.xlu0 %3237
      %3239 = vrot.lane.b32.xlu0 %v3032, 1
      %v3240 = vpop.permute.xlu0 %3239
      %v3241 = vsel %vm896, %v3178, %v3210
      %v3242 = vsel %vm896, %v3180, %v3212
      %v3243 = vsel %vm896, %v3182, %v3214
      %v3244 = vsel %vm896, %v3184, %v3216
      %v3245 = vsel %vm896, %v3186, %v3218
      %v3246 = vsel %vm896, %v3188, %v3220
      %v3247 = vsel %vm896, %v3190, %v3222
      %v3248 = vsel %vm896, %v3192, %v3224
      %v3249 = vsel %vm896, %v3194, %v3226
      %v3250 = vsel %vm896, %v3196, %v3228
      %v3251 = vsel %vm896, %v3198, %v3230
      %v3252 = vsel %vm896, %v3200, %v3232
      %v3253 = vsel %vm896, %v3202, %v3234
      %v3254 = vsel %vm896, %v3204, %v3236
      %v3255 = vsel %vm896, %v3206, %v3238
      %v3256 = vsel %vm896, %v3208, %v3240
      %v3257 = vsel %vm896, %v3210, %v3178
      %v3258 = vsel %vm896, %v3212, %v3180
      %v3259 = vsel %vm896, %v3214, %v3182
      %v3260 = vsel %vm896, %v3216, %v3184
      %v3261 = vsel %vm896, %v3218, %v3186
      %v3262 = vsel %vm896, %v3220, %v3188
      %v3263 = vsel %vm896, %v3222, %v3190
      %v3264 = vsel %vm896, %v3224, %v3192
      %v3265 = vsel %vm896, %v3226, %v3194
      %v3266 = vsel %vm896, %v3228, %v3196
      %v3267 = vsel %vm896, %v3230, %v3198
      %v3268 = vsel %vm896, %v3232, %v3200
      %v3269 = vsel %vm896, %v3234, %v3202
      %v3270 = vsel %vm896, %v3236, %v3204
      %v3271 = vsel %vm896, %v3238, %v3206
      %v3272 = vsel %vm896, %v3240, %v3208
      %v3273 = vmul.f32 %v3257, %v929
      %v3274 = vmul.f32 %v3241, %v930
      %v3275 = vmul.f32 %v3258, %v929
      %v3276 = vmul.f32 %v3242, %v930
      %v3277 = vmul.f32 %v3259, %v929
      %v3278 = vmul.f32 %v3243, %v930
      %v3279 = vmul.f32 %v3260, %v929
      %v3280 = vmul.f32 %v3244, %v930
      %v3281 = vmul.f32 %v3261, %v929
      %v3282 = vmul.f32 %v3245, %v930
      %v3283 = vmul.f32 %v3262, %v929
      %v3284 = vmul.f32 %v3246, %v930
      %v3285 = vmul.f32 %v3263, %v929
      %v3286 = vmul.f32 %v3247, %v930
      %v3287 = vmul.f32 %v3264, %v929
      %v3288 = vmul.f32 %v3248, %v930
      %v3289 = vmul.f32 %v3265, %v929
      %v3290 = vmul.f32 %v3249, %v930
      %v3291 = vmul.f32 %v3266, %v929
      %v3292 = vmul.f32 %v3250, %v930
      %v3293 = vmul.f32 %v3267, %v929
      %v3294 = vmul.f32 %v3251, %v930
      %v3295 = vmul.f32 %v3268, %v929
      %v3296 = vmul.f32 %v3252, %v930
      %v3297 = vmul.f32 %v3269, %v929
      %v3298 = vmul.f32 %v3253, %v930
      %v3299 = vmul.f32 %v3270, %v929
      %v3300 = vmul.f32 %v3254, %v930
      %v3301 = vmul.f32 %v3271, %v929
      %v3302 = vmul.f32 %v3255, %v930
      %v3303 = vmul.f32 %v3272, %v929
      %v3304 = vmul.f32 %v3256, %v930
      %3306 = vset.pattern.permute.xlu0 4
      %3307 = vperm.xlu0 %3306, %v3033
      %v3308 = vpop.permute.xlu0 %3307
      %3311 = vset.pattern.permute.xlu0 4
      %3312 = vperm.xlu0 %3311, %v3034
      %v3313 = vpop.permute.xlu0 %3312
      %3316 = vset.pattern.permute.xlu0 4
      %3317 = vperm.xlu0 %3316, %v3035
      %v3318 = vpop.permute.xlu0 %3317
      %3321 = vset.pattern.permute.xlu0 4
      %3322 = vperm.xlu0 %3321, %v3036
      %v3323 = vpop.permute.xlu0 %3322
      %3326 = vset.pattern.permute.xlu0 4
      %3327 = vperm.xlu0 %3326, %v3037
      %v3328 = vpop.permute.xlu0 %3327
      %3331 = vset.pattern.permute.xlu0 4
      %3332 = vperm.xlu0 %3331, %v3038
      %v3333 = vpop.permute.xlu0 %3332
      %3336 = vset.pattern.permute.xlu0 4
      %3337 = vperm.xlu0 %3336, %v3039
      %v3338 = vpop.permute.xlu0 %3337
      %3341 = vset.pattern.permute.xlu0 4
      %3342 = vperm.xlu0 %3341, %v3040
      %v3343 = vpop.permute.xlu0 %3342
      %3346 = vset.pattern.permute.xlu0 4
      %3347 = vperm.xlu0 %3346, %v3041
      %v3348 = vpop.permute.xlu0 %3347
      %3351 = vset.pattern.permute.xlu0 4
      %3352 = vperm.xlu0 %3351, %v3042
      %v3353 = vpop.permute.xlu0 %3352
      %3356 = vset.pattern.permute.xlu0 4
      %3357 = vperm.xlu0 %3356, %v3043
      %v3358 = vpop.permute.xlu0 %3357
      %3361 = vset.pattern.permute.xlu0 4
      %3362 = vperm.xlu0 %3361, %v3044
      %v3363 = vpop.permute.xlu0 %3362
      %3366 = vset.pattern.permute.xlu0 4
      %3367 = vperm.xlu0 %3366, %v3045
      %v3368 = vpop.permute.xlu0 %3367
      %3371 = vset.pattern.permute.xlu0 4
      %3372 = vperm.xlu0 %3371, %v3046
      %v3373 = vpop.permute.xlu0 %3372
      %3376 = vset.pattern.permute.xlu0 4
      %3377 = vperm.xlu0 %3376, %v3047
      %v3378 = vpop.permute.xlu0 %3377
      %3381 = vset.pattern.permute.xlu0 4
      %3382 = vperm.xlu0 %3381, %v3048
      %v3383 = vpop.permute.xlu0 %3382
      %v3385 = vmul.f32 %v3001, %v3308
      %v3386 = vmul.f32 %v3002, %v3308
      %v3387 = vmul.f32 %v3003, %v3313
      %v3388 = vmul.f32 %v3004, %v3313
      %v3389 = vmul.f32 %v3005, %v3318
      %v3390 = vmul.f32 %v3006, %v3318
      %v3391 = vmul.f32 %v3007, %v3323
      %v3392 = vmul.f32 %v3008, %v3323
      %v3393 = vmul.f32 %v3009, %v3328
      %v3394 = vmul.f32 %v3010, %v3328
      %v3395 = vmul.f32 %v3011, %v3333
      %v3396 = vmul.f32 %v3012, %v3333
      %v3397 = vmul.f32 %v3013, %v3338
      %v3398 = vmul.f32 %v3014, %v3338
      %v3399 = vmul.f32 %v3015, %v3343
      %v3400 = vmul.f32 %v3016, %v3343
      %v3401 = vmul.f32 %v3017, %v3348
      %v3402 = vmul.f32 %v3018, %v3348
      %v3403 = vmul.f32 %v3019, %v3353
      %v3404 = vmul.f32 %v3020, %v3353
      %v3405 = vmul.f32 %v3021, %v3358
      %v3406 = vmul.f32 %v3022, %v3358
      %v3407 = vmul.f32 %v3023, %v3363
      %v3408 = vmul.f32 %v3024, %v3363
      %v3409 = vmul.f32 %v3025, %v3368
      %v3410 = vmul.f32 %v3026, %v3368
      %v3411 = vmul.f32 %v3027, %v3373
      %v3412 = vmul.f32 %v3028, %v3373
      %v3413 = vmul.f32 %v3029, %v3378
      %v3414 = vmul.f32 %v3030, %v3378
      %v3415 = vmul.f32 %v3031, %v3383
      %v3416 = vmul.f32 %v3032, %v3383
      %3417 = vset.pattern.permute.xlu0 3
      %3418 = vperm.xlu0 %3417, %v3033
      %v3419 = vpop.permute.xlu0 %3418
      %3421 = vset.pattern.permute.xlu0 3
      %3422 = vperm.xlu0 %3421, %v3034
      %v3423 = vpop.permute.xlu0 %3422
      %3425 = vset.pattern.permute.xlu0 3
      %3426 = vperm.xlu0 %3425, %v3035
      %v3427 = vpop.permute.xlu0 %3426
      %3429 = vset.pattern.permute.xlu0 3
      %3430 = vperm.xlu0 %3429, %v3036
      %v3431 = vpop.permute.xlu0 %3430
      %3433 = vset.pattern.permute.xlu0 3
      %3434 = vperm.xlu0 %3433, %v3037
      %v3435 = vpop.permute.xlu0 %3434
      %3437 = vset.pattern.permute.xlu0 3
      %3438 = vperm.xlu0 %3437, %v3038
      %v3439 = vpop.permute.xlu0 %3438
      %3441 = vset.pattern.permute.xlu0 3
      %3442 = vperm.xlu0 %3441, %v3039
      %v3443 = vpop.permute.xlu0 %3442
      %3445 = vset.pattern.permute.xlu0 3
      %3446 = vperm.xlu0 %3445, %v3040
      %v3447 = vpop.permute.xlu0 %3446
      %3449 = vset.pattern.permute.xlu0 3
      %3450 = vperm.xlu0 %3449, %v3041
      %v3451 = vpop.permute.xlu0 %3450
      %3453 = vset.pattern.permute.xlu0 3
      %3454 = vperm.xlu0 %3453, %v3042
      %v3455 = vpop.permute.xlu0 %3454
      %3457 = vset.pattern.permute.xlu0 3
      %3458 = vperm.xlu0 %3457, %v3043
      %v3459 = vpop.permute.xlu0 %3458
      %3461 = vset.pattern.permute.xlu0 3
      %3462 = vperm.xlu0 %3461, %v3044
      %v3463 = vpop.permute.xlu0 %3462
      %3465 = vset.pattern.permute.xlu0 3
      %3466 = vperm.xlu0 %3465, %v3045
      %v3467 = vpop.permute.xlu0 %3466
      %3469 = vset.pattern.permute.xlu0 3
      %3470 = vperm.xlu0 %3469, %v3046
      %v3471 = vpop.permute.xlu0 %3470
      %3473 = vset.pattern.permute.xlu0 3
      %3474 = vperm.xlu0 %3473, %v3047
      %v3475 = vpop.permute.xlu0 %3474
      %3477 = vset.pattern.permute.xlu0 3
      %3478 = vperm.xlu0 %3477, %v3048
      %v3479 = vpop.permute.xlu0 %3478
      %v3481 = vmul.f32 %v3273, %v3419
      %v3482 = vmul.f32 %v3274, %v3419
      %v3483 = vmul.f32 %v3275, %v3423
      %v3484 = vmul.f32 %v3276, %v3423
      %v3485 = vmul.f32 %v3277, %v3427
      %v3486 = vmul.f32 %v3278, %v3427
      %v3487 = vmul.f32 %v3279, %v3431
      %v3488 = vmul.f32 %v3280, %v3431
      %v3489 = vmul.f32 %v3281, %v3435
      %v3490 = vmul.f32 %v3282, %v3435
      %v3491 = vmul.f32 %v3283, %v3439
      %v3492 = vmul.f32 %v3284, %v3439
      %v3493 = vmul.f32 %v3285, %v3443
      %v3494 = vmul.f32 %v3286, %v3443
      %v3495 = vmul.f32 %v3287, %v3447
      %v3496 = vmul.f32 %v3288, %v3447
      %v3497 = vmul.f32 %v3289, %v3451
      %v3498 = vmul.f32 %v3290, %v3451
      %v3499 = vmul.f32 %v3291, %v3455
      %v3500 = vmul.f32 %v3292, %v3455
      %v3501 = vmul.f32 %v3293, %v3459
      %v3502 = vmul.f32 %v3294, %v3459
      %v3503 = vmul.f32 %v3295, %v3463
      %v3504 = vmul.f32 %v3296, %v3463
      %v3505 = vmul.f32 %v3297, %v3467
      %v3506 = vmul.f32 %v3298, %v3467
      %v3507 = vmul.f32 %v3299, %v3471
      %v3508 = vmul.f32 %v3300, %v3471
      %v3509 = vmul.f32 %v3301, %v3475
      %v3510 = vmul.f32 %v3302, %v3475
      %v3511 = vmul.f32 %v3303, %v3479
      %v3512 = vmul.f32 %v3304, %v3479
      %v3513 = vadd.f32 %v3385, %v3481
      %v3514 = vadd.f32 %v3386, %v3482
      %v3515 = vadd.f32 %v3387, %v3483
      %v3516 = vadd.f32 %v3388, %v3484
      %v3517 = vadd.f32 %v3389, %v3485
      %v3518 = vadd.f32 %v3390, %v3486
      %v3519 = vadd.f32 %v3391, %v3487
      %v3520 = vadd.f32 %v3392, %v3488
      %v3521 = vadd.f32 %v3393, %v3489
      %v3522 = vadd.f32 %v3394, %v3490
      %v3523 = vadd.f32 %v3395, %v3491
      %v3524 = vadd.f32 %v3396, %v3492
      %v3525 = vadd.f32 %v3397, %v3493
      %v3526 = vadd.f32 %v3398, %v3494
      %v3527 = vadd.f32 %v3399, %v3495
      %v3528 = vadd.f32 %v3400, %v3496
      %v3529 = vadd.f32 %v3401, %v3497
      %v3530 = vadd.f32 %v3402, %v3498
      %v3531 = vadd.f32 %v3403, %v3499
      %v3532 = vadd.f32 %v3404, %v3500
      %v3533 = vadd.f32 %v3405, %v3501
      %v3534 = vadd.f32 %v3406, %v3502
      %v3535 = vadd.f32 %v3407, %v3503
      %v3536 = vadd.f32 %v3408, %v3504
      %v3537 = vadd.f32 %v3409, %v3505
      %v3538 = vadd.f32 %v3410, %v3506
      %v3539 = vadd.f32 %v3411, %v3507
      %v3540 = vadd.f32 %v3412, %v3508
      %v3541 = vadd.f32 %v3413, %v3509
      %v3542 = vadd.f32 %v3414, %v3510
      %v3543 = vadd.f32 %v3415, %v3511
      %v3544 = vadd.f32 %v3416, %v3512
      %3545 = vset.pattern.permute.xlu0 5
      %3546 = vperm.xlu0 %3545, %v3033
      %v3547 = vpop.permute.xlu0 %3546
      %3549 = vset.pattern.permute.xlu0 5
      %3550 = vperm.xlu0 %3549, %v3034
      %v3551 = vpop.permute.xlu0 %3550
      %3553 = vset.pattern.permute.xlu0 5
      %3554 = vperm.xlu0 %3553, %v3035
      %v3555 = vpop.permute.xlu0 %3554
      %3557 = vset.pattern.permute.xlu0 5
      %3558 = vperm.xlu0 %3557, %v3036
      %v3559 = vpop.permute.xlu0 %3558
      %3561 = vset.pattern.permute.xlu0 5
      %3562 = vperm.xlu0 %3561, %v3037
      %v3563 = vpop.permute.xlu0 %3562
      %3565 = vset.pattern.permute.xlu0 5
      %3566 = vperm.xlu0 %3565, %v3038
      %v3567 = vpop.permute.xlu0 %3566
      %3569 = vset.pattern.permute.xlu0 5
      %3570 = vperm.xlu0 %3569, %v3039
      %v3571 = vpop.permute.xlu0 %3570
      %3573 = vset.pattern.permute.xlu0 5
      %3574 = vperm.xlu0 %3573, %v3040
      %v3575 = vpop.permute.xlu0 %3574
      %3577 = vset.pattern.permute.xlu0 5
      %3578 = vperm.xlu0 %3577, %v3041
      %v3579 = vpop.permute.xlu0 %3578
      %3581 = vset.pattern.permute.xlu0 5
      %3582 = vperm.xlu0 %3581, %v3042
      %v3583 = vpop.permute.xlu0 %3582
      %3585 = vset.pattern.permute.xlu0 5
      %3586 = vperm.xlu0 %3585, %v3043
      %v3587 = vpop.permute.xlu0 %3586
      %3589 = vset.pattern.permute.xlu0 5
      %3590 = vperm.xlu0 %3589, %v3044
      %v3591 = vpop.permute.xlu0 %3590
      %3593 = vset.pattern.permute.xlu0 5
      %3594 = vperm.xlu0 %3593, %v3045
      %v3595 = vpop.permute.xlu0 %3594
      %3597 = vset.pattern.permute.xlu0 5
      %3598 = vperm.xlu0 %3597, %v3046
      %v3599 = vpop.permute.xlu0 %3598
      %3601 = vset.pattern.permute.xlu0 5
      %3602 = vperm.xlu0 %3601, %v3047
      %v3603 = vpop.permute.xlu0 %3602
      %3605 = vset.pattern.permute.xlu0 5
      %3606 = vperm.xlu0 %3605, %v3048
      %v3607 = vpop.permute.xlu0 %3606
      %v3609 = vmul.f32 %v3145, %v3547
      %v3610 = vmul.f32 %v3146, %v3547
      %v3611 = vmul.f32 %v3147, %v3551
      %v3612 = vmul.f32 %v3148, %v3551
      %v3613 = vmul.f32 %v3149, %v3555
      %v3614 = vmul.f32 %v3150, %v3555
      %v3615 = vmul.f32 %v3151, %v3559
      %v3616 = vmul.f32 %v3152, %v3559
      %v3617 = vmul.f32 %v3153, %v3563
      %v3618 = vmul.f32 %v3154, %v3563
      %v3619 = vmul.f32 %v3155, %v3567
      %v3620 = vmul.f32 %v3156, %v3567
      %v3621 = vmul.f32 %v3157, %v3571
      %v3622 = vmul.f32 %v3158, %v3571
      %v3623 = vmul.f32 %v3159, %v3575
      %v3624 = vmul.f32 %v3160, %v3575
      %v3625 = vmul.f32 %v3161, %v3579
      %v3626 = vmul.f32 %v3162, %v3579
      %v3627 = vmul.f32 %v3163, %v3583
      %v3628 = vmul.f32 %v3164, %v3583
      %v3629 = vmul.f32 %v3165, %v3587
      %v3630 = vmul.f32 %v3166, %v3587
      %v3631 = vmul.f32 %v3167, %v3591
      %v3632 = vmul.f32 %v3168, %v3591
      %v3633 = vmul.f32 %v3169, %v3595
      %v3634 = vmul.f32 %v3170, %v3595
      %v3635 = vmul.f32 %v3171, %v3599
      %v3636 = vmul.f32 %v3172, %v3599
      %v3637 = vmul.f32 %v3173, %v3603
      %v3638 = vmul.f32 %v3174, %v3603
      %v3639 = vmul.f32 %v3175, %v3607
      %v3640 = vmul.f32 %v3176, %v3607
      %v3641 = vadd.f32 %v3513, %v3609
      %v3642 = vadd.f32 %v3514, %v3610
      %v3643 = vadd.f32 %v3515, %v3611
      %v3644 = vadd.f32 %v3516, %v3612
      %v3645 = vadd.f32 %v3517, %v3613
      %v3646 = vadd.f32 %v3518, %v3614
      %v3647 = vadd.f32 %v3519, %v3615
      %v3648 = vadd.f32 %v3520, %v3616
      %v3649 = vadd.f32 %v3521, %v3617
      %v3650 = vadd.f32 %v3522, %v3618
      %v3651 = vadd.f32 %v3523, %v3619
      %v3652 = vadd.f32 %v3524, %v3620
      %v3653 = vadd.f32 %v3525, %v3621
      %v3654 = vadd.f32 %v3526, %v3622
      %v3655 = vadd.f32 %v3527, %v3623
      %v3656 = vadd.f32 %v3528, %v3624
      %v3657 = vadd.f32 %v3529, %v3625
      %v3658 = vadd.f32 %v3530, %v3626
      %v3659 = vadd.f32 %v3531, %v3627
      %v3660 = vadd.f32 %v3532, %v3628
      %v3661 = vadd.f32 %v3533, %v3629
      %v3662 = vadd.f32 %v3534, %v3630
      %v3663 = vadd.f32 %v3535, %v3631
      %v3664 = vadd.f32 %v3536, %v3632
      %v3665 = vadd.f32 %v3537, %v3633
      %v3666 = vadd.f32 %v3538, %v3634
      %v3667 = vadd.f32 %v3539, %v3635
      %v3668 = vadd.f32 %v3540, %v3636
      %v3669 = vadd.f32 %v3541, %v3637
      %v3670 = vadd.f32 %v3542, %v3638
      %v3671 = vadd.f32 %v3543, %v3639
      %v3672 = vadd.f32 %v3544, %v3640
      %3673 = vrot.lane.b32.xlu0 %v3273, 112
      %v3674 = vpop.permute.xlu0 %3673
      %3675 = vrot.lane.b32.xlu0 %v3275, 112
      %v3676 = vpop.permute.xlu0 %3675
      %3677 = vrot.lane.b32.xlu0 %v3277, 112
      %v3678 = vpop.permute.xlu0 %3677
      %3679 = vrot.lane.b32.xlu0 %v3279, 112
      %v3680 = vpop.permute.xlu0 %3679
      %3681 = vrot.lane.b32.xlu0 %v3281, 112
      %v3682 = vpop.permute.xlu0 %3681
      %3683 = vrot.lane.b32.xlu0 %v3283, 112
      %v3684 = vpop.permute.xlu0 %3683
      %3685 = vrot.lane.b32.xlu0 %v3285, 112
      %v3686 = vpop.permute.xlu0 %3685
      %3687 = vrot.lane.b32.xlu0 %v3287, 112
      %v3688 = vpop.permute.xlu0 %3687
      %3689 = vrot.lane.b32.xlu0 %v3289, 112
      %v3690 = vpop.permute.xlu0 %3689
      %3691 = vrot.lane.b32.xlu0 %v3291, 112
      %v3692 = vpop.permute.xlu0 %3691
      %3693 = vrot.lane.b32.xlu0 %v3293, 112
      %v3694 = vpop.permute.xlu0 %3693
      %3695 = vrot.lane.b32.xlu0 %v3295, 112
      %v3696 = vpop.permute.xlu0 %3695
      %3697 = vrot.lane.b32.xlu0 %v3297, 112
      %v3698 = vpop.permute.xlu0 %3697
      %3699 = vrot.lane.b32.xlu0 %v3299, 112
      %v3700 = vpop.permute.xlu0 %3699
      %3701 = vrot.lane.b32.xlu0 %v3301, 112
      %v3702 = vpop.permute.xlu0 %3701
      %3703 = vrot.lane.b32.xlu0 %v3303, 112
      %v3704 = vpop.permute.xlu0 %3703
      %3705 = vrot.lane.b32.xlu0 %v3274, 112
      %v3706 = vpop.permute.xlu0 %3705
      %3707 = vrot.lane.b32.xlu0 %v3276, 112
      %v3708 = vpop.permute.xlu0 %3707
      %3709 = vrot.lane.b32.xlu0 %v3278, 112
      %v3710 = vpop.permute.xlu0 %3709
      %3711 = vrot.lane.b32.xlu0 %v3280, 112
      %v3712 = vpop.permute.xlu0 %3711
      %3713 = vrot.lane.b32.xlu0 %v3282, 112
      %v3714 = vpop.permute.xlu0 %3713
      %3715 = vrot.lane.b32.xlu0 %v3284, 112
      %v3716 = vpop.permute.xlu0 %3715
      %3717 = vrot.lane.b32.xlu0 %v3286, 112
      %v3718 = vpop.permute.xlu0 %3717
      %3719 = vrot.lane.b32.xlu0 %v3288, 112
      %v3720 = vpop.permute.xlu0 %3719
      %3721 = vrot.lane.b32.xlu0 %v3290, 112
      %v3722 = vpop.permute.xlu0 %3721
      %3723 = vrot.lane.b32.xlu0 %v3292, 112
      %v3724 = vpop.permute.xlu0 %3723
      %3725 = vrot.lane.b32.xlu0 %v3294, 112
      %v3726 = vpop.permute.xlu0 %3725
      %3727 = vrot.lane.b32.xlu0 %v3296, 112
      %v3728 = vpop.permute.xlu0 %3727
      %3729 = vrot.lane.b32.xlu0 %v3298, 112
      %v3730 = vpop.permute.xlu0 %3729
      %3731 = vrot.lane.b32.xlu0 %v3300, 112
      %v3732 = vpop.permute.xlu0 %3731
      %3733 = vrot.lane.b32.xlu0 %v3302, 112
      %v3734 = vpop.permute.xlu0 %3733
      %3735 = vrot.lane.b32.xlu0 %v3304, 112
      %v3736 = vpop.permute.xlu0 %3735
      %v3737 = vsel %vm1395, %v3674, %v3706
      %v3738 = vsel %vm1395, %v3676, %v3708
      %v3739 = vsel %vm1395, %v3678, %v3710
      %v3740 = vsel %vm1395, %v3680, %v3712
      %v3741 = vsel %vm1395, %v3682, %v3714
      %v3742 = vsel %vm1395, %v3684, %v3716
      %v3743 = vsel %vm1395, %v3686, %v3718
      %v3744 = vsel %vm1395, %v3688, %v3720
      %v3745 = vsel %vm1395, %v3690, %v3722
      %v3746 = vsel %vm1395, %v3692, %v3724
      %v3747 = vsel %vm1395, %v3694, %v3726
      %v3748 = vsel %vm1395, %v3696, %v3728
      %v3749 = vsel %vm1395, %v3698, %v3730
      %v3750 = vsel %vm1395, %v3700, %v3732
      %v3751 = vsel %vm1395, %v3702, %v3734
      %v3752 = vsel %vm1395, %v3704, %v3736
      %v3753 = vsel %vm1395, %v3706, %v3674
      %v3754 = vsel %vm1395, %v3708, %v3676
      %v3755 = vsel %vm1395, %v3710, %v3678
      %v3756 = vsel %vm1395, %v3712, %v3680
      %v3757 = vsel %vm1395, %v3714, %v3682
      %v3758 = vsel %vm1395, %v3716, %v3684
      %v3759 = vsel %vm1395, %v3718, %v3686
      %v3760 = vsel %vm1395, %v3720, %v3688
      %v3761 = vsel %vm1395, %v3722, %v3690
      %v3762 = vsel %vm1395, %v3724, %v3692
      %v3763 = vsel %vm1395, %v3726, %v3694
      %v3764 = vsel %vm1395, %v3728, %v3696
      %v3765 = vsel %vm1395, %v3730, %v3698
      %v3766 = vsel %vm1395, %v3732, %v3700
      %v3767 = vsel %vm1395, %v3734, %v3702
      %v3768 = vsel %vm1395, %v3736, %v3704
      %v3769 = vmul.f32 %v3737, %v1428
      %v3770 = vmul.f32 %v3753, %v1429
      %v3771 = vmul.f32 %v3738, %v1428
      %v3772 = vmul.f32 %v3754, %v1429
      %v3773 = vmul.f32 %v3739, %v1428
      %v3774 = vmul.f32 %v3755, %v1429
      %v3775 = vmul.f32 %v3740, %v1428
      %v3776 = vmul.f32 %v3756, %v1429
      %v3777 = vmul.f32 %v3741, %v1428
      %v3778 = vmul.f32 %v3757, %v1429
      %v3779 = vmul.f32 %v3742, %v1428
      %v3780 = vmul.f32 %v3758, %v1429
      %v3781 = vmul.f32 %v3743, %v1428
      %v3782 = vmul.f32 %v3759, %v1429
      %v3783 = vmul.f32 %v3744, %v1428
      %v3784 = vmul.f32 %v3760, %v1429
      %v3785 = vmul.f32 %v3745, %v1428
      %v3786 = vmul.f32 %v3761, %v1429
      %v3787 = vmul.f32 %v3746, %v1428
      %v3788 = vmul.f32 %v3762, %v1429
      %v3789 = vmul.f32 %v3747, %v1428
      %v3790 = vmul.f32 %v3763, %v1429
      %v3791 = vmul.f32 %v3748, %v1428
      %v3792 = vmul.f32 %v3764, %v1429
      %v3793 = vmul.f32 %v3749, %v1428
      %v3794 = vmul.f32 %v3765, %v1429
      %v3795 = vmul.f32 %v3750, %v1428
      %v3796 = vmul.f32 %v3766, %v1429
      %v3797 = vmul.f32 %v3751, %v1428
      %v3798 = vmul.f32 %v3767, %v1429
      %v3799 = vmul.f32 %v3752, %v1428
      %v3800 = vmul.f32 %v3768, %v1429
      %3801 = vset.pattern.permute.xlu0 6
      %3802 = vperm.xlu0 %3801, %v3033
      %v3803 = vpop.permute.xlu0 %3802
      %3805 = vset.pattern.permute.xlu0 6
      %3806 = vperm.xlu0 %3805, %v3034
      %v3807 = vpop.permute.xlu0 %3806
      %3809 = vset.pattern.permute.xlu0 6
      %3810 = vperm.xlu0 %3809, %v3035
      %v3811 = vpop.permute.xlu0 %3810
      %3813 = vset.pattern.permute.xlu0 6
      %3814 = vperm.xlu0 %3813, %v3036
      %v3815 = vpop.permute.xlu0 %3814
      %3817 = vset.pattern.permute.xlu0 6
      %3818 = vperm.xlu0 %3817, %v3037
      %v3819 = vpop.permute.xlu0 %3818
      %3821 = vset.pattern.permute.xlu0 6
      %3822 = vperm.xlu0 %3821, %v3038
      %v3823 = vpop.permute.xlu0 %3822
      %3825 = vset.pattern.permute.xlu0 6
      %3826 = vperm.xlu0 %3825, %v3039
      %v3827 = vpop.permute.xlu0 %3826
      %3829 = vset.pattern.permute.xlu0 6
      %3830 = vperm.xlu0 %3829, %v3040
      %v3831 = vpop.permute.xlu0 %3830
      %3833 = vset.pattern.permute.xlu0 6
      %3834 = vperm.xlu0 %3833, %v3041
      %v3835 = vpop.permute.xlu0 %3834
      %3837 = vset.pattern.permute.xlu0 6
      %3838 = vperm.xlu0 %3837, %v3042
      %v3839 = vpop.permute.xlu0 %3838
      %3841 = vset.pattern.permute.xlu0 6
      %3842 = vperm.xlu0 %3841, %v3043
      %v3843 = vpop.permute.xlu0 %3842
      %3845 = vset.pattern.permute.xlu0 6
      %3846 = vperm.xlu0 %3845, %v3044
      %v3847 = vpop.permute.xlu0 %3846
      %3849 = vset.pattern.permute.xlu0 6
      %3850 = vperm.xlu0 %3849, %v3045
      %v3851 = vpop.permute.xlu0 %3850
      %3853 = vset.pattern.permute.xlu0 6
      %3854 = vperm.xlu0 %3853, %v3046
      %v3855 = vpop.permute.xlu0 %3854
      %3857 = vset.pattern.permute.xlu0 6
      %3858 = vperm.xlu0 %3857, %v3047
      %v3859 = vpop.permute.xlu0 %3858
      %3861 = vset.pattern.permute.xlu0 6
      %3862 = vperm.xlu0 %3861, %v3048
      %v3863 = vpop.permute.xlu0 %3862
      %v3865 = vmul.f32 %v3769, %v3803
      %v3866 = vmul.f32 %v3770, %v3803
      %v3867 = vmul.f32 %v3771, %v3807
      %v3868 = vmul.f32 %v3772, %v3807
      %v3869 = vmul.f32 %v3773, %v3811
      %v3870 = vmul.f32 %v3774, %v3811
      %v3871 = vmul.f32 %v3775, %v3815
      %v3872 = vmul.f32 %v3776, %v3815
      %v3873 = vmul.f32 %v3777, %v3819
      %v3874 = vmul.f32 %v3778, %v3819
      %v3875 = vmul.f32 %v3779, %v3823
      %v3876 = vmul.f32 %v3780, %v3823
      %v3877 = vmul.f32 %v3781, %v3827
      %v3878 = vmul.f32 %v3782, %v3827
      %v3879 = vmul.f32 %v3783, %v3831
      %v3880 = vmul.f32 %v3784, %v3831
      %v3881 = vmul.f32 %v3785, %v3835
      %v3882 = vmul.f32 %v3786, %v3835
      %v3883 = vmul.f32 %v3787, %v3839
      %v3884 = vmul.f32 %v3788, %v3839
      %v3885 = vmul.f32 %v3789, %v3843
      %v3886 = vmul.f32 %v3790, %v3843
      %v3887 = vmul.f32 %v3791, %v3847
      %v3888 = vmul.f32 %v3792, %v3847
      %v3889 = vmul.f32 %v3793, %v3851
      %v3890 = vmul.f32 %v3794, %v3851
      %v3891 = vmul.f32 %v3795, %v3855
      %v3892 = vmul.f32 %v3796, %v3855
      %v3893 = vmul.f32 %v3797, %v3859
      %v3894 = vmul.f32 %v3798, %v3859
      %v3895 = vmul.f32 %v3799, %v3863
      %v3896 = vmul.f32 %v3800, %v3863
      %v3897 = vadd.f32 %v3641, %v3865
      %v3898 = vadd.f32 %v3642, %v3866
      %v3899 = vadd.f32 %v3643, %v3867
      %v3900 = vadd.f32 %v3644, %v3868
      %v3901 = vadd.f32 %v3645, %v3869
      %v3902 = vadd.f32 %v3646, %v3870
      %v3903 = vadd.f32 %v3647, %v3871
      %v3904 = vadd.f32 %v3648, %v3872
      %v3905 = vadd.f32 %v3649, %v3873
      %v3906 = vadd.f32 %v3650, %v3874
      %v3907 = vadd.f32 %v3651, %v3875
      %v3908 = vadd.f32 %v3652, %v3876
      %v3909 = vadd.f32 %v3653, %v3877
      %v3910 = vadd.f32 %v3654, %v3878
      %v3911 = vadd.f32 %v3655, %v3879
      %v3912 = vadd.f32 %v3656, %v3880
      %v3913 = vadd.f32 %v3657, %v3881
      %v3914 = vadd.f32 %v3658, %v3882
      %v3915 = vadd.f32 %v3659, %v3883
      %v3916 = vadd.f32 %v3660, %v3884
      %v3917 = vadd.f32 %v3661, %v3885
      %v3918 = vadd.f32 %v3662, %v3886
      %v3919 = vadd.f32 %v3663, %v3887
      %v3920 = vadd.f32 %v3664, %v3888
      %v3921 = vadd.f32 %v3665, %v3889
      %v3922 = vadd.f32 %v3666, %v3890
      %v3923 = vadd.f32 %v3667, %v3891
      %v3924 = vadd.f32 %v3668, %v3892
      %v3925 = vadd.f32 %v3669, %v3893
      %v3926 = vadd.f32 %v3670, %v3894
      %v3927 = vadd.f32 %v3671, %v3895
      %v3928 = vadd.f32 %v3672, %v3896
      %3929 = vrot.lane.b32.xlu0 %v3001, 112
      %v3930 = vpop.permute.xlu0 %3929
      %3931 = vrot.lane.b32.xlu0 %v3003, 112
      %v3932 = vpop.permute.xlu0 %3931
      %3933 = vrot.lane.b32.xlu0 %v3005, 112
      %v3934 = vpop.permute.xlu0 %3933
      %3935 = vrot.lane.b32.xlu0 %v3007, 112
      %v3936 = vpop.permute.xlu0 %3935
      %3937 = vrot.lane.b32.xlu0 %v3009, 112
      %v3938 = vpop.permute.xlu0 %3937
      %3939 = vrot.lane.b32.xlu0 %v3011, 112
      %v3940 = vpop.permute.xlu0 %3939
      %3941 = vrot.lane.b32.xlu0 %v3013, 112
      %v3942 = vpop.permute.xlu0 %3941
      %3943 = vrot.lane.b32.xlu0 %v3015, 112
      %v3944 = vpop.permute.xlu0 %3943
      %3945 = vrot.lane.b32.xlu0 %v3017, 112
      %v3946 = vpop.permute.xlu0 %3945
      %3947 = vrot.lane.b32.xlu0 %v3019, 112
      %v3948 = vpop.permute.xlu0 %3947
      %3949 = vrot.lane.b32.xlu0 %v3021, 112
      %v3950 = vpop.permute.xlu0 %3949
      %3951 = vrot.lane.b32.xlu0 %v3023, 112
      %v3952 = vpop.permute.xlu0 %3951
      %3953 = vrot.lane.b32.xlu0 %v3025, 112
      %v3954 = vpop.permute.xlu0 %3953
      %3955 = vrot.lane.b32.xlu0 %v3027, 112
      %v3956 = vpop.permute.xlu0 %3955
      %3957 = vrot.lane.b32.xlu0 %v3029, 112
      %v3958 = vpop.permute.xlu0 %3957
      %3959 = vrot.lane.b32.xlu0 %v3031, 112
      %v3960 = vpop.permute.xlu0 %3959
      %3961 = vrot.lane.b32.xlu0 %v3002, 112
      %v3962 = vpop.permute.xlu0 %3961
      %3963 = vrot.lane.b32.xlu0 %v3004, 112
      %v3964 = vpop.permute.xlu0 %3963
      %3965 = vrot.lane.b32.xlu0 %v3006, 112
      %v3966 = vpop.permute.xlu0 %3965
      %3967 = vrot.lane.b32.xlu0 %v3008, 112
      %v3968 = vpop.permute.xlu0 %3967
      %3969 = vrot.lane.b32.xlu0 %v3010, 112
      %v3970 = vpop.permute.xlu0 %3969
      %3971 = vrot.lane.b32.xlu0 %v3012, 112
      %v3972 = vpop.permute.xlu0 %3971
      %3973 = vrot.lane.b32.xlu0 %v3014, 112
      %v3974 = vpop.permute.xlu0 %3973
      %3975 = vrot.lane.b32.xlu0 %v3016, 112
      %v3976 = vpop.permute.xlu0 %3975
      %3977 = vrot.lane.b32.xlu0 %v3018, 112
      %v3978 = vpop.permute.xlu0 %3977
      %3979 = vrot.lane.b32.xlu0 %v3020, 112
      %v3980 = vpop.permute.xlu0 %3979
      %3981 = vrot.lane.b32.xlu0 %v3022, 112
      %v3982 = vpop.permute.xlu0 %3981
      %3983 = vrot.lane.b32.xlu0 %v3024, 112
      %v3984 = vpop.permute.xlu0 %3983
      %3985 = vrot.lane.b32.xlu0 %v3026, 112
      %v3986 = vpop.permute.xlu0 %3985
      %3987 = vrot.lane.b32.xlu0 %v3028, 112
      %v3988 = vpop.permute.xlu0 %3987
      %3989 = vrot.lane.b32.xlu0 %v3030, 112
      %v3990 = vpop.permute.xlu0 %3989
      %3991 = vrot.lane.b32.xlu0 %v3032, 112
      %v3992 = vpop.permute.xlu0 %3991
      %v3993 = vsel %vm1395, %v3930, %v3962
      %v3994 = vsel %vm1395, %v3932, %v3964
      %v3995 = vsel %vm1395, %v3934, %v3966
      %v3996 = vsel %vm1395, %v3936, %v3968
      %v3997 = vsel %vm1395, %v3938, %v3970
      %v3998 = vsel %vm1395, %v3940, %v3972
      %v3999 = vsel %vm1395, %v3942, %v3974
      %v4000 = vsel %vm1395, %v3944, %v3976
      %v4001 = vsel %vm1395, %v3946, %v3978
      %v4002 = vsel %vm1395, %v3948, %v3980
      %v4003 = vsel %vm1395, %v3950, %v3982
      %v4004 = vsel %vm1395, %v3952, %v3984
      %v4005 = vsel %vm1395, %v3954, %v3986
      %v4006 = vsel %vm1395, %v3956, %v3988
      %v4007 = vsel %vm1395, %v3958, %v3990
      %v4008 = vsel %vm1395, %v3960, %v3992
      %v4009 = vsel %vm1395, %v3962, %v3930
      %v4010 = vsel %vm1395, %v3964, %v3932
      %v4011 = vsel %vm1395, %v3966, %v3934
      %v4012 = vsel %vm1395, %v3968, %v3936
      %v4013 = vsel %vm1395, %v3970, %v3938
      %v4014 = vsel %vm1395, %v3972, %v3940
      %v4015 = vsel %vm1395, %v3974, %v3942
      %v4016 = vsel %vm1395, %v3976, %v3944
      %v4017 = vsel %vm1395, %v3978, %v3946
      %v4018 = vsel %vm1395, %v3980, %v3948
      %v4019 = vsel %vm1395, %v3982, %v3950
      %v4020 = vsel %vm1395, %v3984, %v3952
      %v4021 = vsel %vm1395, %v3986, %v3954
      %v4022 = vsel %vm1395, %v3988, %v3956
      %v4023 = vsel %vm1395, %v3990, %v3958
      %v4024 = vsel %vm1395, %v3992, %v3960
      %v4025 = vmul.f32 %v3993, %v1428
      %v4026 = vmul.f32 %v4009, %v1429
      %v4027 = vmul.f32 %v3994, %v1428
      %v4028 = vmul.f32 %v4010, %v1429
      %v4029 = vmul.f32 %v3995, %v1428
      %v4030 = vmul.f32 %v4011, %v1429
      %v4031 = vmul.f32 %v3996, %v1428
      %v4032 = vmul.f32 %v4012, %v1429
      %v4033 = vmul.f32 %v3997, %v1428
      %v4034 = vmul.f32 %v4013, %v1429
      %v4035 = vmul.f32 %v3998, %v1428
      %v4036 = vmul.f32 %v4014, %v1429
      %v4037 = vmul.f32 %v3999, %v1428
      %v4038 = vmul.f32 %v4015, %v1429
      %v4039 = vmul.f32 %v4000, %v1428
      %v4040 = vmul.f32 %v4016, %v1429
      %v4041 = vmul.f32 %v4001, %v1428
      %v4042 = vmul.f32 %v4017, %v1429
      %v4043 = vmul.f32 %v4002, %v1428
      %v4044 = vmul.f32 %v4018, %v1429
      %v4045 = vmul.f32 %v4003, %v1428
      %v4046 = vmul.f32 %v4019, %v1429
      %v4047 = vmul.f32 %v4004, %v1428
      %v4048 = vmul.f32 %v4020, %v1429
      %v4049 = vmul.f32 %v4005, %v1428
      %v4050 = vmul.f32 %v4021, %v1429
      %v4051 = vmul.f32 %v4006, %v1428
      %v4052 = vmul.f32 %v4022, %v1429
      %v4053 = vmul.f32 %v4007, %v1428
      %v4054 = vmul.f32 %v4023, %v1429
      %v4055 = vmul.f32 %v4008, %v1428
      %v4056 = vmul.f32 %v4024, %v1429
      %4057 = vset.pattern.permute.xlu0 7
      %4058 = vperm.xlu0 %4057, %v3033
      %v4059 = vpop.permute.xlu0 %4058
      %4061 = vset.pattern.permute.xlu0 7
      %4062 = vperm.xlu0 %4061, %v3034
      %v4063 = vpop.permute.xlu0 %4062
      %4065 = vset.pattern.permute.xlu0 7
      %4066 = vperm.xlu0 %4065, %v3035
      %v4067 = vpop.permute.xlu0 %4066
      %4069 = vset.pattern.permute.xlu0 7
      %4070 = vperm.xlu0 %4069, %v3036
      %v4071 = vpop.permute.xlu0 %4070
      %4073 = vset.pattern.permute.xlu0 7
      %4074 = vperm.xlu0 %4073, %v3037
      %v4075 = vpop.permute.xlu0 %4074
      %4077 = vset.pattern.permute.xlu0 7
      %4078 = vperm.xlu0 %4077, %v3038
      %v4079 = vpop.permute.xlu0 %4078
      %4081 = vset.pattern.permute.xlu0 7
      %4082 = vperm.xlu0 %4081, %v3039
      %v4083 = vpop.permute.xlu0 %4082
      %4085 = vset.pattern.permute.xlu0 7
      %4086 = vperm.xlu0 %4085, %v3040
      %v4087 = vpop.permute.xlu0 %4086
      %4089 = vset.pattern.permute.xlu0 7
      %4090 = vperm.xlu0 %4089, %v3041
      %v4091 = vpop.permute.xlu0 %4090
      %4093 = vset.pattern.permute.xlu0 7
      %4094 = vperm.xlu0 %4093, %v3042
      %v4095 = vpop.permute.xlu0 %4094
      %4097 = vset.pattern.permute.xlu0 7
      %4098 = vperm.xlu0 %4097, %v3043
      %v4099 = vpop.permute.xlu0 %4098
      %4101 = vset.pattern.permute.xlu0 7
      %4102 = vperm.xlu0 %4101, %v3044
      %v4103 = vpop.permute.xlu0 %4102
      %4105 = vset.pattern.permute.xlu0 7
      %4106 = vperm.xlu0 %4105, %v3045
      %v4107 = vpop.permute.xlu0 %4106
      %4109 = vset.pattern.permute.xlu0 7
      %4110 = vperm.xlu0 %4109, %v3046
      %v4111 = vpop.permute.xlu0 %4110
      %4113 = vset.pattern.permute.xlu0 7
      %4114 = vperm.xlu0 %4113, %v3047
      %v4115 = vpop.permute.xlu0 %4114
      %4117 = vset.pattern.permute.xlu0 7
      %4118 = vperm.xlu0 %4117, %v3048
      %v4119 = vpop.permute.xlu0 %4118
      %v4121 = vmul.f32 %v4025, %v4059
      %v4122 = vmul.f32 %v4026, %v4059
      %v4123 = vmul.f32 %v4027, %v4063
      %v4124 = vmul.f32 %v4028, %v4063
      %v4125 = vmul.f32 %v4029, %v4067
      %v4126 = vmul.f32 %v4030, %v4067
      %v4127 = vmul.f32 %v4031, %v4071
      %v4128 = vmul.f32 %v4032, %v4071
      %v4129 = vmul.f32 %v4033, %v4075
      %v4130 = vmul.f32 %v4034, %v4075
      %v4131 = vmul.f32 %v4035, %v4079
      %v4132 = vmul.f32 %v4036, %v4079
      %v4133 = vmul.f32 %v4037, %v4083
      %v4134 = vmul.f32 %v4038, %v4083
      %v4135 = vmul.f32 %v4039, %v4087
      %v4136 = vmul.f32 %v4040, %v4087
      %v4137 = vmul.f32 %v4041, %v4091
      %v4138 = vmul.f32 %v4042, %v4091
      %v4139 = vmul.f32 %v4043, %v4095
      %v4140 = vmul.f32 %v4044, %v4095
      %v4141 = vmul.f32 %v4045, %v4099
      %v4142 = vmul.f32 %v4046, %v4099
      %v4143 = vmul.f32 %v4047, %v4103
      %v4144 = vmul.f32 %v4048, %v4103
      %v4145 = vmul.f32 %v4049, %v4107
      %v4146 = vmul.f32 %v4050, %v4107
      %v4147 = vmul.f32 %v4051, %v4111
      %v4148 = vmul.f32 %v4052, %v4111
      %v4149 = vmul.f32 %v4053, %v4115
      %v4150 = vmul.f32 %v4054, %v4115
      %v4151 = vmul.f32 %v4055, %v4119
      %v4152 = vmul.f32 %v4056, %v4119
      %v4153 = vadd.f32 %v3897, %v4121
      %v4154 = vadd.f32 %v3898, %v4122
      %v4155 = vadd.f32 %v3899, %v4123
      %v4156 = vadd.f32 %v3900, %v4124
      %v4157 = vadd.f32 %v3901, %v4125
      %v4158 = vadd.f32 %v3902, %v4126
      %v4159 = vadd.f32 %v3903, %v4127
      %v4160 = vadd.f32 %v3904, %v4128
      %v4161 = vadd.f32 %v3905, %v4129
      %v4162 = vadd.f32 %v3906, %v4130
      %v4163 = vadd.f32 %v3907, %v4131
      %v4164 = vadd.f32 %v3908, %v4132
      %v4165 = vadd.f32 %v3909, %v4133
      %v4166 = vadd.f32 %v3910, %v4134
      %v4167 = vadd.f32 %v3911, %v4135
      %v4168 = vadd.f32 %v3912, %v4136
      %v4169 = vadd.f32 %v3913, %v4137
      %v4170 = vadd.f32 %v3914, %v4138
      %v4171 = vadd.f32 %v3915, %v4139
      %v4172 = vadd.f32 %v3916, %v4140
      %v4173 = vadd.f32 %v3917, %v4141
      %v4174 = vadd.f32 %v3918, %v4142
      %v4175 = vadd.f32 %v3919, %v4143
      %v4176 = vadd.f32 %v3920, %v4144
      %v4177 = vadd.f32 %v3921, %v4145
      %v4178 = vadd.f32 %v3922, %v4146
      %v4179 = vadd.f32 %v3923, %v4147
      %v4180 = vadd.f32 %v3924, %v4148
      %v4181 = vadd.f32 %v3925, %v4149
      %v4182 = vadd.f32 %v3926, %v4150
      %v4183 = vadd.f32 %v3927, %v4151
      %v4184 = vadd.f32 %v3928, %v4152
      %4185 = vrot.lane.b32.xlu0 %v3145, 112
      %v4186 = vpop.permute.xlu0 %4185
      %4187 = vrot.lane.b32.xlu0 %v3147, 112
      %v4188 = vpop.permute.xlu0 %4187
      %4189 = vrot.lane.b32.xlu0 %v3149, 112
      %v4190 = vpop.permute.xlu0 %4189
      %4191 = vrot.lane.b32.xlu0 %v3151, 112
      %v4192 = vpop.permute.xlu0 %4191
      %4193 = vrot.lane.b32.xlu0 %v3153, 112
      %v4194 = vpop.permute.xlu0 %4193
      %4195 = vrot.lane.b32.xlu0 %v3155, 112
      %v4196 = vpop.permute.xlu0 %4195
      %4197 = vrot.lane.b32.xlu0 %v3157, 112
      %v4198 = vpop.permute.xlu0 %4197
      %4199 = vrot.lane.b32.xlu0 %v3159, 112
      %v4200 = vpop.permute.xlu0 %4199
      %4201 = vrot.lane.b32.xlu0 %v3161, 112
      %v4202 = vpop.permute.xlu0 %4201
      %4203 = vrot.lane.b32.xlu0 %v3163, 112
      %v4204 = vpop.permute.xlu0 %4203
      %4205 = vrot.lane.b32.xlu0 %v3165, 112
      %v4206 = vpop.permute.xlu0 %4205
      %4207 = vrot.lane.b32.xlu0 %v3167, 112
      %v4208 = vpop.permute.xlu0 %4207
      %4209 = vrot.lane.b32.xlu0 %v3169, 112
      %v4210 = vpop.permute.xlu0 %4209
      %4211 = vrot.lane.b32.xlu0 %v3171, 112
      %v4212 = vpop.permute.xlu0 %4211
      %4213 = vrot.lane.b32.xlu0 %v3173, 112
      %v4214 = vpop.permute.xlu0 %4213
      %4215 = vrot.lane.b32.xlu0 %v3175, 112
      %v4216 = vpop.permute.xlu0 %4215
      %4217 = vrot.lane.b32.xlu0 %v3146, 112
      %v4218 = vpop.permute.xlu0 %4217
      %4219 = vrot.lane.b32.xlu0 %v3148, 112
      %v4220 = vpop.permute.xlu0 %4219
      %4221 = vrot.lane.b32.xlu0 %v3150, 112
      %v4222 = vpop.permute.xlu0 %4221
      %4223 = vrot.lane.b32.xlu0 %v3152, 112
      %v4224 = vpop.permute.xlu0 %4223
      %4225 = vrot.lane.b32.xlu0 %v3154, 112
      %v4226 = vpop.permute.xlu0 %4225
      %4227 = vrot.lane.b32.xlu0 %v3156, 112
      %v4228 = vpop.permute.xlu0 %4227
      %4229 = vrot.lane.b32.xlu0 %v3158, 112
      %v4230 = vpop.permute.xlu0 %4229
      %4231 = vrot.lane.b32.xlu0 %v3160, 112
      %v4232 = vpop.permute.xlu0 %4231
      %4233 = vrot.lane.b32.xlu0 %v3162, 112
      %v4234 = vpop.permute.xlu0 %4233
      %4235 = vrot.lane.b32.xlu0 %v3164, 112
      %v4236 = vpop.permute.xlu0 %4235
      %4237 = vrot.lane.b32.xlu0 %v3166, 112
      %v4238 = vpop.permute.xlu0 %4237
      %4239 = vrot.lane.b32.xlu0 %v3168, 112
      %v4240 = vpop.permute.xlu0 %4239
      %4241 = vrot.lane.b32.xlu0 %v3170, 112
      %v4242 = vpop.permute.xlu0 %4241
      %4243 = vrot.lane.b32.xlu0 %v3172, 112
      %v4244 = vpop.permute.xlu0 %4243
      %4245 = vrot.lane.b32.xlu0 %v3174, 112
      %v4246 = vpop.permute.xlu0 %4245
      %4247 = vrot.lane.b32.xlu0 %v3176, 112
      %v4248 = vpop.permute.xlu0 %4247
      %v4249 = vsel %vm1395, %v4186, %v4218
      %v4250 = vsel %vm1395, %v4188, %v4220
      %v4251 = vsel %vm1395, %v4190, %v4222
      %v4252 = vsel %vm1395, %v4192, %v4224
      %v4253 = vsel %vm1395, %v4194, %v4226
      %v4254 = vsel %vm1395, %v4196, %v4228
      %v4255 = vsel %vm1395, %v4198, %v4230
      %v4256 = vsel %vm1395, %v4200, %v4232
      %v4257 = vsel %vm1395, %v4202, %v4234
      %v4258 = vsel %vm1395, %v4204, %v4236
      %v4259 = vsel %vm1395, %v4206, %v4238
      %v4260 = vsel %vm1395, %v4208, %v4240
      %v4261 = vsel %vm1395, %v4210, %v4242
      %v4262 = vsel %vm1395, %v4212, %v4244
      %v4263 = vsel %vm1395, %v4214, %v4246
      %v4264 = vsel %vm1395, %v4216, %v4248
      %v4265 = vsel %vm1395, %v4218, %v4186
      %v4266 = vsel %vm1395, %v4220, %v4188
      %v4267 = vsel %vm1395, %v4222, %v4190
      %v4268 = vsel %vm1395, %v4224, %v4192
      %v4269 = vsel %vm1395, %v4226, %v4194
      %v4270 = vsel %vm1395, %v4228, %v4196
      %v4271 = vsel %vm1395, %v4230, %v4198
      %v4272 = vsel %vm1395, %v4232, %v4200
      %v4273 = vsel %vm1395, %v4234, %v4202
      %v4274 = vsel %vm1395, %v4236, %v4204
      %v4275 = vsel %vm1395, %v4238, %v4206
      %v4276 = vsel %vm1395, %v4240, %v4208
      %v4277 = vsel %vm1395, %v4242, %v4210
      %v4278 = vsel %vm1395, %v4244, %v4212
      %v4279 = vsel %vm1395, %v4246, %v4214
      %v4280 = vsel %vm1395, %v4248, %v4216
      %v4281 = vmul.f32 %v4249, %v1428
      %v4282 = vmul.f32 %v4265, %v1429
      %v4283 = vmul.f32 %v4250, %v1428
      %v4284 = vmul.f32 %v4266, %v1429
      %v4285 = vmul.f32 %v4251, %v1428
      %v4286 = vmul.f32 %v4267, %v1429
      %v4287 = vmul.f32 %v4252, %v1428
      %v4288 = vmul.f32 %v4268, %v1429
      %v4289 = vmul.f32 %v4253, %v1428
      %v4290 = vmul.f32 %v4269, %v1429
      %v4291 = vmul.f32 %v4254, %v1428
      %v4292 = vmul.f32 %v4270, %v1429
      %v4293 = vmul.f32 %v4255, %v1428
      %v4294 = vmul.f32 %v4271, %v1429
      %v4295 = vmul.f32 %v4256, %v1428
      %v4296 = vmul.f32 %v4272, %v1429
      %v4297 = vmul.f32 %v4257, %v1428
      %v4298 = vmul.f32 %v4273, %v1429
      %v4299 = vmul.f32 %v4258, %v1428
      %v4300 = vmul.f32 %v4274, %v1429
      %v4301 = vmul.f32 %v4259, %v1428
      %v4302 = vmul.f32 %v4275, %v1429
      %v4303 = vmul.f32 %v4260, %v1428
      %v4304 = vmul.f32 %v4276, %v1429
      %v4305 = vmul.f32 %v4261, %v1428
      %v4306 = vmul.f32 %v4277, %v1429
      %v4307 = vmul.f32 %v4262, %v1428
      %v4308 = vmul.f32 %v4278, %v1429
      %v4309 = vmul.f32 %v4263, %v1428
      %v4310 = vmul.f32 %v4279, %v1429
      %v4311 = vmul.f32 %v4264, %v1428
      %v4312 = vmul.f32 %v4280, %v1429
      %4313 = vset.pattern.permute.xlu0 8
      %4314 = vperm.xlu0 %4313, %v3033
      %v4315 = vpop.permute.xlu0 %4314
      %4317 = vset.pattern.permute.xlu0 8
      %4318 = vperm.xlu0 %4317, %v3034
      %v4319 = vpop.permute.xlu0 %4318
      %4321 = vset.pattern.permute.xlu0 8
      %4322 = vperm.xlu0 %4321, %v3035
      %v4323 = vpop.permute.xlu0 %4322
      %4325 = vset.pattern.permute.xlu0 8
      %4326 = vperm.xlu0 %4325, %v3036
      %v4327 = vpop.permute.xlu0 %4326
      %4329 = vset.pattern.permute.xlu0 8
      %4330 = vperm.xlu0 %4329, %v3037
      %v4331 = vpop.permute.xlu0 %4330
      %4333 = vset.pattern.permute.xlu0 8
      %4334 = vperm.xlu0 %4333, %v3038
      %v4335 = vpop.permute.xlu0 %4334
      %4337 = vset.pattern.permute.xlu0 8
      %4338 = vperm.xlu0 %4337, %v3039
      %v4339 = vpop.permute.xlu0 %4338
      %4341 = vset.pattern.permute.xlu0 8
      %4342 = vperm.xlu0 %4341, %v3040
      %v4343 = vpop.permute.xlu0 %4342
      %4345 = vset.pattern.permute.xlu0 8
      %4346 = vperm.xlu0 %4345, %v3041
      %v4347 = vpop.permute.xlu0 %4346
      %4349 = vset.pattern.permute.xlu0 8
      %4350 = vperm.xlu0 %4349, %v3042
      %v4351 = vpop.permute.xlu0 %4350
      %4353 = vset.pattern.permute.xlu0 8
      %4354 = vperm.xlu0 %4353, %v3043
      %v4355 = vpop.permute.xlu0 %4354
      %4357 = vset.pattern.permute.xlu0 8
      %4358 = vperm.xlu0 %4357, %v3044
      %v4359 = vpop.permute.xlu0 %4358
      %4361 = vset.pattern.permute.xlu0 8
      %4362 = vperm.xlu0 %4361, %v3045
      %v4363 = vpop.permute.xlu0 %4362
      %4365 = vset.pattern.permute.xlu0 8
      %4366 = vperm.xlu0 %4365, %v3046
      %v4367 = vpop.permute.xlu0 %4366
      %4369 = vset.pattern.permute.xlu0 8
      %4370 = vperm.xlu0 %4369, %v3047
      %v4371 = vpop.permute.xlu0 %4370
      %4373 = vset.pattern.permute.xlu0 8
      %4374 = vperm.xlu0 %4373, %v3048
      %v4375 = vpop.permute.xlu0 %4374
      %v4377 = vmul.f32 %v4281, %v4315
      %v4378 = vmul.f32 %v4282, %v4315
      %v4379 = vmul.f32 %v4283, %v4319
      %v4380 = vmul.f32 %v4284, %v4319
      %v4381 = vmul.f32 %v4285, %v4323
      %v4382 = vmul.f32 %v4286, %v4323
      %v4383 = vmul.f32 %v4287, %v4327
      %v4384 = vmul.f32 %v4288, %v4327
      %v4385 = vmul.f32 %v4289, %v4331
      %v4386 = vmul.f32 %v4290, %v4331
      %v4387 = vmul.f32 %v4291, %v4335
      %v4388 = vmul.f32 %v4292, %v4335
      %v4389 = vmul.f32 %v4293, %v4339
      %v4390 = vmul.f32 %v4294, %v4339
      %v4391 = vmul.f32 %v4295, %v4343
      %v4392 = vmul.f32 %v4296, %v4343
      %v4393 = vmul.f32 %v4297, %v4347
      %v4394 = vmul.f32 %v4298, %v4347
      %v4395 = vmul.f32 %v4299, %v4351
      %v4396 = vmul.f32 %v4300, %v4351
      %v4397 = vmul.f32 %v4301, %v4355
      %v4398 = vmul.f32 %v4302, %v4355
      %v4399 = vmul.f32 %v4303, %v4359
      %v4400 = vmul.f32 %v4304, %v4359
      %v4401 = vmul.f32 %v4305, %v4363
      %v4402 = vmul.f32 %v4306, %v4363
      %v4403 = vmul.f32 %v4307, %v4367
      %v4404 = vmul.f32 %v4308, %v4367
      %v4405 = vmul.f32 %v4309, %v4371
      %v4406 = vmul.f32 %v4310, %v4371
      %v4407 = vmul.f32 %v4311, %v4375
      %v4408 = vmul.f32 %v4312, %v4375
      %v4409 = vadd.f32 %v4153, %v4377
      %v4410 = vadd.f32 %v4154, %v4378
      %v4411 = vadd.f32 %v4155, %v4379
      %v4412 = vadd.f32 %v4156, %v4380
      %v4413 = vadd.f32 %v4157, %v4381
      %v4414 = vadd.f32 %v4158, %v4382
      %v4415 = vadd.f32 %v4159, %v4383
      %v4416 = vadd.f32 %v4160, %v4384
      %v4417 = vadd.f32 %v4161, %v4385
      %v4418 = vadd.f32 %v4162, %v4386
      %v4419 = vadd.f32 %v4163, %v4387
      %v4420 = vadd.f32 %v4164, %v4388
      %v4421 = vadd.f32 %v4165, %v4389
      %v4422 = vadd.f32 %v4166, %v4390
      %v4423 = vadd.f32 %v4167, %v4391
      %v4424 = vadd.f32 %v4168, %v4392
      %v4425 = vadd.f32 %v4169, %v4393
      %v4426 = vadd.f32 %v4170, %v4394
      %v4427 = vadd.f32 %v4171, %v4395
      %v4428 = vadd.f32 %v4172, %v4396
      %v4429 = vadd.f32 %v4173, %v4397
      %v4430 = vadd.f32 %v4174, %v4398
      %v4431 = vadd.f32 %v4175, %v4399
      %v4432 = vadd.f32 %v4176, %v4400
      %v4433 = vadd.f32 %v4177, %v4401
      %v4434 = vadd.f32 %v4178, %v4402
      %v4435 = vadd.f32 %v4179, %v4403
      %v4436 = vadd.f32 %v4180, %v4404
      %v4437 = vadd.f32 %v4181, %v4405
      %v4438 = vadd.f32 %v4182, %v4406
      %v4439 = vadd.f32 %v4183, %v4407
      %v4440 = vadd.f32 %v4184, %v4408
      %4441 = vrot.lane.b32.xlu0 %v3273, 16
      %v4442 = vpop.permute.xlu0 %4441
      %4443 = vrot.lane.b32.xlu0 %v3275, 16
      %v4444 = vpop.permute.xlu0 %4443
      %4445 = vrot.lane.b32.xlu0 %v3277, 16
      %v4446 = vpop.permute.xlu0 %4445
      %4447 = vrot.lane.b32.xlu0 %v3279, 16
      %v4448 = vpop.permute.xlu0 %4447
      %4449 = vrot.lane.b32.xlu0 %v3281, 16
      %v4450 = vpop.permute.xlu0 %4449
      %4451 = vrot.lane.b32.xlu0 %v3283, 16
      %v4452 = vpop.permute.xlu0 %4451
      %4453 = vrot.lane.b32.xlu0 %v3285, 16
      %v4454 = vpop.permute.xlu0 %4453
      %4455 = vrot.lane.b32.xlu0 %v3287, 16
      %v4456 = vpop.permute.xlu0 %4455
      %4457 = vrot.lane.b32.xlu0 %v3289, 16
      %v4458 = vpop.permute.xlu0 %4457
      %4459 = vrot.lane.b32.xlu0 %v3291, 16
      %v4460 = vpop.permute.xlu0 %4459
      %4461 = vrot.lane.b32.xlu0 %v3293, 16
      %v4462 = vpop.permute.xlu0 %4461
      %4463 = vrot.lane.b32.xlu0 %v3295, 16
      %v4464 = vpop.permute.xlu0 %4463
      %4465 = vrot.lane.b32.xlu0 %v3297, 16
      %v4466 = vpop.permute.xlu0 %4465
      %4467 = vrot.lane.b32.xlu0 %v3299, 16
      %v4468 = vpop.permute.xlu0 %4467
      %4469 = vrot.lane.b32.xlu0 %v3301, 16
      %v4470 = vpop.permute.xlu0 %4469
      %4471 = vrot.lane.b32.xlu0 %v3303, 16
      %v4472 = vpop.permute.xlu0 %4471
      %4473 = vrot.lane.b32.xlu0 %v3274, 16
      %v4474 = vpop.permute.xlu0 %4473
      %4475 = vrot.lane.b32.xlu0 %v3276, 16
      %v4476 = vpop.permute.xlu0 %4475
      %4477 = vrot.lane.b32.xlu0 %v3278, 16
      %v4478 = vpop.permute.xlu0 %4477
      %4479 = vrot.lane.b32.xlu0 %v3280, 16
      %v4480 = vpop.permute.xlu0 %4479
      %4481 = vrot.lane.b32.xlu0 %v3282, 16
      %v4482 = vpop.permute.xlu0 %4481
      %4483 = vrot.lane.b32.xlu0 %v3284, 16
      %v4484 = vpop.permute.xlu0 %4483
      %4485 = vrot.lane.b32.xlu0 %v3286, 16
      %v4486 = vpop.permute.xlu0 %4485
      %4487 = vrot.lane.b32.xlu0 %v3288, 16
      %v4488 = vpop.permute.xlu0 %4487
      %4489 = vrot.lane.b32.xlu0 %v3290, 16
      %v4490 = vpop.permute.xlu0 %4489
      %4491 = vrot.lane.b32.xlu0 %v3292, 16
      %v4492 = vpop.permute.xlu0 %4491
      %4493 = vrot.lane.b32.xlu0 %v3294, 16
      %v4494 = vpop.permute.xlu0 %4493
      %4495 = vrot.lane.b32.xlu0 %v3296, 16
      %v4496 = vpop.permute.xlu0 %4495
      %4497 = vrot.lane.b32.xlu0 %v3298, 16
      %v4498 = vpop.permute.xlu0 %4497
      %4499 = vrot.lane.b32.xlu0 %v3300, 16
      %v4500 = vpop.permute.xlu0 %4499
      %4501 = vrot.lane.b32.xlu0 %v3302, 16
      %v4502 = vpop.permute.xlu0 %4501
      %4503 = vrot.lane.b32.xlu0 %v3304, 16
      %v4504 = vpop.permute.xlu0 %4503
      %v4505 = vsel %vm2166, %v4442, %v4474
      %v4506 = vsel %vm2166, %v4444, %v4476
      %v4507 = vsel %vm2166, %v4446, %v4478
      %v4508 = vsel %vm2166, %v4448, %v4480
      %v4509 = vsel %vm2166, %v4450, %v4482
      %v4510 = vsel %vm2166, %v4452, %v4484
      %v4511 = vsel %vm2166, %v4454, %v4486
      %v4512 = vsel %vm2166, %v4456, %v4488
      %v4513 = vsel %vm2166, %v4458, %v4490
      %v4514 = vsel %vm2166, %v4460, %v4492
      %v4515 = vsel %vm2166, %v4462, %v4494
      %v4516 = vsel %vm2166, %v4464, %v4496
      %v4517 = vsel %vm2166, %v4466, %v4498
      %v4518 = vsel %vm2166, %v4468, %v4500
      %v4519 = vsel %vm2166, %v4470, %v4502
      %v4520 = vsel %vm2166, %v4472, %v4504
      %v4521 = vsel %vm2166, %v4474, %v4442
      %v4522 = vsel %vm2166, %v4476, %v4444
      %v4523 = vsel %vm2166, %v4478, %v4446
      %v4524 = vsel %vm2166, %v4480, %v4448
      %v4525 = vsel %vm2166, %v4482, %v4450
      %v4526 = vsel %vm2166, %v4484, %v4452
      %v4527 = vsel %vm2166, %v4486, %v4454
      %v4528 = vsel %vm2166, %v4488, %v4456
      %v4529 = vsel %vm2166, %v4490, %v4458
      %v4530 = vsel %vm2166, %v4492, %v4460
      %v4531 = vsel %vm2166, %v4494, %v4462
      %v4532 = vsel %vm2166, %v4496, %v4464
      %v4533 = vsel %vm2166, %v4498, %v4466
      %v4534 = vsel %vm2166, %v4500, %v4468
      %v4535 = vsel %vm2166, %v4502, %v4470
      %v4536 = vsel %vm2166, %v4504, %v4472
      %v4537 = vmul.f32 %v4521, %v2199
      %v4538 = vmul.f32 %v4505, %v2200
      %v4539 = vmul.f32 %v4522, %v2199
      %v4540 = vmul.f32 %v4506, %v2200
      %v4541 = vmul.f32 %v4523, %v2199
      %v4542 = vmul.f32 %v4507, %v2200
      %v4543 = vmul.f32 %v4524, %v2199
      %v4544 = vmul.f32 %v4508, %v2200
      %v4545 = vmul.f32 %v4525, %v2199
      %v4546 = vmul.f32 %v4509, %v2200
      %v4547 = vmul.f32 %v4526, %v2199
      %v4548 = vmul.f32 %v4510, %v2200
      %v4549 = vmul.f32 %v4527, %v2199
      %v4550 = vmul.f32 %v4511, %v2200
      %v4551 = vmul.f32 %v4528, %v2199
      %v4552 = vmul.f32 %v4512, %v2200
      %v4553 = vmul.f32 %v4529, %v2199
      %v4554 = vmul.f32 %v4513, %v2200
      %v4555 = vmul.f32 %v4530, %v2199
      %v4556 = vmul.f32 %v4514, %v2200
      %v4557 = vmul.f32 %v4531, %v2199
      %v4558 = vmul.f32 %v4515, %v2200
      %v4559 = vmul.f32 %v4532, %v2199
      %v4560 = vmul.f32 %v4516, %v2200
      %v4561 = vmul.f32 %v4533, %v2199
      %v4562 = vmul.f32 %v4517, %v2200
      %v4563 = vmul.f32 %v4534, %v2199
      %v4564 = vmul.f32 %v4518, %v2200
      %v4565 = vmul.f32 %v4535, %v2199
      %v4566 = vmul.f32 %v4519, %v2200
      %v4567 = vmul.f32 %v4536, %v2199
      %v4568 = vmul.f32 %v4520, %v2200
      %4569 = vset.pattern.permute.xlu0 0
      %4570 = vperm.xlu0 %4569, %v3033
      %v4571 = vpop.permute.xlu0 %4570
      %4573 = vset.pattern.permute.xlu0 0
      %4574 = vperm.xlu0 %4573, %v3034
      %v4575 = vpop.permute.xlu0 %4574
      %4577 = vset.pattern.permute.xlu0 0
      %4578 = vperm.xlu0 %4577, %v3035
      %v4579 = vpop.permute.xlu0 %4578
      %4581 = vset.pattern.permute.xlu0 0
      %4582 = vperm.xlu0 %4581, %v3036
      %v4583 = vpop.permute.xlu0 %4582
      %4585 = vset.pattern.permute.xlu0 0
      %4586 = vperm.xlu0 %4585, %v3037
      %v4587 = vpop.permute.xlu0 %4586
      %4589 = vset.pattern.permute.xlu0 0
      %4590 = vperm.xlu0 %4589, %v3038
      %v4591 = vpop.permute.xlu0 %4590
      %4593 = vset.pattern.permute.xlu0 0
      %4594 = vperm.xlu0 %4593, %v3039
      %v4595 = vpop.permute.xlu0 %4594
      %4597 = vset.pattern.permute.xlu0 0
      %4598 = vperm.xlu0 %4597, %v3040
      %v4599 = vpop.permute.xlu0 %4598
      %4601 = vset.pattern.permute.xlu0 0
      %4602 = vperm.xlu0 %4601, %v3041
      %v4603 = vpop.permute.xlu0 %4602
      %4605 = vset.pattern.permute.xlu0 0
      %4606 = vperm.xlu0 %4605, %v3042
      %v4607 = vpop.permute.xlu0 %4606
      %4609 = vset.pattern.permute.xlu0 0
      %4610 = vperm.xlu0 %4609, %v3043
      %v4611 = vpop.permute.xlu0 %4610
      %4613 = vset.pattern.permute.xlu0 0
      %4614 = vperm.xlu0 %4613, %v3044
      %v4615 = vpop.permute.xlu0 %4614
      %4617 = vset.pattern.permute.xlu0 0
      %4618 = vperm.xlu0 %4617, %v3045
      %v4619 = vpop.permute.xlu0 %4618
      %4621 = vset.pattern.permute.xlu0 0
      %4622 = vperm.xlu0 %4621, %v3046
      %v4623 = vpop.permute.xlu0 %4622
      %4625 = vset.pattern.permute.xlu0 0
      %4626 = vperm.xlu0 %4625, %v3047
      %v4627 = vpop.permute.xlu0 %4626
      %4629 = vset.pattern.permute.xlu0 0
      %4630 = vperm.xlu0 %4629, %v3048
      %v4631 = vpop.permute.xlu0 %4630
      %v4633 = vmul.f32 %v4537, %v4571
      %v4634 = vmul.f32 %v4538, %v4571
      %v4635 = vmul.f32 %v4539, %v4575
      %v4636 = vmul.f32 %v4540, %v4575
      %v4637 = vmul.f32 %v4541, %v4579
      %v4638 = vmul.f32 %v4542, %v4579
      %v4639 = vmul.f32 %v4543, %v4583
      %v4640 = vmul.f32 %v4544, %v4583
      %v4641 = vmul.f32 %v4545, %v4587
      %v4642 = vmul.f32 %v4546, %v4587
      %v4643 = vmul.f32 %v4547, %v4591
      %v4644 = vmul.f32 %v4548, %v4591
      %v4645 = vmul.f32 %v4549, %v4595
      %v4646 = vmul.f32 %v4550, %v4595
      %v4647 = vmul.f32 %v4551, %v4599
      %v4648 = vmul.f32 %v4552, %v4599
      %v4649 = vmul.f32 %v4553, %v4603
      %v4650 = vmul.f32 %v4554, %v4603
      %v4651 = vmul.f32 %v4555, %v4607
      %v4652 = vmul.f32 %v4556, %v4607
      %v4653 = vmul.f32 %v4557, %v4611
      %v4654 = vmul.f32 %v4558, %v4611
      %v4655 = vmul.f32 %v4559, %v4615
      %v4656 = vmul.f32 %v4560, %v4615
      %v4657 = vmul.f32 %v4561, %v4619
      %v4658 = vmul.f32 %v4562, %v4619
      %v4659 = vmul.f32 %v4563, %v4623
      %v4660 = vmul.f32 %v4564, %v4623
      %v4661 = vmul.f32 %v4565, %v4627
      %v4662 = vmul.f32 %v4566, %v4627
      %v4663 = vmul.f32 %v4567, %v4631
      %v4664 = vmul.f32 %v4568, %v4631
      %v4665 = vadd.f32 %v4409, %v4633
      %v4666 = vadd.f32 %v4410, %v4634
      %v4667 = vadd.f32 %v4411, %v4635
      %v4668 = vadd.f32 %v4412, %v4636
      %v4669 = vadd.f32 %v4413, %v4637
      %v4670 = vadd.f32 %v4414, %v4638
      %v4671 = vadd.f32 %v4415, %v4639
      %v4672 = vadd.f32 %v4416, %v4640
      %v4673 = vadd.f32 %v4417, %v4641
      %v4674 = vadd.f32 %v4418, %v4642
      %v4675 = vadd.f32 %v4419, %v4643
      %v4676 = vadd.f32 %v4420, %v4644
      %v4677 = vadd.f32 %v4421, %v4645
      %v4678 = vadd.f32 %v4422, %v4646
      %v4679 = vadd.f32 %v4423, %v4647
      %v4680 = vadd.f32 %v4424, %v4648
      %v4681 = vadd.f32 %v4425, %v4649
      %v4682 = vadd.f32 %v4426, %v4650
      %v4683 = vadd.f32 %v4427, %v4651
      %v4684 = vadd.f32 %v4428, %v4652
      %v4685 = vadd.f32 %v4429, %v4653
      %v4686 = vadd.f32 %v4430, %v4654
      %v4687 = vadd.f32 %v4431, %v4655
      %v4688 = vadd.f32 %v4432, %v4656
      %v4689 = vadd.f32 %v4433, %v4657
      %v4690 = vadd.f32 %v4434, %v4658
      %v4691 = vadd.f32 %v4435, %v4659
      %v4692 = vadd.f32 %v4436, %v4660
      %v4693 = vadd.f32 %v4437, %v4661
      %v4694 = vadd.f32 %v4438, %v4662
      %v4695 = vadd.f32 %v4439, %v4663
      %v4696 = vadd.f32 %v4440, %v4664
      %4697 = vrot.lane.b32.xlu0 %v3001, 16
      %v4698 = vpop.permute.xlu0 %4697
      %4699 = vrot.lane.b32.xlu0 %v3003, 16
      %v4700 = vpop.permute.xlu0 %4699
      %4701 = vrot.lane.b32.xlu0 %v3005, 16
      %v4702 = vpop.permute.xlu0 %4701
      %4703 = vrot.lane.b32.xlu0 %v3007, 16
      %v4704 = vpop.permute.xlu0 %4703
      %4705 = vrot.lane.b32.xlu0 %v3009, 16
      %v4706 = vpop.permute.xlu0 %4705
      %4707 = vrot.lane.b32.xlu0 %v3011, 16
      %v4708 = vpop.permute.xlu0 %4707
      %4709 = vrot.lane.b32.xlu0 %v3013, 16
      %v4710 = vpop.permute.xlu0 %4709
      %4711 = vrot.lane.b32.xlu0 %v3015, 16
      %v4712 = vpop.permute.xlu0 %4711
      %4713 = vrot.lane.b32.xlu0 %v3017, 16
      %v4714 = vpop.permute.xlu0 %4713
      %4715 = vrot.lane.b32.xlu0 %v3019, 16
      %v4716 = vpop.permute.xlu0 %4715
      %4717 = vrot.lane.b32.xlu0 %v3021, 16
      %v4718 = vpop.permute.xlu0 %4717
      %4719 = vrot.lane.b32.xlu0 %v3023, 16
      %v4720 = vpop.permute.xlu0 %4719
      %4721 = vrot.lane.b32.xlu0 %v3025, 16
      %v4722 = vpop.permute.xlu0 %4721
      %4723 = vrot.lane.b32.xlu0 %v3027, 16
      %v4724 = vpop.permute.xlu0 %4723
      %4725 = vrot.lane.b32.xlu0 %v3029, 16
      %v4726 = vpop.permute.xlu0 %4725
      %4727 = vrot.lane.b32.xlu0 %v3031, 16
      %v4728 = vpop.permute.xlu0 %4727
      %4729 = vrot.lane.b32.xlu0 %v3002, 16
      %v4730 = vpop.permute.xlu0 %4729
      %4731 = vrot.lane.b32.xlu0 %v3004, 16
      %v4732 = vpop.permute.xlu0 %4731
      %4733 = vrot.lane.b32.xlu0 %v3006, 16
      %v4734 = vpop.permute.xlu0 %4733
      %4735 = vrot.lane.b32.xlu0 %v3008, 16
      %v4736 = vpop.permute.xlu0 %4735
      %4737 = vrot.lane.b32.xlu0 %v3010, 16
      %v4738 = vpop.permute.xlu0 %4737
      %4739 = vrot.lane.b32.xlu0 %v3012, 16
      %v4740 = vpop.permute.xlu0 %4739
      %4741 = vrot.lane.b32.xlu0 %v3014, 16
      %v4742 = vpop.permute.xlu0 %4741
      %4743 = vrot.lane.b32.xlu0 %v3016, 16
      %v4744 = vpop.permute.xlu0 %4743
      %4745 = vrot.lane.b32.xlu0 %v3018, 16
      %v4746 = vpop.permute.xlu0 %4745
      %4747 = vrot.lane.b32.xlu0 %v3020, 16
      %v4748 = vpop.permute.xlu0 %4747
      %4749 = vrot.lane.b32.xlu0 %v3022, 16
      %v4750 = vpop.permute.xlu0 %4749
      %4751 = vrot.lane.b32.xlu0 %v3024, 16
      %v4752 = vpop.permute.xlu0 %4751
      %4753 = vrot.lane.b32.xlu0 %v3026, 16
      %v4754 = vpop.permute.xlu0 %4753
      %4755 = vrot.lane.b32.xlu0 %v3028, 16
      %v4756 = vpop.permute.xlu0 %4755
      %4757 = vrot.lane.b32.xlu0 %v3030, 16
      %v4758 = vpop.permute.xlu0 %4757
      %4759 = vrot.lane.b32.xlu0 %v3032, 16
      %v4760 = vpop.permute.xlu0 %4759
      %v4761 = vsel %vm2166, %v4698, %v4730
      %v4762 = vsel %vm2166, %v4700, %v4732
      %v4763 = vsel %vm2166, %v4702, %v4734
      %v4764 = vsel %vm2166, %v4704, %v4736
      %v4765 = vsel %vm2166, %v4706, %v4738
      %v4766 = vsel %vm2166, %v4708, %v4740
      %v4767 = vsel %vm2166, %v4710, %v4742
      %v4768 = vsel %vm2166, %v4712, %v4744
      %v4769 = vsel %vm2166, %v4714, %v4746
      %v4770 = vsel %vm2166, %v4716, %v4748
      %v4771 = vsel %vm2166, %v4718, %v4750
      %v4772 = vsel %vm2166, %v4720, %v4752
      %v4773 = vsel %vm2166, %v4722, %v4754
      %v4774 = vsel %vm2166, %v4724, %v4756
      %v4775 = vsel %vm2166, %v4726, %v4758
      %v4776 = vsel %vm2166, %v4728, %v4760
      %v4777 = vsel %vm2166, %v4730, %v4698
      %v4778 = vsel %vm2166, %v4732, %v4700
      %v4779 = vsel %vm2166, %v4734, %v4702
      %v4780 = vsel %vm2166, %v4736, %v4704
      %v4781 = vsel %vm2166, %v4738, %v4706
      %v4782 = vsel %vm2166, %v4740, %v4708
      %v4783 = vsel %vm2166, %v4742, %v4710
      %v4784 = vsel %vm2166, %v4744, %v4712
      %v4785 = vsel %vm2166, %v4746, %v4714
      %v4786 = vsel %vm2166, %v4748, %v4716
      %v4787 = vsel %vm2166, %v4750, %v4718
      %v4788 = vsel %vm2166, %v4752, %v4720
      %v4789 = vsel %vm2166, %v4754, %v4722
      %v4790 = vsel %vm2166, %v4756, %v4724
      %v4791 = vsel %vm2166, %v4758, %v4726
      %v4792 = vsel %vm2166, %v4760, %v4728
      %v4793 = vmul.f32 %v4777, %v2199
      %v4794 = vmul.f32 %v4761, %v2200
      %v4795 = vmul.f32 %v4778, %v2199
      %v4796 = vmul.f32 %v4762, %v2200
      %v4797 = vmul.f32 %v4779, %v2199
      %v4798 = vmul.f32 %v4763, %v2200
      %v4799 = vmul.f32 %v4780, %v2199
      %v4800 = vmul.f32 %v4764, %v2200
      %v4801 = vmul.f32 %v4781, %v2199
      %v4802 = vmul.f32 %v4765, %v2200
      %v4803 = vmul.f32 %v4782, %v2199
      %v4804 = vmul.f32 %v4766, %v2200
      %v4805 = vmul.f32 %v4783, %v2199
      %v4806 = vmul.f32 %v4767, %v2200
      %v4807 = vmul.f32 %v4784, %v2199
      %v4808 = vmul.f32 %v4768, %v2200
      %v4809 = vmul.f32 %v4785, %v2199
      %v4810 = vmul.f32 %v4769, %v2200
      %v4811 = vmul.f32 %v4786, %v2199
      %v4812 = vmul.f32 %v4770, %v2200
      %v4813 = vmul.f32 %v4787, %v2199
      %v4814 = vmul.f32 %v4771, %v2200
      %v4815 = vmul.f32 %v4788, %v2199
      %v4816 = vmul.f32 %v4772, %v2200
      %v4817 = vmul.f32 %v4789, %v2199
      %v4818 = vmul.f32 %v4773, %v2200
      %v4819 = vmul.f32 %v4790, %v2199
      %v4820 = vmul.f32 %v4774, %v2200
      %v4821 = vmul.f32 %v4791, %v2199
      %v4822 = vmul.f32 %v4775, %v2200
      %v4823 = vmul.f32 %v4792, %v2199
      %v4824 = vmul.f32 %v4776, %v2200
      %4825 = vset.pattern.permute.xlu0 1
      %4826 = vperm.xlu0 %4825, %v3033
      %v4827 = vpop.permute.xlu0 %4826
      %4829 = vset.pattern.permute.xlu0 1
      %4830 = vperm.xlu0 %4829, %v3034
      %v4831 = vpop.permute.xlu0 %4830
      %4833 = vset.pattern.permute.xlu0 1
      %4834 = vperm.xlu0 %4833, %v3035
      %v4835 = vpop.permute.xlu0 %4834
      %4837 = vset.pattern.permute.xlu0 1
      %4838 = vperm.xlu0 %4837, %v3036
      %v4839 = vpop.permute.xlu0 %4838
      %4841 = vset.pattern.permute.xlu0 1
      %4842 = vperm.xlu0 %4841, %v3037
      %v4843 = vpop.permute.xlu0 %4842
      %4845 = vset.pattern.permute.xlu0 1
      %4846 = vperm.xlu0 %4845, %v3038
      %v4847 = vpop.permute.xlu0 %4846
      %4849 = vset.pattern.permute.xlu0 1
      %4850 = vperm.xlu0 %4849, %v3039
      %v4851 = vpop.permute.xlu0 %4850
      %4853 = vset.pattern.permute.xlu0 1
      %4854 = vperm.xlu0 %4853, %v3040
      %v4855 = vpop.permute.xlu0 %4854
      %4857 = vset.pattern.permute.xlu0 1
      %4858 = vperm.xlu0 %4857, %v3041
      %v4859 = vpop.permute.xlu0 %4858
      %4861 = vset.pattern.permute.xlu0 1
      %4862 = vperm.xlu0 %4861, %v3042
      %v4863 = vpop.permute.xlu0 %4862
      %4865 = vset.pattern.permute.xlu0 1
      %4866 = vperm.xlu0 %4865, %v3043
      %v4867 = vpop.permute.xlu0 %4866
      %4869 = vset.pattern.permute.xlu0 1
      %4870 = vperm.xlu0 %4869, %v3044
      %v4871 = vpop.permute.xlu0 %4870
      %4873 = vset.pattern.permute.xlu0 1
      %4874 = vperm.xlu0 %4873, %v3045
      %v4875 = vpop.permute.xlu0 %4874
      %4877 = vset.pattern.permute.xlu0 1
      %4878 = vperm.xlu0 %4877, %v3046
      %v4879 = vpop.permute.xlu0 %4878
      %4881 = vset.pattern.permute.xlu0 1
      %4882 = vperm.xlu0 %4881, %v3047
      %v4883 = vpop.permute.xlu0 %4882
      %4885 = vset.pattern.permute.xlu0 1
      %4886 = vperm.xlu0 %4885, %v3048
      %v4887 = vpop.permute.xlu0 %4886
      %v4889 = vmul.f32 %v4793, %v4827
      %v4890 = vmul.f32 %v4794, %v4827
      %v4891 = vmul.f32 %v4795, %v4831
      %v4892 = vmul.f32 %v4796, %v4831
      %v4893 = vmul.f32 %v4797, %v4835
      %v4894 = vmul.f32 %v4798, %v4835
      %v4895 = vmul.f32 %v4799, %v4839
      %v4896 = vmul.f32 %v4800, %v4839
      %v4897 = vmul.f32 %v4801, %v4843
      %v4898 = vmul.f32 %v4802, %v4843
      %v4899 = vmul.f32 %v4803, %v4847
      %v4900 = vmul.f32 %v4804, %v4847
      %v4901 = vmul.f32 %v4805, %v4851
      %v4902 = vmul.f32 %v4806, %v4851
      %v4903 = vmul.f32 %v4807, %v4855
      %v4904 = vmul.f32 %v4808, %v4855
      %v4905 = vmul.f32 %v4809, %v4859
      %v4906 = vmul.f32 %v4810, %v4859
      %v4907 = vmul.f32 %v4811, %v4863
      %v4908 = vmul.f32 %v4812, %v4863
      %v4909 = vmul.f32 %v4813, %v4867
      %v4910 = vmul.f32 %v4814, %v4867
      %v4911 = vmul.f32 %v4815, %v4871
      %v4912 = vmul.f32 %v4816, %v4871
      %v4913 = vmul.f32 %v4817, %v4875
      %v4914 = vmul.f32 %v4818, %v4875
      %v4915 = vmul.f32 %v4819, %v4879
      %v4916 = vmul.f32 %v4820, %v4879
      %v4917 = vmul.f32 %v4821, %v4883
      %v4918 = vmul.f32 %v4822, %v4883
      %v4919 = vmul.f32 %v4823, %v4887
      %v4920 = vmul.f32 %v4824, %v4887
      %v4921 = vadd.f32 %v4665, %v4889
      %v4922 = vadd.f32 %v4666, %v4890
      %v4923 = vadd.f32 %v4667, %v4891
      %v4924 = vadd.f32 %v4668, %v4892
      %v4925 = vadd.f32 %v4669, %v4893
      %v4926 = vadd.f32 %v4670, %v4894
      %v4927 = vadd.f32 %v4671, %v4895
      %v4928 = vadd.f32 %v4672, %v4896
      %v4929 = vadd.f32 %v4673, %v4897
      %v4930 = vadd.f32 %v4674, %v4898
      %v4931 = vadd.f32 %v4675, %v4899
      %v4932 = vadd.f32 %v4676, %v4900
      %v4933 = vadd.f32 %v4677, %v4901
      %v4934 = vadd.f32 %v4678, %v4902
      %v4935 = vadd.f32 %v4679, %v4903
      %v4936 = vadd.f32 %v4680, %v4904
      %v4937 = vadd.f32 %v4681, %v4905
      %v4938 = vadd.f32 %v4682, %v4906
      %v4939 = vadd.f32 %v4683, %v4907
      %v4940 = vadd.f32 %v4684, %v4908
      %v4941 = vadd.f32 %v4685, %v4909
      %v4942 = vadd.f32 %v4686, %v4910
      %v4943 = vadd.f32 %v4687, %v4911
      %v4944 = vadd.f32 %v4688, %v4912
      %v4945 = vadd.f32 %v4689, %v4913
      %v4946 = vadd.f32 %v4690, %v4914
      %v4947 = vadd.f32 %v4691, %v4915
      %v4948 = vadd.f32 %v4692, %v4916
      %v4949 = vadd.f32 %v4693, %v4917
      %v4950 = vadd.f32 %v4694, %v4918
      %v4951 = vadd.f32 %v4695, %v4919
      %v4952 = vadd.f32 %v4696, %v4920
      %4953 = vrot.lane.b32.xlu0 %v3145, 16
      %v4954 = vpop.permute.xlu0 %4953
      %4955 = vrot.lane.b32.xlu0 %v3147, 16
      %v4956 = vpop.permute.xlu0 %4955
      %4957 = vrot.lane.b32.xlu0 %v3149, 16
      %v4958 = vpop.permute.xlu0 %4957
      %4959 = vrot.lane.b32.xlu0 %v3151, 16
      %v4960 = vpop.permute.xlu0 %4959
      %4961 = vrot.lane.b32.xlu0 %v3153, 16
      %v4962 = vpop.permute.xlu0 %4961
      %4963 = vrot.lane.b32.xlu0 %v3155, 16
      %v4964 = vpop.permute.xlu0 %4963
      %4965 = vrot.lane.b32.xlu0 %v3157, 16
      %v4966 = vpop.permute.xlu0 %4965
      %4967 = vrot.lane.b32.xlu0 %v3159, 16
      %v4968 = vpop.permute.xlu0 %4967
      %4969 = vrot.lane.b32.xlu0 %v3161, 16
      %v4970 = vpop.permute.xlu0 %4969
      %4971 = vrot.lane.b32.xlu0 %v3163, 16
      %v4972 = vpop.permute.xlu0 %4971
      %4973 = vrot.lane.b32.xlu0 %v3165, 16
      %v4974 = vpop.permute.xlu0 %4973
      %4975 = vrot.lane.b32.xlu0 %v3167, 16
      %v4976 = vpop.permute.xlu0 %4975
      %4977 = vrot.lane.b32.xlu0 %v3169, 16
      %v4978 = vpop.permute.xlu0 %4977
      %4979 = vrot.lane.b32.xlu0 %v3171, 16
      %v4980 = vpop.permute.xlu0 %4979
      %4981 = vrot.lane.b32.xlu0 %v3173, 16
      %v4982 = vpop.permute.xlu0 %4981
      %4983 = vrot.lane.b32.xlu0 %v3175, 16
      %v4984 = vpop.permute.xlu0 %4983
      %4985 = vrot.lane.b32.xlu0 %v3146, 16
      %v4986 = vpop.permute.xlu0 %4985
      %4987 = vrot.lane.b32.xlu0 %v3148, 16
      %v4988 = vpop.permute.xlu0 %4987
      %4989 = vrot.lane.b32.xlu0 %v3150, 16
      %v4990 = vpop.permute.xlu0 %4989
      %4991 = vrot.lane.b32.xlu0 %v3152, 16
      %v4992 = vpop.permute.xlu0 %4991
      %4993 = vrot.lane.b32.xlu0 %v3154, 16
      %v4994 = vpop.permute.xlu0 %4993
      %4995 = vrot.lane.b32.xlu0 %v3156, 16
      %v4996 = vpop.permute.xlu0 %4995
      %4997 = vrot.lane.b32.xlu0 %v3158, 16
      %v4998 = vpop.permute.xlu0 %4997
      %4999 = vrot.lane.b32.xlu0 %v3160, 16
      %v5000 = vpop.permute.xlu0 %4999
      %5001 = vrot.lane.b32.xlu0 %v3162, 16
      %v5002 = vpop.permute.xlu0 %5001
      %5003 = vrot.lane.b32.xlu0 %v3164, 16
      %v5004 = vpop.permute.xlu0 %5003
      %5005 = vrot.lane.b32.xlu0 %v3166, 16
      %v5006 = vpop.permute.xlu0 %5005
      %5007 = vrot.lane.b32.xlu0 %v3168, 16
      %v5008 = vpop.permute.xlu0 %5007
      %5009 = vrot.lane.b32.xlu0 %v3170, 16
      %v5010 = vpop.permute.xlu0 %5009
      %5011 = vrot.lane.b32.xlu0 %v3172, 16
      %v5012 = vpop.permute.xlu0 %5011
      %5013 = vrot.lane.b32.xlu0 %v3174, 16
      %v5014 = vpop.permute.xlu0 %5013
      %5015 = vrot.lane.b32.xlu0 %v3176, 16
      %v5016 = vpop.permute.xlu0 %5015
      %v5017 = vsel %vm2166, %v4954, %v4986
      %v5018 = vsel %vm2166, %v4956, %v4988
      %v5019 = vsel %vm2166, %v4958, %v4990
      %v5020 = vsel %vm2166, %v4960, %v4992
      %v5021 = vsel %vm2166, %v4962, %v4994
      %v5022 = vsel %vm2166, %v4964, %v4996
      %v5023 = vsel %vm2166, %v4966, %v4998
      %v5024 = vsel %vm2166, %v4968, %v5000
      %v5025 = vsel %vm2166, %v4970, %v5002
      %v5026 = vsel %vm2166, %v4972, %v5004
      %v5027 = vsel %vm2166, %v4974, %v5006
      %v5028 = vsel %vm2166, %v4976, %v5008
      %v5029 = vsel %vm2166, %v4978, %v5010
      %v5030 = vsel %vm2166, %v4980, %v5012
      %v5031 = vsel %vm2166, %v4982, %v5014
      %v5032 = vsel %vm2166, %v4984, %v5016
      %v5033 = vsel %vm2166, %v4986, %v4954
      %v5034 = vsel %vm2166, %v4988, %v4956
      %v5035 = vsel %vm2166, %v4990, %v4958
      %v5036 = vsel %vm2166, %v4992, %v4960
      %v5037 = vsel %vm2166, %v4994, %v4962
      %v5038 = vsel %vm2166, %v4996, %v4964
      %v5039 = vsel %vm2166, %v4998, %v4966
      %v5040 = vsel %vm2166, %v5000, %v4968
      %v5041 = vsel %vm2166, %v5002, %v4970
      %v5042 = vsel %vm2166, %v5004, %v4972
      %v5043 = vsel %vm2166, %v5006, %v4974
      %v5044 = vsel %vm2166, %v5008, %v4976
      %v5045 = vsel %vm2166, %v5010, %v4978
      %v5046 = vsel %vm2166, %v5012, %v4980
      %v5047 = vsel %vm2166, %v5014, %v4982
      %v5048 = vsel %vm2166, %v5016, %v4984
      %v5049 = vmul.f32 %v5033, %v2199
      %v5050 = vmul.f32 %v5017, %v2200
      %v5051 = vmul.f32 %v5034, %v2199
      %v5052 = vmul.f32 %v5018, %v2200
      %v5053 = vmul.f32 %v5035, %v2199
      %v5054 = vmul.f32 %v5019, %v2200
      %v5055 = vmul.f32 %v5036, %v2199
      %v5056 = vmul.f32 %v5020, %v2200
      %v5057 = vmul.f32 %v5037, %v2199
      %v5058 = vmul.f32 %v5021, %v2200
      %v5059 = vmul.f32 %v5038, %v2199
      %v5060 = vmul.f32 %v5022, %v2200
      %v5061 = vmul.f32 %v5039, %v2199
      %v5062 = vmul.f32 %v5023, %v2200
      %v5063 = vmul.f32 %v5040, %v2199
      %v5064 = vmul.f32 %v5024, %v2200
      %v5065 = vmul.f32 %v5041, %v2199
      %v5066 = vmul.f32 %v5025, %v2200
      %v5067 = vmul.f32 %v5042, %v2199
      %v5068 = vmul.f32 %v5026, %v2200
      %v5069 = vmul.f32 %v5043, %v2199
      %v5070 = vmul.f32 %v5027, %v2200
      %v5071 = vmul.f32 %v5044, %v2199
      %v5072 = vmul.f32 %v5028, %v2200
      %v5073 = vmul.f32 %v5045, %v2199
      %v5074 = vmul.f32 %v5029, %v2200
      %v5075 = vmul.f32 %v5046, %v2199
      %v5076 = vmul.f32 %v5030, %v2200
      %v5077 = vmul.f32 %v5047, %v2199
      %v5078 = vmul.f32 %v5031, %v2200
      %v5079 = vmul.f32 %v5048, %v2199
      %v5080 = vmul.f32 %v5032, %v2200
      %5081 = vset.pattern.permute.xlu0 2
      %5082 = vperm.xlu0 %5081, %v3033
      %v5083 = vpop.permute.xlu0 %5082
      %5085 = vset.pattern.permute.xlu0 2
      %5086 = vperm.xlu0 %5085, %v3034
      %v5087 = vpop.permute.xlu0 %5086
      %5089 = vset.pattern.permute.xlu0 2
      %5090 = vperm.xlu0 %5089, %v3035
      %v5091 = vpop.permute.xlu0 %5090
      %5093 = vset.pattern.permute.xlu0 2
      %5094 = vperm.xlu0 %5093, %v3036
      %v5095 = vpop.permute.xlu0 %5094
      %5097 = vset.pattern.permute.xlu0 2
      %5098 = vperm.xlu0 %5097, %v3037
      %v5099 = vpop.permute.xlu0 %5098
      %5101 = vset.pattern.permute.xlu0 2
      %5102 = vperm.xlu0 %5101, %v3038
      %v5103 = vpop.permute.xlu0 %5102
      %5105 = vset.pattern.permute.xlu0 2
      %5106 = vperm.xlu0 %5105, %v3039
      %v5107 = vpop.permute.xlu0 %5106
      %5109 = vset.pattern.permute.xlu0 2
      %5110 = vperm.xlu0 %5109, %v3040
      %v5111 = vpop.permute.xlu0 %5110
      %5113 = vset.pattern.permute.xlu0 2
      %5114 = vperm.xlu0 %5113, %v3041
      %v5115 = vpop.permute.xlu0 %5114
      %5117 = vset.pattern.permute.xlu0 2
      %5118 = vperm.xlu0 %5117, %v3042
      %v5119 = vpop.permute.xlu0 %5118
      %5121 = vset.pattern.permute.xlu0 2
      %5122 = vperm.xlu0 %5121, %v3043
      %v5123 = vpop.permute.xlu0 %5122
      %5125 = vset.pattern.permute.xlu0 2
      %5126 = vperm.xlu0 %5125, %v3044
      %v5127 = vpop.permute.xlu0 %5126
      %5129 = vset.pattern.permute.xlu0 2
      %5130 = vperm.xlu0 %5129, %v3045
      %v5131 = vpop.permute.xlu0 %5130
      %5133 = vset.pattern.permute.xlu0 2
      %5134 = vperm.xlu0 %5133, %v3046
      %v5135 = vpop.permute.xlu0 %5134
      %5137 = vset.pattern.permute.xlu0 2
      %5138 = vperm.xlu0 %5137, %v3047
      %v5139 = vpop.permute.xlu0 %5138
      %5141 = vset.pattern.permute.xlu0 2
      %5142 = vperm.xlu0 %5141, %v3048
      %v5143 = vpop.permute.xlu0 %5142
      %v5145 = vmul.f32 %v5049, %v5083
      %v5146 = vmul.f32 %v5050, %v5083
      %v5147 = vmul.f32 %v5051, %v5087
      %v5148 = vmul.f32 %v5052, %v5087
      %v5149 = vmul.f32 %v5053, %v5091
      %v5150 = vmul.f32 %v5054, %v5091
      %v5151 = vmul.f32 %v5055, %v5095
      %v5152 = vmul.f32 %v5056, %v5095
      %v5153 = vmul.f32 %v5057, %v5099
      %v5154 = vmul.f32 %v5058, %v5099
      %v5155 = vmul.f32 %v5059, %v5103
      %v5156 = vmul.f32 %v5060, %v5103
      %v5157 = vmul.f32 %v5061, %v5107
      %v5158 = vmul.f32 %v5062, %v5107
      %v5159 = vmul.f32 %v5063, %v5111
      %v5160 = vmul.f32 %v5064, %v5111
      %v5161 = vmul.f32 %v5065, %v5115
      %v5162 = vmul.f32 %v5066, %v5115
      %v5163 = vmul.f32 %v5067, %v5119
      %v5164 = vmul.f32 %v5068, %v5119
      %v5165 = vmul.f32 %v5069, %v5123
      %v5166 = vmul.f32 %v5070, %v5123
      %v5167 = vmul.f32 %v5071, %v5127
      %v5168 = vmul.f32 %v5072, %v5127
      %v5169 = vmul.f32 %v5073, %v5131
      %v5170 = vmul.f32 %v5074, %v5131
      %v5171 = vmul.f32 %v5075, %v5135
      %v5172 = vmul.f32 %v5076, %v5135
      %v5173 = vmul.f32 %v5077, %v5139
      %v5174 = vmul.f32 %v5078, %v5139
      %v5175 = vmul.f32 %v5079, %v5143
      %v5176 = vmul.f32 %v5080, %v5143
      %v5177 = vadd.f32 %v4921, %v5145
      %v5178 = vadd.f32 %v4922, %v5146
      %v5179 = vadd.f32 %v4923, %v5147
      %v5180 = vadd.f32 %v4924, %v5148
      %v5181 = vadd.f32 %v4925, %v5149
      %v5182 = vadd.f32 %v4926, %v5150
      %v5183 = vadd.f32 %v4927, %v5151
      %v5184 = vadd.f32 %v4928, %v5152
      %v5185 = vadd.f32 %v4929, %v5153
      %v5186 = vadd.f32 %v4930, %v5154
      %v5187 = vadd.f32 %v4931, %v5155
      %v5188 = vadd.f32 %v4932, %v5156
      %v5189 = vadd.f32 %v4933, %v5157
      %v5190 = vadd.f32 %v4934, %v5158
      %v5191 = vadd.f32 %v4935, %v5159
      %v5192 = vadd.f32 %v4936, %v5160
      %v5193 = vadd.f32 %v4937, %v5161
      %v5194 = vadd.f32 %v4938, %v5162
      %v5195 = vadd.f32 %v4939, %v5163
      %v5196 = vadd.f32 %v4940, %v5164
      %v5197 = vadd.f32 %v4941, %v5165
      %v5198 = vadd.f32 %v4942, %v5166
      %v5199 = vadd.f32 %v4943, %v5167
      %v5200 = vadd.f32 %v4944, %v5168
      %v5201 = vadd.f32 %v4945, %v5169
      %v5202 = vadd.f32 %v4946, %v5170
      %v5203 = vadd.f32 %v4947, %v5171
      %v5204 = vadd.f32 %v4948, %v5172
      %v5205 = vadd.f32 %v4949, %v5173
      %v5206 = vadd.f32 %v4950, %v5174
      %v5207 = vadd.f32 %v4951, %v5175
      %v5208 = vadd.f32 %v4952, %v5176
      %v5209 = vld [vmem:[%s7] sm:$0xff]
      %v5210 = vld [vmem:[%s7 + $0x8] sm:$0xff]
      %v5211 = vld [vmem:[%s7 + $0x10] sm:$0xff]
      %v5212 = vld [vmem:[%s7 + $0x18] sm:$0xff]
      %v5213 = vld [vmem:[%s7 + $0x20] sm:$0xff]
      %v5214 = vld [vmem:[%s7 + $0x28] sm:$0xff]
      %v5215 = vld [vmem:[%s7 + $0x30] sm:$0xff]
      %v5216 = vld [vmem:[%s7 + $0x38] sm:$0xff]
      %v5217 = vld [vmem:[%s7 + $0x40] sm:$0xff]
      %v5218 = vld [vmem:[%s7 + $0x48] sm:$0xff]
      %v5219 = vld [vmem:[%s7 + $0x50] sm:$0xff]
      %v5220 = vld [vmem:[%s7 + $0x58] sm:$0xff]
      %v5221 = vld [vmem:[%s7 + $0x60] sm:$0xff]
      %v5222 = vld [vmem:[%s7 + $0x68] sm:$0xff]
      %v5223 = vld [vmem:[%s7 + $0x70] sm:$0xff]
      %v5224 = vld [vmem:[%s7 + $0x78] sm:$0xff]
      %5226 = vset.pattern.permute.xlu0 0
      %5227 = vperm.xlu0 %5226, %v5209
      %v5228 = vpop.permute.xlu0 %5227
      %5231 = vset.pattern.permute.xlu0 0
      %5232 = vperm.xlu0 %5231, %v5210
      %v5233 = vpop.permute.xlu0 %5232
      %5236 = vset.pattern.permute.xlu0 0
      %5237 = vperm.xlu0 %5236, %v5211
      %v5238 = vpop.permute.xlu0 %5237
      %5241 = vset.pattern.permute.xlu0 0
      %5242 = vperm.xlu0 %5241, %v5212
      %v5243 = vpop.permute.xlu0 %5242
      %5246 = vset.pattern.permute.xlu0 0
      %5247 = vperm.xlu0 %5246, %v5213
      %v5248 = vpop.permute.xlu0 %5247
      %5251 = vset.pattern.permute.xlu0 0
      %5252 = vperm.xlu0 %5251, %v5214
      %v5253 = vpop.permute.xlu0 %5252
      %5256 = vset.pattern.permute.xlu0 0
      %5257 = vperm.xlu0 %5256, %v5215
      %v5258 = vpop.permute.xlu0 %5257
      %5261 = vset.pattern.permute.xlu0 0
      %5262 = vperm.xlu0 %5261, %v5216
      %v5263 = vpop.permute.xlu0 %5262
      %5266 = vset.pattern.permute.xlu0 0
      %5267 = vperm.xlu0 %5266, %v5217
      %v5268 = vpop.permute.xlu0 %5267
      %5271 = vset.pattern.permute.xlu0 0
      %5272 = vperm.xlu0 %5271, %v5218
      %v5273 = vpop.permute.xlu0 %5272
      %5276 = vset.pattern.permute.xlu0 0
      %5277 = vperm.xlu0 %5276, %v5219
      %v5278 = vpop.permute.xlu0 %5277
      %5281 = vset.pattern.permute.xlu0 0
      %5282 = vperm.xlu0 %5281, %v5220
      %v5283 = vpop.permute.xlu0 %5282
      %5286 = vset.pattern.permute.xlu0 0
      %5287 = vperm.xlu0 %5286, %v5221
      %v5288 = vpop.permute.xlu0 %5287
      %5291 = vset.pattern.permute.xlu0 0
      %5292 = vperm.xlu0 %5291, %v5222
      %v5293 = vpop.permute.xlu0 %5292
      %5296 = vset.pattern.permute.xlu0 0
      %5297 = vperm.xlu0 %5296, %v5223
      %v5298 = vpop.permute.xlu0 %5297
      %5301 = vset.pattern.permute.xlu0 0
      %5302 = vperm.xlu0 %5301, %v5224
      %v5303 = vpop.permute.xlu0 %5302
      %v5305 = vadd.f32 %v5177, %v5228
      %v5306 = vadd.f32 %v5178, %v5228
      %v5307 = vadd.f32 %v5179, %v5233
      %v5308 = vadd.f32 %v5180, %v5233
      %v5309 = vadd.f32 %v5181, %v5238
      %v5310 = vadd.f32 %v5182, %v5238
      %v5311 = vadd.f32 %v5183, %v5243
      %v5312 = vadd.f32 %v5184, %v5243
      %v5313 = vadd.f32 %v5185, %v5248
      %v5314 = vadd.f32 %v5186, %v5248
      %v5315 = vadd.f32 %v5187, %v5253
      %v5316 = vadd.f32 %v5188, %v5253
      %v5317 = vadd.f32 %v5189, %v5258
      %v5318 = vadd.f32 %v5190, %v5258
      %v5319 = vadd.f32 %v5191, %v5263
      %v5320 = vadd.f32 %v5192, %v5263
      %v5321 = vadd.f32 %v5193, %v5268
      %v5322 = vadd.f32 %v5194, %v5268
      %v5323 = vadd.f32 %v5195, %v5273
      %v5324 = vadd.f32 %v5196, %v5273
      %v5325 = vadd.f32 %v5197, %v5278
      %v5326 = vadd.f32 %v5198, %v5278
      %v5327 = vadd.f32 %v5199, %v5283
      %v5328 = vadd.f32 %v5200, %v5283
      %v5329 = vadd.f32 %v5201, %v5288
      %v5330 = vadd.f32 %v5202, %v5288
      %v5331 = vadd.f32 %v5203, %v5293
      %v5332 = vadd.f32 %v5204, %v5293
      %v5333 = vadd.f32 %v5205, %v5298
      %v5334 = vadd.f32 %v5206, %v5298
      %v5335 = vadd.f32 %v5207, %v5303
      %v5336 = vadd.f32 %v5208, %v5303
      %v5337 = vmax.f32 %v5305, 0.0
      %v5338 = vmax.f32 %v5306, 0.0
      %v5339 = vmax.f32 %v5307, 0.0
      %v5340 = vmax.f32 %v5308, 0.0
      %v5341 = vmax.f32 %v5309, 0.0
      %v5342 = vmax.f32 %v5310, 0.0
      %v5343 = vmax.f32 %v5311, 0.0
      %v5344 = vmax.f32 %v5312, 0.0
      %v5345 = vmax.f32 %v5313, 0.0
      %v5346 = vmax.f32 %v5314, 0.0
      %v5347 = vmax.f32 %v5315, 0.0
      %v5348 = vmax.f32 %v5316, 0.0
      %v5349 = vmax.f32 %v5317, 0.0
      %v5350 = vmax.f32 %v5318, 0.0
      %v5351 = vmax.f32 %v5319, 0.0
      %v5352 = vmax.f32 %v5320, 0.0
      %v5353 = vmax.f32 %v5321, 0.0
      %v5354 = vmax.f32 %v5322, 0.0
      %v5355 = vmax.f32 %v5323, 0.0
      %v5356 = vmax.f32 %v5324, 0.0
      %v5357 = vmax.f32 %v5325, 0.0
      %v5358 = vmax.f32 %v5326, 0.0
      %v5359 = vmax.f32 %v5327, 0.0
      %v5360 = vmax.f32 %v5328, 0.0
      %v5361 = vmax.f32 %v5329, 0.0
      %v5362 = vmax.f32 %v5330, 0.0
      %v5363 = vmax.f32 %v5331, 0.0
      %v5364 = vmax.f32 %v5332, 0.0
      %v5365 = vmax.f32 %v5333, 0.0
      %v5366 = vmax.f32 %v5334, 0.0
      %v5367 = vmax.f32 %v5335, 0.0
      %v5368 = vmax.f32 %v5336, 0.0
      %v5369 = vld [vmem:[%s8] sm:$0xf]
      %v5370 = vpack.c.bf16 %v5339, %v5337
      %v5371 = vpack.c.bf16 %v5340, %v5338
      %v5372 = vpack.c.bf16 %v5343, %v5341
      %v5373 = vpack.c.bf16 %v5344, %v5342
      %v5374 = vpack.c.bf16 %v5347, %v5345
      %v5375 = vpack.c.bf16 %v5348, %v5346
      %v5376 = vpack.c.bf16 %v5351, %v5349
      %v5377 = vpack.c.bf16 %v5352, %v5350
      %v5378 = vpack.c.bf16 %v5355, %v5353
      %v5379 = vpack.c.bf16 %v5356, %v5354
      %v5380 = vpack.c.bf16 %v5359, %v5357
      %v5381 = vpack.c.bf16 %v5360, %v5358
      %v5382 = vpack.c.bf16 %v5363, %v5361
      %v5383 = vpack.c.bf16 %v5364, %v5362
      %v5384 = vpack.c.bf16 %v5367, %v5365
      %v5385 = vpack.c.bf16 %v5368, %v5366
      %v5386 = vld [vmem:[%s9] sm:$0xff]
      %5388 = vset.pattern.permute.xlu0 0
      %5389 = vperm.xlu0 %5388, %v5386
      %v5390 = vpop.permute.xlu0 %5389
      %5392 = vmatpush.bf16.msra.mxu0 %v5384
      %5393 = vmatpush.bf16.msra.mxu0 %v5382
      %5394 = vmatpush.bf16.msra.mxu0 %v5380
      %5395 = vmatpush.bf16.msra.mxu0 %v5378
      %5396 = vmatpush.bf16.msra.mxu0 %v5376
      %5397 = vmatpush.bf16.msra.mxu0 %v5374
      %5398 = vmatpush.bf16.msra.mxu0 %v5372
      %5399 = vmatpush.bf16.msra.mxu0 %v5370
      %5400 = vmatmul.bf16.gmra.mxu0 %v5369
      %v5401 = vpop.f32.mrf.mxu0
      %v5402 = vadd.f32 %v5390, %v5401
      %v5403 = vpop.f32.mrf.mxu0
      %5404 = vdwg.mxu0
      %5405 = vmatpush.bf16.msra.mxu0 %v5385
      %5406 = vmatpush.bf16.msra.mxu0 %v5383
      %5407 = vmatpush.bf16.msra.mxu0 %v5381
      %5408 = vmatpush.bf16.msra.mxu0 %v5379
      %5409 = vmatpush.bf16.msra.mxu0 %v5377
      %5410 = vmatpush.bf16.msra.mxu0 %v5375
      %5411 = vmatpush.bf16.msra.mxu0 %v5373
      %5412 = vmatpush.bf16.msra.mxu0 %v5371
      %5413 = vmatmul.bf16.gmra.mxu0 %v5369
      %v5414 = vpop.f32.mrf.mxu0
      %v5415 = vadd.f32 %v5390, %v5414
      %v5416 = vpop.f32.mrf.mxu0
      %5417 = vdwg.mxu0
      %5418 = vst [vmem:[%s359] sm:$0xff] %v5402
      %5419 = vst [vmem:[%s359 + $0x8] sm:$0xff] %v5415
      %p5420 = scmp.lt.s32.totalorder %s21, 1
      %s5421 = scalar_select %p5420, %s21, 1
      %s5422 = smul.addr %s5421, 2
      %s5423 = smul.addr %s5422, 8
      %s5424 = scalar_lea.vmem %s10, %s5423
      // Predicated region
      $region61: #{run_cascade.2} parent=59 // pred_check
        %p5425 = pneg %p254
      $region62: #{run_cascade.2} parent=59 // pred_check_branch
        %5427 = sbr.rel (%p5425) target = $region64
      $region63: #{run_cascade.2} parent=59 // pred_region
        _
      $region64: #{run_cascade.2} parent=59 // pred_fallthru
        _
    $region60: #{run_cascade.2} parent=5 // pred_fallthru
      _
    %p5428 = scmp.le.s32.totalorder 2, %s16
    // Predicated region
    $region65: #{run_cascade.2} parent=5 // pred_check
      %p5429 = pneg %p5428
    $region66: #{run_cascade.2} parent=5 // pred_check_branch
      %5431 = sbr.rel (%p5429) target = $region68
    $region67: #{run_cascade.2} parent=5 // pred_region
      %s5432 = ssub.s32 %s16, 2
      // Predicated region
      $region69: #{run_cascade.2} parent=67 // pred_check
        %p5433 = pneg %p260
      $region70: #{run_cascade.2} parent=67 // pred_check_branch
        %5435 = sbr.rel (%p5433) target = $region72
      $region71: #{run_cascade.2} parent=67 // pred_region
        %p5436 = scmp.lt.s32.totalorder %s22, 1
        %s5437 = scalar_select %p5436, %s22, 1
        %s5438 = smul.addr %s5437, 2
        %s5439 = smul.addr %s5438, 8
        %s5440 = scalar_lea.vmem %s10, %s5439
      $region72: #{run_cascade.2} parent=67 // pred_fallthru
        _
    $region68: #{run_cascade.2} parent=5 // pred_fallthru
      _
  $region6: #{run_cascade.2} parent=0 // loop_footer
    %s20 = sadd.s32 1, %s16
  $region7: #{run_cascade.2} parent=0 // loop_footer_branch
    %15 = sbr.rel target = $region3
  $region8: #{run_cascade.2} parent=0 // loop_exit
    _

</llo_original>
